<compile_context>
chip_gen: v7x
topology: tpu7x:2x2x1
jax: 0.10.0
libtpu: 0.0.40
codegen_flags: <defaults>
</compile_context>

<pallas_src>
import math

import jax
import jax.numpy as jnp
from jax import lax
from jax.experimental import pallas as pl
from jax.experimental.pallas import tpu as pltpu


def _erf_approx(x):
    # Abramowitz & Stegun 7.1.26; max abs error ~1.5e-7 (lax.erf has no Mosaic lowering).
    a1, a2, a3, a4, a5 = (0.254829592, -0.284496736, 1.421413741,
                          -1.453152027, 1.061405429)
    p = 0.3275911
    ax = jnp.abs(x)
    # EUP approximate reciprocal: keeps the divide off the VALU that carries the polynomial.
    t = pl.reciprocal(1.0 + p * ax, approx=True)
    poly = ((((a5 * t + a4) * t + a3) * t + a2) * t + a1) * t
    y = 1.0 - poly * jnp.exp(-ax * ax)
    return jnp.where(x >= 0, y, -y)


def _gelu_exact(x):
    # matches torch.nn.GELU() default (erf-based, not tanh approximation)
    return 0.5 * x * (1.0 + _erf_approx(x * (1.0 / math.sqrt(2.0))))


def _feedforward_kernel(x_ref, w1_ref, b1_ref, w2_ref, b2_ref, w3_ref, b3_ref,
                        o_ref, pad_ref):
    TN, H, W, C = x_ref.shape
    hidden = w1_ref.shape[1]
    M = TN * H * W

    # ---- project_in: 1x1x1 conv == channel matmul (bf16 operands, f32 accumulation) ----
    x = x_ref[...].reshape(M, C)                                        # bf16
    h = jnp.dot(x, w1_ref[...], preferred_element_type=jnp.float32) + b1_ref[...]
    h = h.reshape(TN, H, W, hidden)                                     # f32

    # ---- zero-padded scratch for the (1,3,3) conv: refresh ONLY the 1-pixel halo ----
    zrow = jnp.zeros((TN, 1, W + 2, hidden), jnp.float32)
    zcol = jnp.zeros((TN, H, 1, hidden), jnp.float32)
    pad_ref[:, 0:1, :, :] = zrow
    pad_ref[:, H + 1:H + 2, :, :] = zrow
    pad_ref[:, 1:H + 1, 0:1, :] = zcol
    pad_ref[:, 1:H + 1, W + 1:W + 2, :] = zcol
    pad_ref[:, 1:H + 1, 1:W + 1, :] = h                                  # interior overwrite

    # ---- im2col: 3 W-shifted windows (sublane axis), then 3 H shifts on an outer axis ----
    # whw lane order = [dx=0 | dx=1 | dx=2], each `hidden` wide.
    whw = jnp.concatenate([pad_ref[:, :, dx:dx + W, :] for dx in range(3)],
                          axis=-1)                                       # (TN, H+2, W, 3*hidden)
    # lhs lane order = [dy=0(dx0,dx1,dx2) | dy=1(...) | dy=2(...)]  ->  k = dy*3 + dx
    lhs = jnp.concatenate([whw[:, dy:dy + H] for dy in range(3)],
                          axis=-1)                                       # (TN, H, W, 9*hidden)
    lhs = lhs.reshape(M, 9 * hidden).astype(jnp.bfloat16)

    # ---- (1,3,3) conv fused into one MXU matmul: (M, 9*hidden) @ (9*hidden, hidden) ----
    conv = jnp.dot(lhs, w2_ref[...], preferred_element_type=jnp.float32) + b2_ref[...]

    # ---- GELU (exact / erf-based, same as torch default) ----
    g = _gelu_exact(conv)

    # ---- project_out second 1x1x1 conv: hidden -> dim ----
    out = jnp.dot(g.astype(jnp.bfloat16), w3_ref[...],
                  preferred_element_type=jnp.float32) + b3_ref[...]
    o_ref[...] = out.reshape(TN, H, W, C).astype(o_ref.dtype)


def _vmem_bytes_estimate(tn, h, w, c, hidden, out_bytes):
    """Rough per-grid-step VMEM footprint used to size TN (budgeted for v7x 64 MiB/TC)."""
    m = tn * h * w
    io = 2 * m * c * 2 + 2 * m * c * out_bytes                 # double-buffered bf16 in / out blocks
    wts = 2 * (2 * (c * hidden + 9 * hidden * hidden + hidden * c) + 4 * (2 * hidden + c))
    pad = tn * (h + 2) * (w + 2) * hidden * 4                   # padded f32 scratch
    # live intermediates: h(f32) + whw(3*hidden f32) + im2col(9*hidden f32 + bf16) + conv/gelu f32
    inter = m * hidden * 4 * (1 + 3 + 9 + 2) + m * hidden * 9 * 2 + m * c * 4
    return io + wts + pad + inter


def _choose_tn(n, h, w, c, hidden, out_bytes, budget_bytes):
    """Largest divisor of n whose footprint fits the budget, keeping >= 2 grid steps
    so both v7x TensorCores get work (the grid axis is 'parallel')."""
    best = 1
    for tn in range(1, n + 1):
        if n % tn:
            continue
        if n > 1 and n // tn < 2:
            continue
        if _vmem_bytes_estimate(tn, h, w, c, hidden, out_bytes) <= budget_bytes:
            best = tn
    return best


def feedforward_pallas(x, params, *, vmem_budget_bytes=40 * 1024 * 1024):
    """x: (B, C, F, H, W), params in PyTorch Conv3d layout (O, I, kD, kH, kW weights)."""
    w1_t, b1, w2_t, b2, w3_t, b3 = params
    B, C, F, H, W = x.shape
    hidden = w1_t.shape[0]
    N = B * F

    # NCFHW -> (B*F, H, W, C), cast to bf16 once (halves HBM->VMEM DMA bytes).
    x_nhwc = jnp.transpose(x, (0, 2, 3, 4, 1)).reshape(N, H, W, C).astype(jnp.bfloat16)

    # Weight re-layouts for matmul form; single bf16 cast in the wrapper.
    w1 = jnp.transpose(w1_t[:, :, 0, 0, 0]).astype(jnp.bfloat16)                  # (C, hidden)
    w2 = (jnp.transpose(w2_t[:, :, 0], (2, 3, 1, 0))                              # (kH, kW, I, O)
          .reshape(9 * hidden, hidden).astype(jnp.bfloat16))                      # row k = ky*3+kx
    w3 = jnp.transpose(w3_t[:, :, 0, 0, 0]).astype(jnp.bfloat16)                  # (hidden, C)
    b1r = b1.reshape(1, hidden).astype(jnp.float32)
    b2r = b2.reshape(1, hidden).astype(jnp.float32)
    b3r = b3.reshape(1, C).astype(jnp.float32)

    out_bytes = jnp.dtype(x.dtype).itemsize
    TN = _choose_tn(N, H, W, C, hidden, out_bytes, vmem_budget_bytes)

    out = pl.pallas_call(
        _feedforward_kernel,
        out_shape=jax.ShapeDtypeStruct((N, H, W, C), x.dtype),
        grid_spec=pltpu.PrefetchScalarGridSpec(
            num_scalar_prefetch=0,
            grid=(N // TN,),
            in_specs=[
                pl.BlockSpec((TN, H, W, C), lambda n: (n, 0, 0, 0)),
                pl.BlockSpec((C, hidden), lambda n: (0, 0)),
                pl.BlockSpec((1, hidden), lambda n: (0, 0)),
                pl.BlockSpec((9 * hidden, hidden), lambda n: (0, 0)),
                pl.BlockSpec((1, hidden), lambda n: (0, 0)),
                pl.BlockSpec((hidden, C), lambda n: (0, 0)),
                pl.BlockSpec((1, C), lambda n: (0, 0)),
            ],
            out_specs=pl.BlockSpec((TN, H, W, C), lambda n: (n, 0, 0, 0)),
            scratch_shapes=[pltpu.VMEM((TN, H + 2, W + 2, hidden), jnp.float32)],
        ),
        compiler_params=pltpu.CompilerParams(
            dimension_semantics=("parallel",),
            # Explicit: above the 16/32 MiB scoped defaults, inside v7x's 64 MiB per TC.
            vmem_limit_bytes=56 * 1024 * 1024,
        ),
    )(x_nhwc, w1, b1r, w2, b2r, w3, b3r)

    # (B*F, H, W, C) -> NCFHW
    return jnp.transpose(out.reshape(B, F, H, W, C), (0, 4, 1, 2, 3))


def feedforward_reference(x, params):
    """Pure-JAX f32 reference using lax.conv_general_dilated (PyTorch Conv3d semantics)."""
    w1_t, b1, w2_t, b2, w3_t, b3 = params
    dn = lax.conv_dimension_numbers(x.shape, w1_t.shape, ("NCDHW", "OIDHW", "NCDHW"))
    y = lax.conv_general_dilated(x, w1_t, (1, 1, 1), [(0, 0)] * 3,
                                 dimension_numbers=dn)
    y = y + b1.reshape(1, -1, 1, 1, 1)
    y = lax.conv_general_dilated(y, w2_t, (1, 1, 1), [(0, 0), (1, 1), (1, 1)],
                                 dimension_numbers=dn)
    y = y + b2.reshape(1, -1, 1, 1, 1)
    y = jax.nn.gelu(y, approximate=False)
    y = lax.conv_general_dilated(y, w3_t, (1, 1, 1), [(0, 0)] * 3,
                                 dimension_numbers=dn)
    return y + b3.reshape(1, -1, 1, 1, 1)


if __name__ == "__main__":
    key = jax.random.PRNGKey(0)
    B, dim, F, H, W = 2, 4, 2, 16, 16
    mult = 4
    hidden = dim * mult

    ks = jax.random.split(key, 7)
    x = jax.random.normal(ks[0], (B, dim, F, H, W), jnp.float32)
    # deterministic synthetic parameters (PyTorch Conv3d weight layout: O, I, kD, kH, kW)
    w1_t = 0.2 * jax.random.normal(ks[1], (hidden, dim, 1, 1, 1), jnp.float32)
    b1 = 0.1 * jax.random.normal(ks[2], (hidden,), jnp.float32)
    w2_t = 0.1 * jax.random.normal(ks[3], (hidden, hidden, 1, 3, 3), jnp.float32)
    b2 = 0.1 * jax.random.normal(ks[4], (hidden,), jnp.float32)
    w3_t = 0.2 * jax.random.normal(ks[5], (dim, hidden, 1, 1, 1), jnp.float32)
    b3 = 0.1 * jax.random.normal(ks[6], (dim,), jnp.float32)
    params = (w1_t, b1, w2_t, b2, w3_t, b3)

    out = jax.block_until_ready(feedforward_pallas(x, params))
    ref = jax.block_until_ready(feedforward_reference(x, params))

    assert out.shape == x.shape, (out.shape, x.shape)
    # bf16 MXU operands (f32 accumulation) vs the all-f32 reference -> bf16-level tolerance.
    max_err = float(jnp.max(jnp.abs(out - ref)))
    if not bool(jnp.allclose(out, ref, atol=5e-2, rtol=5e-2)):
        raise AssertionError(f"mismatch vs reference, max abs err = {max_err}")
    print("KERNEL_OK")
</pallas_src>

<mosaic_0001>
module attributes {stable_mosaic.version = 11 : i64} {
  func.func @_feedforward_kernel(%arg0: i32, %arg1: memref<2x16x16x4xbf16, #tpu.memory_space<vmem>>, %arg2: memref<4x16xbf16, #tpu.memory_space<vmem>>, %arg3: memref<1x16xf32, #tpu.memory_space<vmem>>, %arg4: memref<144x16xbf16, #tpu.memory_space<vmem>>, %arg5: memref<1x16xf32, #tpu.memory_space<vmem>>, %arg6: memref<16x4xbf16, #tpu.memory_space<vmem>>, %arg7: memref<1x4xf32, #tpu.memory_space<vmem>>, %arg8: memref<2x16x16x4xf32, #tpu.memory_space<vmem>>, %arg9: memref<2x18x18x16xf32, #tpu.memory_space<vmem>>) attributes {dimension_semantics = [#tpu.dimension_semantics<parallel>], iteration_bounds = array<i64: 2>, scalar_prefetch = 0 : i64, scratch_operands = 1 : i64, tpu.core_type = #tpu.core_type<tc>, window_params = [{transform_indices = @transform_0, window_bounds = array<i64: 2, 16, 16, 4>}, {pipeline_mode = #tpu.pipeline_mode<synchronous>, transform_indices = @transform_1, window_bounds = array<i64: 4, 16>}, {pipeline_mode = #tpu.pipeline_mode<synchronous>, transform_indices = @transform_2, window_bounds = array<i64: 1, 16>}, {pipeline_mode = #tpu.pipeline_mode<synchronous>, transform_indices = @transform_3, window_bounds = array<i64: 144, 16>}, {pipeline_mode = #tpu.pipeline_mode<synchronous>, transform_indices = @transform_4, window_bounds = array<i64: 1, 16>}, {pipeline_mode = #tpu.pipeline_mode<synchronous>, transform_indices = @transform_5, window_bounds = array<i64: 16, 4>}, {pipeline_mode = #tpu.pipeline_mode<synchronous>, transform_indices = @transform_6, window_bounds = array<i64: 1, 4>}, {transform_indices = @transform_7, window_bounds = array<i64: 2, 16, 16, 4>}]} {
    %c0 = arith.constant 0 : index
    %c0_0 = arith.constant 0 : index
    %c0_1 = arith.constant 0 : index
    %c0_2 = arith.constant 0 : index
    %0 = vector.load %arg1[%c0, %c0_0, %c0_1, %c0_2] : memref<2x16x16x4xbf16, #tpu.memory_space<vmem>>, vector<2x16x16x4xbf16>
    %1 = vector.shape_cast %0 : vector<2x16x16x4xbf16> to vector<512x4xbf16>
    %c0_3 = arith.constant 0 : index
    %c0_4 = arith.constant 0 : index
    %2 = vector.load %arg2[%c0_3, %c0_4] : memref<4x16xbf16, #tpu.memory_space<vmem>>, vector<4x16xbf16>
    %cst = arith.constant dense<0.000000e+00> : vector<512x16xf32>
    %3 = tpu.matmul %1, %2, %cst {dimension_numbers = #tpu.dot_dimension_numbers<[1], [0], [0], [1], [0, 0, 1, 1], [], []>} : vector<512x4xbf16>, vector<4x16xbf16>, vector<512x16xf32> -> vector<512x16xf32>
    %c0_5 = arith.constant 0 : index
    %c0_6 = arith.constant 0 : index
    %4 = vector.load %arg3[%c0_5, %c0_6] : memref<1x16xf32, #tpu.memory_space<vmem>>, vector<1x16xf32>
    %5 = vector.broadcast %4 : vector<1x16xf32> to vector<512x16xf32>
    %6 = arith.addf %3, %5 : vector<512x16xf32>
    %7 = vector.shape_cast %6 : vector<512x16xf32> to vector<2x16x16x16xf32>
    %cst_7 = arith.constant 0.000000e+00 : f32
    %8 = vector.broadcast %cst_7 : f32 to vector<2x1x18x16xf32>
    %cst_8 = arith.constant 0.000000e+00 : f32
    %9 = vector.broadcast %cst_8 : f32 to vector<2x16x1x16xf32>
    %c0_9 = arith.constant 0 : index
    %c0_10 = arith.constant 0 : index
    %c0_11 = arith.constant 0 : index
    %c0_12 = arith.constant 0 : index
    %10 = vector.load %arg9[%c0_9, %c0_10, %c0_11, %c0_12] : memref<2x18x18x16xf32, #tpu.memory_space<vmem>>, vector<2x1x18x16xf32>
    tpu.vector_store %arg9[%c0_9, %c0_10, %c0_11, %c0_12], %8 {strides = array<i32>} : memref<2x18x18x16xf32, #tpu.memory_space<vmem>>, vector<2x1x18x16xf32>,
    %c0_13 = arith.constant 0 : index
    %c17 = arith.constant 17 : index
    %c0_14 = arith.constant 0 : index
    %c0_15 = arith.constant 0 : index
    %11 = vector.load %arg9[%c0_13, %c17, %c0_14, %c0_15] : memref<2x18x18x16xf32, #tpu.memory_space<vmem>>, vector<2x1x18x16xf32>
    tpu.vector_store %arg9[%c0_13, %c17, %c0_14, %c0_15], %8 {strides = array<i32>} : memref<2x18x18x16xf32, #tpu.memory_space<vmem>>, vector<2x1x18x16xf32>,
    %c0_16 = arith.constant 0 : index
    %c1 = arith.constant 1 : index
    %c0_17 = arith.constant 0 : index
    %c0_18 = arith.constant 0 : index
    %12 = vector.load %arg9[%c0_16, %c1, %c0_17, %c0_18] : memref<2x18x18x16xf32, #tpu.memory_space<vmem>>, vector<2x16x1x16xf32>
    tpu.vector_store %arg9[%c0_16, %c1, %c0_17, %c0_18], %9 {strides = array<i32>} : memref<2x18x18x16xf32, #tpu.memory_space<vmem>>, vector<2x16x1x16xf32>,
    %c0_19 = arith.constant 0 : index
    %c1_20 = arith.constant 1 : index
    %c17_21 = arith.constant 17 : index
    %c0_22 = arith.constant 0 : index
    %13 = vector.load %arg9[%c0_19, %c1_20, %c17_21, %c0_22] : memref<2x18x18x16xf32, #tpu.memory_space<vmem>>, vector<2x16x1x16xf32>
    tpu.vector_store %arg9[%c0_19, %c1_20, %c17_21, %c0_22], %9 {strides = array<i32>} : memref<2x18x18x16xf32, #tpu.memory_space<vmem>>, vector<2x16x1x16xf32>,
    %c0_23 = arith.constant 0 : index
    %c1_24 = arith.constant 1 : index
    %c1_25 = arith.constant 1 : index
    %c0_26 = arith.constant 0 : index
    %14 = vector.load %arg9[%c0_23, %c1_24, %c1_25, %c0_26] : memref<2x18x18x16xf32, #tpu.memory_space<vmem>>, vector<2x16x16x16xf32>
    tpu.vector_store %arg9[%c0_23, %c1_24, %c1_25, %c0_26], %7 {strides = array<i32>} : memref<2x18x18x16xf32, #tpu.memory_space<vmem>>, vector<2x16x16x16xf32>,
    %c0_27 = arith.constant 0 : index
    %c0_28 = arith.constant 0 : index
    %c0_29 = arith.constant 0 : index
    %c0_30 = arith.constant 0 : index
    %15 = vector.load %arg9[%c0_27, %c0_28, %c0_29, %c0_30] : memref<2x18x18x16xf32, #tpu.memory_space<vmem>>, vector<2x18x16x16xf32>
    %c0_31 = arith.constant 0 : index
    %c0_32 = arith.constant 0 : index
    %c1_33 = arith.constant 1 : index
    %c0_34 = arith.constant 0 : index
    %16 = vector.load %arg9[%c0_31, %c0_32, %c1_33, %c0_34] : memref<2x18x18x16xf32, #tpu.memory_space<vmem>>, vector<2x18x16x16xf32>
    %c0_35 = arith.constant 0 : index
    %c0_36 = arith.constant 0 : index
    %c2 = arith.constant 2 : index
    %c0_37 = arith.constant 0 : index
    %17 = vector.load %arg9[%c0_35, %c0_36, %c2, %c0_37] : memref<2x18x18x16xf32, #tpu.memory_space<vmem>>, vector<2x18x16x16xf32>
    %18 = tpu.concatenate %15, %16, %17 in 3 : vector<2x18x16x16xf32>, vector<2x18x16x16xf32>, vector<2x18x16x16xf32> -> vector<2x18x16x48xf32>
    %19 = vector.extract_strided_slice %18 {offsets = [0, 0, 0, 0], sizes = [2, 16, 16, 48], strides = [1, 1, 1, 1]} : vector<2x18x16x48xf32> to vector<2x16x16x48xf32>
    %20 = vector.extract_strided_slice %18 {offsets = [0, 1, 0, 0], sizes = [2, 16, 16, 48], strides = [1, 1, 1, 1]} : vector<2x18x16x48xf32> to vector<2x16x16x48xf32>
    %21 = vector.extract_strided_slice %18 {offsets = [0, 2, 0, 0], sizes = [2, 16, 16, 48], strides = [1, 1, 1, 1]} : vector<2x18x16x48xf32> to vector<2x16x16x48xf32>
    %22 = tpu.concatenate %19, %20, %21 in 3 : vector<2x16x16x48xf32>, vector<2x16x16x48xf32>, vector<2x16x16x48xf32> -> vector<2x16x16x144xf32>
    %23 = vector.shape_cast %22 : vector<2x16x16x144xf32> to vector<512x144xf32>
    %24 = arith.truncf %23 : vector<512x144xf32> to vector<512x144xbf16>
    %c0_38 = arith.constant 0 : index
    %c0_39 = arith.constant 0 : index
    %25 = vector.load %arg4[%c0_38, %c0_39] : memref<144x16xbf16, #tpu.memory_space<vmem>>, vector<144x16xbf16>
    %cst_40 = arith.constant dense<0.000000e+00> : vector<512x16xf32>
    %26 = tpu.matmul %24, %25, %cst_40 {dimension_numbers = #tpu.dot_dimension_numbers<[1], [0], [0], [1], [0, 0, 1, 1], [], []>} : vector<512x144xbf16>, vector<144x16xbf16>, vector<512x16xf32> -> vector<512x16xf32>
    %c0_41 = arith.constant 0 : index
    %c0_42 = arith.constant 0 : index
    %27 = vector.load %arg5[%c0_41, %c0_42] : memref<1x16xf32, #tpu.memory_space<vmem>>, vector<1x16xf32>
    %28 = vector.broadcast %27 : vector<1x16xf32> to vector<512x16xf32>
    %29 = arith.addf %26, %28 : vector<512x16xf32>
    %cst_43 = arith.constant 5.000000e-01 : f32
    %30 = vector.broadcast %cst_43 : f32 to vector<512x16xf32>
    %31 = arith.mulf %30, %29 : vector<512x16xf32>
    %cst_44 = arith.constant 0.707106769 : f32
    %32 = vector.broadcast %cst_44 : f32 to vector<512x16xf32>
    %33 = arith.mulf %29, %32 : vector<512x16xf32>
    %34 = math.absf %33 : vector<512x16xf32>
    %cst_45 = arith.constant 0.327591091 : f32
    %35 = vector.broadcast %cst_45 : f32 to vector<512x16xf32>
    %36 = arith.mulf %35, %34 : vector<512x16xf32>
    %cst_46 = arith.constant 1.000000e+00 : f32
    %37 = vector.broadcast %cst_46 : f32 to vector<512x16xf32>
    %38 = arith.addf %37, %36 : vector<512x16xf32>
    %39 = tpu.reciprocal %38 {approx = true} : vector<512x16xf32> -> vector<512x16xf32>
    %cst_47 = arith.constant 1.06140542 : f32
    %40 = vector.broadcast %cst_47 : f32 to vector<512x16xf32>
    %41 = arith.mulf %40, %39 : vector<512x16xf32>
    %cst_48 = arith.constant -1.45315206 : f32
    %42 = vector.broadcast %cst_48 : f32 to vector<512x16xf32>
    %43 = arith.addf %41, %42 : vector<512x16xf32>
    %44 = arith.mulf %43, %39 : vector<512x16xf32>
    %cst_49 = arith.constant 1.42141378 : f32
    %45 = vector.broadcast %cst_49 : f32 to vector<512x16xf32>
    %46 = arith.addf %44, %45 : vector<512x16xf32>
    %47 = arith.mulf %46, %39 : vector<512x16xf32>
    %cst_50 = arith.constant -0.284496725 : f32
    %48 = vector.broadcast %cst_50 : f32 to vector<512x16xf32>
    %49 = arith.addf %47, %48 : vector<512x16xf32>
    %50 = arith.mulf %49, %39 : vector<512x16xf32>
    %cst_51 = arith.constant 0.254829586 : f32
    %51 = vector.broadcast %cst_51 : f32 to vector<512x16xf32>
    %52 = arith.addf %50, %51 : vector<512x16xf32>
    %53 = arith.mulf %52, %39 : vector<512x16xf32>
    %cst_52 = arith.constant 0.000000e+00 : f32
    %54 = vector.broadcast %cst_52 : f32 to vector<512x16xf32>
    %55 = arith.subf %54, %34 : vector<512x16xf32>
    %56 = arith.mulf %55, %34 : vector<512x16xf32>
    %57 = math.exp %56 : vector<512x16xf32>
    %58 = arith.mulf %53, %57 : vector<512x16xf32>
    %cst_53 = arith.constant 1.000000e+00 : f32
    %59 = vector.broadcast %cst_53 : f32 to vector<512x16xf32>
    %60 = arith.subf %59, %58 : vector<512x16xf32>
    %cst_54 = arith.constant 0.000000e+00 : f32
    %61 = vector.broadcast %cst_54 : f32 to vector<512x16xf32>
    %62 = arith.cmpf oge, %33, %61 : vector<512x16xf32>
    %cst_55 = arith.constant 0.000000e+00 : f32
    %63 = vector.broadcast %cst_55 : f32 to vector<512x16xf32>
    %64 = arith.subf %63, %60 : vector<512x16xf32>
    %65 = arith.select %62, %60, %64 : vector<512x16xi1>, vector<512x16xf32>
    %cst_56 = arith.constant 1.000000e+00 : f32
    %66 = vector.broadcast %cst_56 : f32 to vector<512x16xf32>
    %67 = arith.addf %66, %65 : vector<512x16xf32>
    %68 = arith.mulf %31, %67 : vector<512x16xf32>
    %69 = arith.truncf %68 : vector<512x16xf32> to vector<512x16xbf16>
    %c0_57 = arith.constant 0 : index
    %c0_58 = arith.constant 0 : index
    %70 = vector.load %arg6[%c0_57, %c0_58] : memref<16x4xbf16, #tpu.memory_space<vmem>>, vector<16x4xbf16>
    %cst_59 = arith.constant dense<0.000000e+00> : vector<512x4xf32>
    %71 = tpu.matmul %69, %70, %cst_59 {dimension_numbers = #tpu.dot_dimension_numbers<[1], [0], [0], [1], [0, 0, 1, 1], [], []>} : vector<512x16xbf16>, vector<16x4xbf16>, vector<512x4xf32> -> vector<512x4xf32>
    %c0_60 = arith.constant 0 : index
    %c0_61 = arith.constant 0 : index
    %72 = vector.load %arg7[%c0_60, %c0_61] : memref<1x4xf32, #tpu.memory_space<vmem>>, vector<1x4xf32>
    %73 = vector.broadcast %72 : vector<1x4xf32> to vector<512x4xf32>
    %74 = arith.addf %71, %73 : vector<512x4xf32>
    %75 = vector.shape_cast %74 : vector<512x4xf32> to vector<2x16x16x4xf32>
    %c0_62 = arith.constant 0 : index
    %c0_63 = arith.constant 0 : index
    %c0_64 = arith.constant 0 : index
    %c0_65 = arith.constant 0 : index
    %76 = vector.load %arg8[%c0_62, %c0_63, %c0_64, %c0_65] : memref<2x16x16x4xf32, #tpu.memory_space<vmem>>, vector<2x16x16x4xf32>
    tpu.vector_store %arg8[%c0_62, %c0_63, %c0_64, %c0_65], %75 {strides = array<i32>} : memref<2x16x16x4xf32, #tpu.memory_space<vmem>>, vector<2x16x16x4xf32>,
    return
  }
  func.func @transform_0(%arg0: i32) -> (i32, i32, i32, i32) {
    %c0_i32 = arith.constant 0 : i32
    %c0_i32_0 = arith.constant 0 : i32
    %c0_i32_1 = arith.constant 0 : i32
    %c0_i32_2 = arith.constant 0 : i32
    return %arg0, %c0_i32, %c0_i32_0, %c0_i32_1 : i32, i32, i32, i32
  }
  func.func @transform_1(%arg0: i32) -> (i32, i32) {
    %c0_i32 = arith.constant 0 : i32
    %c0_i32_0 = arith.constant 0 : i32
    %c0_i32_1 = arith.constant 0 : i32
    return %c0_i32, %c0_i32_0 : i32, i32
  }
  func.func @transform_2(%arg0: i32) -> (i32, i32) {
    %c0_i32 = arith.constant 0 : i32
    %c0_i32_0 = arith.constant 0 : i32
    %c0_i32_1 = arith.constant 0 : i32
    return %c0_i32, %c0_i32_0 : i32, i32
  }
  func.func @transform_3(%arg0: i32) -> (i32, i32) {
    %c0_i32 = arith.constant 0 : i32
    %c0_i32_0 = arith.constant 0 : i32
    %c0_i32_1 = arith.constant 0 : i32
    return %c0_i32, %c0_i32_0 : i32, i32
  }
  func.func @transform_4(%arg0: i32) -> (i32, i32) {
    %c0_i32 = arith.constant 0 : i32
    %c0_i32_0 = arith.constant 0 : i32
    %c0_i32_1 = arith.constant 0 : i32
    return %c0_i32, %c0_i32_0 : i32, i32
  }
  func.func @transform_5(%arg0: i32) -> (i32, i32) {
    %c0_i32 = arith.constant 0 : i32
    %c0_i32_0 = arith.constant 0 : i32
    %c0_i32_1 = arith.constant 0 : i32
    return %c0_i32, %c0_i32_0 : i32, i32
  }
  func.func @transform_6(%arg0: i32) -> (i32, i32) {
    %c0_i32 = arith.constant 0 : i32
    %c0_i32_0 = arith.constant 0 : i32
    %c0_i32_1 = arith.constant 0 : i32
    return %c0_i32, %c0_i32_0 : i32, i32
  }
  func.func @transform_7(%arg0: i32) -> (i32, i32, i32, i32) {
    %c0_i32 = arith.constant 0 : i32
    %c0_i32_0 = arith.constant 0 : i32
    %c0_i32_1 = arith.constant 0 : i32
    %c0_i32_2 = arith.constant 0 : i32
    return %arg0, %c0_i32, %c0_i32_0, %c0_i32_1 : i32, i32, i32, i32
  }
}

</mosaic_0001>

<llo_original>
// kernel: tpu_custom_call.1
$region0: #{tpu_custom_call.1}
  #allocation0 [shape = 'u32[]', space=smem, size = 0x4, offset = 0x4, fixed_abs, tag = 'smem constant byte address 0x4 - core index']
  #allocation1 [shape = 'u32[144,128]{1,0:T(1,128)}', space=vmem, size = 0x12000, scoped, tag = 'internal scratch']
  #allocation2 [shape = 'f32[2,18,18,16]{3,2,1,0:T(8,128)}', space=vmem, size = 0x6c000, scoped, tag = 'scratch operand']
  %s0 = inlined_call_operand.vmem [shape: bf16[4,16,16,4], index: 0, kind: input, shape index: {}]
  %s1 = inlined_call_operand.vmem [shape: bf16[4,16], index: 1, kind: input, shape index: {}]
  %s2 = inlined_call_operand.vmem [shape: f32[1,16], index: 2, kind: input, shape index: {}]
  %s3 = inlined_call_operand.vmem [shape: bf16[144,16], index: 3, kind: input, shape index: {}]
  %s4 = inlined_call_operand.vmem [shape: f32[1,16], index: 4, kind: input, shape index: {}]
  %s5 = inlined_call_operand.vmem [shape: bf16[16,4], index: 5, kind: input, shape index: {}]
  %s6 = inlined_call_operand.vmem [shape: f32[1,4], index: 6, kind: input, shape index: {}]
  %s7 = inlined_call_operand.vmem [shape: f32[4,16,16,4], index: 7, kind: output, shape index: {}]
  %s8 = sld [smem:[#allocation0]]
  $region61: #{tpu_custom_call.1} parent=0
    _
  %s10 = ssub.s32 1, %s8
  %s11 = scalar_select 0, %s10, %s8
  loop: start=0, step=1, limit=4
  $region2: #{tpu_custom_call.1} parent=0 // loop_pre_header
    _
  $region3: #{tpu_custom_call.1} parent=0 // loop_header
    %s13 = sphi 0, %s17
    %p14 = scmp.ge.s32.totalorder %s13, 4
    %s23 = sphi 0, %s25
    %s26 = sphi 0, %s23
    %s27 = sphi 0, %s26
    %s43 = sphi 0, %s27
    %s47 = sphi 0, %s47
    %s49 = sphi 0, %s47
    %s50 = sphi 0, %s49
    %s64 = sphi 0, %s50
    %s68 = sphi 0, %s68
    %s70 = sphi 0, %s68
    %s71 = sphi 0, %s70
    %s85 = sphi 0, %s71
    %s89 = sphi 0, %s89
    %s91 = sphi 0, %s89
    %s92 = sphi 0, %s91
    %s106 = sphi 0, %s92
    %s110 = sphi 0, %s110
    %s112 = sphi 0, %s110
    %s113 = sphi 0, %s112
    %s127 = sphi 0, %s113
    %s131 = sphi 0, %s131
    %s133 = sphi 0, %s131
    %s134 = sphi 0, %s133
    %s148 = sphi 0, %s134
    %s152 = sphi 0, %s152
    %s154 = sphi 0, %s152
    %s155 = sphi 0, %s154
    %s169 = sphi 0, %s155
    %s175 = sphi 0, %s177
    %s178 = sphi 0, %s175
    %s179 = sphi 0, %s178
    %s195 = sphi 0, %s179
  $region4: #{tpu_custom_call.1} parent=0 // loop_header_branch
    %16 = sbr.rel (%p14) target = $region8
  $region5: #{tpu_custom_call.1} parent=0 // loop_body
    %s18 = ssub.s32 %s13, 1
    %s19 = ssub.s32 %s13, 2
    %s20 = sadd.s32 %s13, 1
    %s21 = ssub.s32 %s13, %s20
    %p22 = scmp.eq.s32.totalorder %s21, 0
    %s24 = sadd.s32 %s23, 1
    %s25 = scalar_select %p22, %s23, %s24
    %p28 = pneg %p22
    %p29 = scmp.eq.s32.totalorder %s13, 1
    %p30 = por %p28, %p29
    %p31 = scmp.ne.s32.totalorder %s23, %s26
    %p32 = scmp.eq.s32.totalorder %s13, 0
    %p33 = por %p31, %p32
    %p34 = scmp.ne.s32.totalorder %s23, %s26
    %p35 = scmp.eq.s32.totalorder %s18, 1
    %p36 = por %p34, %p35
    %p37 = scmp.ne.s32.totalorder %s26, %s27
    %p38 = scmp.eq.s32.totalorder %s18, 0
    %p39 = por %p37, %p38
    %p40 = scmp.ne.s32.totalorder %s26, %s27
    %p41 = scmp.eq.s32.totalorder %s19, 1
    %p42 = por %p40, %p41
    %p44 = scmp.ne.s32.totalorder %s27, %s43
    %p45 = scmp.eq.s32.totalorder %s19, 0
    %p46 = por %p44, %p45
    %s48 = sadd.s32 %s47, 1
    %p51 = scmp.eq.s32.totalorder %s13, 1
    %p52 = scmp.ne.s32.totalorder %s47, %s49
    %p53 = scmp.eq.s32.totalorder %s13, 0
    %p54 = por %p52, %p53
    %p55 = scmp.ne.s32.totalorder %s47, %s49
    %p56 = scmp.eq.s32.totalorder %s18, 1
    %p57 = por %p55, %p56
    %p58 = scmp.ne.s32.totalorder %s49, %s50
    %p59 = scmp.eq.s32.totalorder %s18, 0
    %p60 = por %p58, %p59
    %p61 = scmp.ne.s32.totalorder %s49, %s50
    %p62 = scmp.eq.s32.totalorder %s19, 1
    %p63 = por %p61, %p62
    %p65 = scmp.ne.s32.totalorder %s50, %s64
    %p66 = scmp.eq.s32.totalorder %s19, 0
    %p67 = por %p65, %p66
    %s69 = sadd.s32 %s68, 1
    %p72 = scmp.eq.s32.totalorder %s13, 1
    %p73 = scmp.ne.s32.totalorder %s68, %s70
    %p74 = scmp.eq.s32.totalorder %s13, 0
    %p75 = por %p73, %p74
    %p76 = scmp.ne.s32.totalorder %s68, %s70
    %p77 = scmp.eq.s32.totalorder %s18, 1
    %p78 = por %p76, %p77
    %p79 = scmp.ne.s32.totalorder %s70, %s71
    %p80 = scmp.eq.s32.totalorder %s18, 0
    %p81 = por %p79, %p80
    %p82 = scmp.ne.s32.totalorder %s70, %s71
    %p83 = scmp.eq.s32.totalorder %s19, 1
    %p84 = por %p82, %p83
    %p86 = scmp.ne.s32.totalorder %s71, %s85
    %p87 = scmp.eq.s32.totalorder %s19, 0
    %p88 = por %p86, %p87
    %s90 = sadd.s32 %s89, 1
    %p93 = scmp.eq.s32.totalorder %s13, 1
    %p94 = scmp.ne.s32.totalorder %s89, %s91
    %p95 = scmp.eq.s32.totalorder %s13, 0
    %p96 = por %p94, %p95
    %p97 = scmp.ne.s32.totalorder %s89, %s91
    %p98 = scmp.eq.s32.totalorder %s18, 1
    %p99 = por %p97, %p98
    %p100 = scmp.ne.s32.totalorder %s91, %s92
    %p101 = scmp.eq.s32.totalorder %s18, 0
    %p102 = por %p100, %p101
    %p103 = scmp.ne.s32.totalorder %s91, %s92
    %p104 = scmp.eq.s32.totalorder %s19, 1
    %p105 = por %p103, %p104
    %p107 = scmp.ne.s32.totalorder %s92, %s106
    %p108 = scmp.eq.s32.totalorder %s19, 0
    %p109 = por %p107, %p108
    %s111 = sadd.s32 %s110, 1
    %p114 = scmp.eq.s32.totalorder %s13, 1
    %p115 = scmp.ne.s32.totalorder %s110, %s112
    %p116 = scmp.eq.s32.totalorder %s13, 0
    %p117 = por %p115, %p116
    %p118 = scmp.ne.s32.totalorder %s110, %s112
    %p119 = scmp.eq.s32.totalorder %s18, 1
    %p120 = por %p118, %p119
    %p121 = scmp.ne.s32.totalorder %s112, %s113
    %p122 = scmp.eq.s32.totalorder %s18, 0
    %p123 = por %p121, %p122
    %p124 = scmp.ne.s32.totalorder %s112, %s113
    %p125 = scmp.eq.s32.totalorder %s19, 1
    %p126 = por %p124, %p125
    %p128 = scmp.ne.s32.totalorder %s113, %s127
    %p129 = scmp.eq.s32.totalorder %s19, 0
    %p130 = por %p128, %p129
    %s132 = sadd.s32 %s131, 1
    %p135 = scmp.eq.s32.totalorder %s13, 1
    %p136 = scmp.ne.s32.totalorder %s131, %s133
    %p137 = scmp.eq.s32.totalorder %s13, 0
    %p138 = por %p136, %p137
    %p139 = scmp.ne.s32.totalorder %s131, %s133
    %p140 = scmp.eq.s32.totalorder %s18, 1
    %p141 = por %p139, %p140
    %p142 = scmp.ne.s32.totalorder %s133, %s134
    %p143 = scmp.eq.s32.totalorder %s18, 0
    %p144 = por %p142, %p143
    %p145 = scmp.ne.s32.totalorder %s133, %s134
    %p146 = scmp.eq.s32.totalorder %s19, 1
    %p147 = por %p145, %p146
    %p149 = scmp.ne.s32.totalorder %s134, %s148
    %p150 = scmp.eq.s32.totalorder %s19, 0
    %p151 = por %p149, %p150
    %s153 = sadd.s32 %s152, 1
    %p156 = scmp.eq.s32.totalorder %s13, 1
    %p157 = scmp.ne.s32.totalorder %s152, %s154
    %p158 = scmp.eq.s32.totalorder %s13, 0
    %p159 = por %p157, %p158
    %p160 = scmp.ne.s32.totalorder %s152, %s154
    %p161 = scmp.eq.s32.totalorder %s18, 1
    %p162 = por %p160, %p161
    %p163 = scmp.ne.s32.totalorder %s154, %s155
    %p164 = scmp.eq.s32.totalorder %s18, 0
    %p165 = por %p163, %p164
    %p166 = scmp.ne.s32.totalorder %s154, %s155
    %p167 = scmp.eq.s32.totalorder %s19, 1
    %p168 = por %p166, %p167
    %p170 = scmp.ne.s32.totalorder %s155, %s169
    %p171 = scmp.eq.s32.totalorder %s19, 0
    %p172 = por %p170, %p171
    %s173 = ssub.s32 %s13, %s20
    %p174 = scmp.eq.s32.totalorder %s173, 0
    %s176 = sadd.s32 %s175, 1
    %s177 = scalar_select %p174, %s175, %s176
    %p180 = pneg %p174
    %p181 = scmp.eq.s32.totalorder %s13, 1
    %p182 = por %p180, %p181
    %p183 = scmp.ne.s32.totalorder %s175, %s178
    %p184 = scmp.eq.s32.totalorder %s13, 0
    %p185 = por %p183, %p184
    %p186 = scmp.ne.s32.totalorder %s175, %s178
    %p187 = scmp.eq.s32.totalorder %s18, 1
    %p188 = por %p186, %p187
    %p189 = scmp.ne.s32.totalorder %s178, %s179
    %p190 = scmp.eq.s32.totalorder %s18, 0
    %p191 = por %p189, %p190
    %p192 = scmp.ne.s32.totalorder %s178, %s179
    %p193 = scmp.eq.s32.totalorder %s19, 1
    %p194 = por %p192, %p193
    %p196 = scmp.ne.s32.totalorder %s179, %s195
    %p197 = scmp.eq.s32.totalorder %s19, 0
    %p198 = por %p196, %p197
    %p199 = scmp.le.s32.totalorder 1, %s13
    %p200 = scmp.lt.s32.totalorder %s13, 3
    %p201 = pnand %p199, %p200
    %p202 = pneg %p201
    // Predicated region
    $region9: #{tpu_custom_call.1} parent=5 // pred_check
      _
    $region10: #{tpu_custom_call.1} parent=5 // pred_check_branch
      %204 = sbr.rel (%p201) target = $region12
    $region11: #{tpu_custom_call.1} parent=5 // pred_region
      %s205 = ssub.s32 %s13, 1
      // Predicated region
      $region13: #{tpu_custom_call.1} parent=11 // pred_check
        %p206 = pneg %p60
      $region14: #{tpu_custom_call.1} parent=11 // pred_check_branch
        %208 = sbr.rel (%p206) target = $region16
      $region15: #{tpu_custom_call.1} parent=11 // pred_region
        _
      $region16: #{tpu_custom_call.1} parent=11 // pred_fallthru
        _
      // Predicated region
      $region17: #{tpu_custom_call.1} parent=11 // pred_check
        %p209 = pneg %p81
      $region18: #{tpu_custom_call.1} parent=11 // pred_check_branch
        %211 = sbr.rel (%p209) target = $region20
      $region19: #{tpu_custom_call.1} parent=11 // pred_region
        _
      $region20: #{tpu_custom_call.1} parent=11 // pred_fallthru
        _
      // Predicated region
      $region21: #{tpu_custom_call.1} parent=11 // pred_check
        %p212 = pneg %p102
      $region22: #{tpu_custom_call.1} parent=11 // pred_check_branch
        %214 = sbr.rel (%p212) target = $region24
      $region23: #{tpu_custom_call.1} parent=11 // pred_region
        _
      $region24: #{tpu_custom_call.1} parent=11 // pred_fallthru
        _
      // Predicated region
      $region25: #{tpu_custom_call.1} parent=11 // pred_check
        %p215 = pneg %p123
      $region26: #{tpu_custom_call.1} parent=11 // pred_check_branch
        %217 = sbr.rel (%p215) target = $region28
      $region27: #{tpu_custom_call.1} parent=11 // pred_region
        _
      $region28: #{tpu_custom_call.1} parent=11 // pred_fallthru
        _
      // Predicated region
      $region29: #{tpu_custom_call.1} parent=11 // pred_check
        %p218 = pneg %p144
      $region30: #{tpu_custom_call.1} parent=11 // pred_check_branch
        %220 = sbr.rel (%p218) target = $region32
      $region31: #{tpu_custom_call.1} parent=11 // pred_region
        _
      $region32: #{tpu_custom_call.1} parent=11 // pred_fallthru
        _
      // Predicated region
      $region33: #{tpu_custom_call.1} parent=11 // pred_check
        %p221 = pneg %p165
      $region34: #{tpu_custom_call.1} parent=11 // pred_check_branch
        %223 = sbr.rel (%p221) target = $region36
      $region35: #{tpu_custom_call.1} parent=11 // pred_region
        _
      $region36: #{tpu_custom_call.1} parent=11 // pred_fallthru
        _
    $region12: #{tpu_custom_call.1} parent=5 // pred_fallthru
      _
    %p224 = scmp.lt.s32.totalorder %s13, 2
    // Predicated region
    $region37: #{tpu_custom_call.1} parent=5 // pred_check
      %p225 = pneg %p224
    $region38: #{tpu_custom_call.1} parent=5 // pred_check_branch
      %227 = sbr.rel (%p225) target = $region40
    $region39: #{tpu_custom_call.1} parent=5 // pred_region
      // Predicated region
      $region41: #{tpu_custom_call.1} parent=39 // pred_check
        %p228 = pneg %p33
      $region42: #{tpu_custom_call.1} parent=39 // pred_check_branch
        %230 = sbr.rel (%p228) target = $region44
      $region43: #{tpu_custom_call.1} parent=39 // pred_region
        %s231 = smul.u32 2, %s13
        %p232 = scmp.lt.s32.totalorder %s231, 3
        %s233 = scalar_select %p232, %s231, 3
        %s234 = smul.addr %s233, 32
        %s235 = smul.addr %s234, 4
        %s236 = scalar_lea.vmem %s0, %s235
        %s237 = smul.u32 2, %s13
      $region44: #{tpu_custom_call.1} parent=39 // pred_fallthru
        _
    $region40: #{tpu_custom_call.1} parent=5 // pred_fallthru
      _
    %p238 = scmp.le.s32.totalorder 1, %s13
    %p239 = scmp.lt.s32.totalorder %s13, 3
    %p240 = pnand %p238, %p239
    %p241 = pneg %p240
    // Predicated region
    $region45: #{tpu_custom_call.1} parent=5 // pred_check
      _
    $region46: #{tpu_custom_call.1} parent=5 // pred_check_branch
      %243 = sbr.rel (%p240) target = $region48
    $region47: #{tpu_custom_call.1} parent=5 // pred_region
      %s244 = ssub.s32 %s13, 1
      %s245 = smul.u32 2, %s18
      %p246 = scmp.lt.s32.totalorder %s245, 3
      %s247 = scalar_select %p246, %s245, 3
      %s248 = smul.addr %s247, 32
      %s249 = smul.addr %s248, 4
      %s250 = scalar_lea.vmem %s0, %s249
      %p251 = pneg %p39
      %p252 = pneg %p36
      %p253 = pneg %p60
      %p254 = pneg %p57
      %p255 = pneg %p81
      %p256 = pneg %p78
      %p257 = pneg %p102
      %p258 = pneg %p99
      %p259 = pneg %p123
      %p260 = pneg %p120
      %p261 = pneg %p144
      %p262 = pneg %p141
      %p263 = pneg %p165
      %p264 = pneg %p162
      %p265 = pneg %p191
      %p266 = pneg %p188
      %s267 = smul.u32 2, %s18
      %p268 = scmp.lt.s32.totalorder %s267, 3
      %s269 = scalar_select %p268, %s267, 3
      %s270 = smul.addr %s269, 32
      %s271 = smul.addr %s270, 8
      %s272 = scalar_lea.vmem %s7, %s271
      %s273 = smul.u32 2, %s18
      %p274 = scmp.lt.s32.totalorder %s273, 3
      %s275 = scalar_select %p274, %s273, 3
      %s276 = smul.addr %s275, 32
      %s277 = smul.addr %s276, 4
      %s278 = scalar_lea.vmem %s0, %s277
      %s279 = smul.u32 2, %s18
      %s280 = smul.u32 2, %s18
      %p281 = scmp.lt.s32.totalorder %s280, 3
      %s282 = scalar_select %p281, %s280, 3
      %s283 = smul.addr %s282, 32
      %s284 = smul.addr %s283, 8
      %s285 = scalar_lea.vmem %s7, %s284
      %s286 = smul.u32 2, %s18
      %v288 = vld [vmem:[%s278] sm:$0xf]
      %v289 = vld [vmem:[%s278 + $0x4] sm:$0xf]
      %v290 = vld [vmem:[%s278 + $0x8] sm:$0xf]
      %v291 = vld [vmem:[%s278 + $0xc] sm:$0xf]
      %v292 = vld [vmem:[%s278 + $0x10] sm:$0xf]
      %v293 = vld [vmem:[%s278 + $0x14] sm:$0xf]
      %v294 = vld [vmem:[%s278 + $0x18] sm:$0xf]
      %v295 = vld [vmem:[%s278 + $0x1c] sm:$0xf]
      %v296 = vld [vmem:[%s278 + $0x20] sm:$0xf]
      %v297 = vld [vmem:[%s278 + $0x24] sm:$0xf]
      %v298 = vld [vmem:[%s278 + $0x28] sm:$0xf]
      %v299 = vld [vmem:[%s278 + $0x2c] sm:$0xf]
      %v300 = vld [vmem:[%s278 + $0x30] sm:$0xf]
      %v301 = vld [vmem:[%s278 + $0x34] sm:$0xf]
      %v302 = vld [vmem:[%s278 + $0x38] sm:$0xf]
      %v303 = vld [vmem:[%s278 + $0x3c] sm:$0xf]
      %v304 = vld [vmem:[%s278 + $0x40] sm:$0xf]
      %v305 = vld [vmem:[%s278 + $0x44] sm:$0xf]
      %v306 = vld [vmem:[%s278 + $0x48] sm:$0xf]
      %v307 = vld [vmem:[%s278 + $0x4c] sm:$0xf]
      %v308 = vld [vmem:[%s278 + $0x50] sm:$0xf]
      %v309 = vld [vmem:[%s278 + $0x54] sm:$0xf]
      %v310 = vld [vmem:[%s278 + $0x58] sm:$0xf]
      %v311 = vld [vmem:[%s278 + $0x5c] sm:$0xf]
      %v312 = vld [vmem:[%s278 + $0x60] sm:$0xf]
      %v313 = vld [vmem:[%s278 + $0x64] sm:$0xf]
      %v314 = vld [vmem:[%s278 + $0x68] sm:$0xf]
      %v315 = vld [vmem:[%s278 + $0x6c] sm:$0xf]
      %v316 = vld [vmem:[%s278 + $0x70] sm:$0xf]
      %v317 = vld [vmem:[%s278 + $0x74] sm:$0xf]
      %v318 = vld [vmem:[%s278 + $0x78] sm:$0xf]
      %v319 = vld [vmem:[%s278 + $0x7c] sm:$0xf]
      %v320 = vld [vmem:[%s278 + $0x80] sm:$0xf]
      %v321 = vld [vmem:[%s278 + $0x84] sm:$0xf]
      %v322 = vld [vmem:[%s278 + $0x88] sm:$0xf]
      %v323 = vld [vmem:[%s278 + $0x8c] sm:$0xf]
      %v324 = vld [vmem:[%s278 + $0x90] sm:$0xf]
      %v325 = vld [vmem:[%s278 + $0x94] sm:$0xf]
      %v326 = vld [vmem:[%s278 + $0x98] sm:$0xf]
      %v327 = vld [vmem:[%s278 + $0x9c] sm:$0xf]
      %v328 = vld [vmem:[%s278 + $0xa0] sm:$0xf]
      %v329 = vld [vmem:[%s278 + $0xa4] sm:$0xf]
      %v330 = vld [vmem:[%s278 + $0xa8] sm:$0xf]
      %v331 = vld [vmem:[%s278 + $0xac] sm:$0xf]
      %v332 = vld [vmem:[%s278 + $0xb0] sm:$0xf]
      %v333 = vld [vmem:[%s278 + $0xb4] sm:$0xf]
      %v334 = vld [vmem:[%s278 + $0xb8] sm:$0xf]
      %v335 = vld [vmem:[%s278 + $0xbc] sm:$0xf]
      %v336 = vld [vmem:[%s278 + $0xc0] sm:$0xf]
      %v337 = vld [vmem:[%s278 + $0xc4] sm:$0xf]
      %v338 = vld [vmem:[%s278 + $0xc8] sm:$0xf]
      %v339 = vld [vmem:[%s278 + $0xcc] sm:$0xf]
      %v340 = vld [vmem:[%s278 + $0xd0] sm:$0xf]
      %v341 = vld [vmem:[%s278 + $0xd4] sm:$0xf]
      %v342 = vld [vmem:[%s278 + $0xd8] sm:$0xf]
      %v343 = vld [vmem:[%s278 + $0xdc] sm:$0xf]
      %v344 = vld [vmem:[%s278 + $0xe0] sm:$0xf]
      %v345 = vld [vmem:[%s278 + $0xe4] sm:$0xf]
      %v346 = vld [vmem:[%s278 + $0xe8] sm:$0xf]
      %v347 = vld [vmem:[%s278 + $0xec] sm:$0xf]
      %v348 = vld [vmem:[%s278 + $0xf0] sm:$0xf]
      %v349 = vld [vmem:[%s278 + $0xf4] sm:$0xf]
      %v350 = vld [vmem:[%s278 + $0xf8] sm:$0xf]
      %v351 = vld [vmem:[%s278 + $0xfc] sm:$0xf]
      %v352 = vld [vmem:[%s1] sm:$0x3]
      %v353 = vld [vmem:[%s2] sm:$0x1]
      %v355 = vlaneseq
      %v356 = vshrl.u32 %v355, 7
      %v357 = vsub.s32 0, %v356
      %v358 = vrot.slane %v353, %v357
      %v424 = vunpack.c.l.b16 %v288
      %v425 = vunpack.c.l.b16 %v289
      %v426 = vunpack.c.l.b16 %v290
      %v427 = vunpack.c.l.b16 %v291
      %v428 = vunpack.c.l.b16 %v292
      %v429 = vunpack.c.l.b16 %v293
      %v430 = vunpack.c.l.b16 %v294
      %v431 = vunpack.c.l.b16 %v295
      %v432 = vunpack.c.l.b16 %v296
      %v433 = vunpack.c.l.b16 %v297
      %v434 = vunpack.c.l.b16 %v298
      %v435 = vunpack.c.l.b16 %v299
      %v436 = vunpack.c.l.b16 %v300
      %v437 = vunpack.c.l.b16 %v301
      %v438 = vunpack.c.l.b16 %v302
      %v439 = vunpack.c.l.b16 %v303
      %v440 = vunpack.c.l.b16 %v304
      %v441 = vunpack.c.l.b16 %v305
      %v442 = vunpack.c.l.b16 %v306
      %v443 = vunpack.c.l.b16 %v307
      %v444 = vunpack.c.l.b16 %v308
      %v445 = vunpack.c.l.b16 %v309
      %v446 = vunpack.c.l.b16 %v310
      %v447 = vunpack.c.l.b16 %v311
      %v448 = vunpack.c.l.b16 %v312
      %v449 = vunpack.c.l.b16 %v313
      %v450 = vunpack.c.l.b16 %v314
      %v451 = vunpack.c.l.b16 %v315
      %v452 = vunpack.c.l.b16 %v316
      %v453 = vunpack.c.l.b16 %v317
      %v454 = vunpack.c.l.b16 %v318
      %v455 = vunpack.c.l.b16 %v319
      %v456 = vunpack.c.l.b16 %v320
      %v457 = vunpack.c.l.b16 %v321
      %v458 = vunpack.c.l.b16 %v322
      %v459 = vunpack.c.l.b16 %v323
      %v460 = vunpack.c.l.b16 %v324
      %v461 = vunpack.c.l.b16 %v325
      %v462 = vunpack.c.l.b16 %v326
      %v463 = vunpack.c.l.b16 %v327
      %v464 = vunpack.c.l.b16 %v328
      %v465 = vunpack.c.l.b16 %v329
      %v466 = vunpack.c.l.b16 %v330
      %v467 = vunpack.c.l.b16 %v331
      %v468 = vunpack.c.l.b16 %v332
      %v469 = vunpack.c.l.b16 %v333
      %v470 = vunpack.c.l.b16 %v334
      %v471 = vunpack.c.l.b16 %v335
      %v472 = vunpack.c.l.b16 %v336
      %v473 = vunpack.c.l.b16 %v337
      %v474 = vunpack.c.l.b16 %v338
      %v475 = vunpack.c.l.b16 %v339
      %v476 = vunpack.c.l.b16 %v340
      %v477 = vunpack.c.l.b16 %v341
      %v478 = vunpack.c.l.b16 %v342
      %v479 = vunpack.c.l.b16 %v343
      %v480 = vunpack.c.l.b16 %v344
      %v481 = vunpack.c.l.b16 %v345
      %v482 = vunpack.c.l.b16 %v346
      %v483 = vunpack.c.l.b16 %v347
      %v484 = vunpack.c.l.b16 %v348
      %v485 = vunpack.c.l.b16 %v349
      %v486 = vunpack.c.l.b16 %v350
      %v487 = vunpack.c.l.b16 %v351
      %v488 = vpack.c.b16 %v425, %v424
      %v489 = vpack.c.b16 %v427, %v426
      %v490 = vpack.c.b16 %v429, %v428
      %v491 = vpack.c.b16 %v431, %v430
      %v492 = vpack.c.b16 %v433, %v432
      %v493 = vpack.c.b16 %v435, %v434
      %v494 = vpack.c.b16 %v437, %v436
      %v495 = vpack.c.b16 %v439, %v438
      %v496 = vpack.c.b16 %v441, %v440
      %v497 = vpack.c.b16 %v443, %v442
      %v498 = vpack.c.b16 %v445, %v444
      %v499 = vpack.c.b16 %v447, %v446
      %v500 = vpack.c.b16 %v449, %v448
      %v501 = vpack.c.b16 %v451, %v450
      %v502 = vpack.c.b16 %v453, %v452
      %v503 = vpack.c.b16 %v455, %v454
      %v504 = vpack.c.b16 %v457, %v456
      %v505 = vpack.c.b16 %v459, %v458
      %v506 = vpack.c.b16 %v461, %v460
      %v507 = vpack.c.b16 %v463, %v462
      %v508 = vpack.c.b16 %v465, %v464
      %v509 = vpack.c.b16 %v467, %v466
      %v510 = vpack.c.b16 %v469, %v468
      %v511 = vpack.c.b16 %v471, %v470
      %v512 = vpack.c.b16 %v473, %v472
      %v513 = vpack.c.b16 %v475, %v474
      %v514 = vpack.c.b16 %v477, %v476
      %v515 = vpack.c.b16 %v479, %v478
      %v516 = vpack.c.b16 %v481, %v480
      %v517 = vpack.c.b16 %v483, %v482
      %v518 = vpack.c.b16 %v485, %v484
      %v519 = vpack.c.b16 %v487, %v486
      %vm520 = vcmask 31744
      %v522 = vsel %vm520, %v488, 0
      %v525 = vsel %vm520, %v489, 0
      %v528 = vsel %vm520, %v490, 0
      %v531 = vsel %vm520, %v491, 0
      %v534 = vsel %vm520, %v492, 0
      %v537 = vsel %vm520, %v493, 0
      %v540 = vsel %vm520, %v494, 0
      %v543 = vsel %vm520, %v495, 0
      %v546 = vsel %vm520, %v496, 0
      %v549 = vsel %vm520, %v497, 0
      %v552 = vsel %vm520, %v498, 0
      %v555 = vsel %vm520, %v499, 0
      %v558 = vsel %vm520, %v500, 0
      %v561 = vsel %vm520, %v501, 0
      %v564 = vsel %vm520, %v502, 0
      %v567 = vsel %vm520, %v503, 0
      %v570 = vsel %vm520, %v504, 0
      %v573 = vsel %vm520, %v505, 0
      %v576 = vsel %vm520, %v506, 0
      %v579 = vsel %vm520, %v507, 0
      %v582 = vsel %vm520, %v508, 0
      %v585 = vsel %vm520, %v509, 0
      %v588 = vsel %vm520, %v510, 0
      %v591 = vsel %vm520, %v511, 0
      %v594 = vsel %vm520, %v512, 0
      %v597 = vsel %vm520, %v513, 0
      %v600 = vsel %vm520, %v514, 0
      %v603 = vsel %vm520, %v515, 0
      %v606 = vsel %vm520, %v516, 0
      %v609 = vsel %vm520, %v517, 0
      %v612 = vsel %vm520, %v518, 0
      %v615 = vsel %vm520, %v519, 0
      %vm617 = vcmask 1041408
      %v619 = vsel %vm617, %v352, 0
      %621 = vmatprep.subr.bf16.mxu0 0
      %622 = vmatpush1.bf16.msra.mxu0 %v619
      %623 = vmatprep.subr.bf16.mxu0 0
      %624 = vmatpush1.bf16.msra.mxu0 0
      %625 = vmatprep.subr.bf16.mxu0 0
      %626 = vmatpush1.bf16.msra.mxu0 0
      %627 = vmatprep.subr.bf16.mxu0 0
      %628 = vmatpush1.bf16.msra.mxu0 0
      %629 = vmatprep.subr.bf16.mxu0 0
      %630 = vmatpush1.bf16.msra.mxu0 0
      %631 = vmatprep.subr.bf16.mxu0 0
      %632 = vmatpush1.bf16.msra.mxu0 0
      %633 = vmatprep.subr.bf16.mxu0 0
      %634 = vmatpush1.bf16.msra.mxu0 0
      %635 = vmatprep.subr.bf16.mxu0 0
      %636 = vmatpush1.bf16.msra.mxu0 0
      %637 = vmatprep.subr.bf16.mxu0 0
      %638 = vmatpush1.bf16.msra.mxu0 0
      %639 = vmatprep.subr.bf16.mxu0 0
      %640 = vmatpush1.bf16.msra.mxu0 0
      %641 = vmatprep.subr.bf16.mxu0 0
      %642 = vmatpush1.bf16.msra.mxu0 0
      %643 = vmatprep.subr.bf16.mxu0 0
      %644 = vmatpush1.bf16.msra.mxu0 0
      %645 = vmatprep.subr.bf16.mxu0 0
      %646 = vmatpush1.bf16.msra.mxu0 0
      %647 = vmatprep.subr.bf16.mxu0 0
      %648 = vmatpush1.bf16.msra.mxu0 0
      %649 = vmatprep.subr.bf16.mxu0 0
      %650 = vmatpush1.bf16.msra.mxu0 0
      %651 = vmatprep.subr.bf16.mxu0 0
      %652 = vmatpush1.bf16.msra.mxu0 0
      %653 = vmatprep.mubr.bf16.mxu0 0
      %654 = vmatmul.mubr.bf16.gmra.mrb[0].mxu0 %v522
      %v655 = vpop.f32.mrb[0].mxu0
      %v656 = vadd.f32 %v358, %v655
      %v657 = vpop.f32.mrb[0].mxu0
      %v658 = vpop.f32.mrb[0].mxu0
      %v659 = vadd.f32 %v358, %v658
      %v660 = vpop.f32.mrb[0].mxu0
      %661 = vmatprep.mubr.bf16.mxu0 0
      %662 = vmatmul.mubr.bf16.gmra.mrb[0].mxu0 %v525
      %v663 = vpop.f32.mrb[0].mxu0
      %v664 = vadd.f32 %v358, %v663
      %v665 = vpop.f32.mrb[0].mxu0
      %v666 = vpop.f32.mrb[0].mxu0
      %v667 = vadd.f32 %v358, %v666
      %v668 = vpop.f32.mrb[0].mxu0
      %669 = vmatprep.mubr.bf16.mxu0 0
      %670 = vmatmul.mubr.bf16.gmra.mrb[0].mxu0 %v528
      %v671 = vpop.f32.mrb[0].mxu0
      %v672 = vadd.f32 %v358, %v671
      %v673 = vpop.f32.mrb[0].mxu0
      %v674 = vpop.f32.mrb[0].mxu0
      %v675 = vadd.f32 %v358, %v674
      %v676 = vpop.f32.mrb[0].mxu0
      %677 = vmatprep.mubr.bf16.mxu0 0
      %678 = vmatmul.mubr.bf16.gmra.mrb[0].mxu0 %v531
      %v679 = vpop.f32.mrb[0].mxu0
      %v680 = vadd.f32 %v358, %v679
      %v681 = vpop.f32.mrb[0].mxu0
      %v682 = vpop.f32.mrb[0].mxu0
      %v683 = vadd.f32 %v358, %v682
      %v684 = vpop.f32.mrb[0].mxu0
      %685 = vmatprep.mubr.bf16.mxu0 0
      %686 = vmatmul.mubr.bf16.gmra.mrb[0].mxu0 %v534
      %v687 = vpop.f32.mrb[0].mxu0
      %v688 = vadd.f32 %v358, %v687
      %v689 = vpop.f32.mrb[0].mxu0
      %v690 = vpop.f32.mrb[0].mxu0
      %v691 = vadd.f32 %v358, %v690
      %v692 = vpop.f32.mrb[0].mxu0
      %693 = vmatprep.mubr.bf16.mxu0 0
      %694 = vmatmul.mubr.bf16.gmra.mrb[0].mxu0 %v537
      %v695 = vpop.f32.mrb[0].mxu0
      %v696 = vadd.f32 %v358, %v695
      %v697 = vpop.f32.mrb[0].mxu0
      %v698 = vpop.f32.mrb[0].mxu0
      %v699 = vadd.f32 %v358, %v698
      %v700 = vpop.f32.mrb[0].mxu0
      %701 = vmatprep.mubr.bf16.mxu0 0
      %702 = vmatmul.mubr.bf16.gmra.mrb[0].mxu0 %v540
      %v703 = vpop.f32.mrb[0].mxu0
      %v704 = vadd.f32 %v358, %v703
      %v705 = vpop.f32.mrb[0].mxu0
      %v706 = vpop.f32.mrb[0].mxu0
      %v707 = vadd.f32 %v358, %v706
      %v708 = vpop.f32.mrb[0].mxu0
      %709 = vmatprep.mubr.bf16.mxu0 0
      %710 = vmatmul.mubr.bf16.gmra.mrb[0].mxu0 %v543
      %v711 = vpop.f32.mrb[0].mxu0
      %v712 = vadd.f32 %v358, %v711
      %v713 = vpop.f32.mrb[0].mxu0
      %v714 = vpop.f32.mrb[0].mxu0
      %v715 = vadd.f32 %v358, %v714
      %v716 = vpop.f32.mrb[0].mxu0
      %717 = vmatprep.mubr.bf16.mxu0 0
      %718 = vmatmul.mubr.bf16.gmra.mrb[0].mxu0 %v546
      %v719 = vpop.f32.mrb[0].mxu0
      %v720 = vadd.f32 %v358, %v719
      %v721 = vpop.f32.mrb[0].mxu0
      %v722 = vpop.f32.mrb[0].mxu0
      %v723 = vadd.f32 %v358, %v722
      %v724 = vpop.f32.mrb[0].mxu0
      %725 = vmatprep.mubr.bf16.mxu0 0
      %726 = vmatmul.mubr.bf16.gmra.mrb[0].mxu0 %v549
      %v727 = vpop.f32.mrb[0].mxu0
      %v728 = vadd.f32 %v358, %v727
      %v729 = vpop.f32.mrb[0].mxu0
      %v730 = vpop.f32.mrb[0].mxu0
      %v731 = vadd.f32 %v358, %v730
      %v732 = vpop.f32.mrb[0].mxu0
      %733 = vmatprep.mubr.bf16.mxu0 0
      %734 = vmatmul.mubr.bf16.gmra.mrb[0].mxu0 %v552
      %v735 = vpop.f32.mrb[0].mxu0
      %v736 = vadd.f32 %v358, %v735
      %v737 = vpop.f32.mrb[0].mxu0
      %v738 = vpop.f32.mrb[0].mxu0
      %v739 = vadd.f32 %v358, %v738
      %v740 = vpop.f32.mrb[0].mxu0
      %741 = vmatprep.mubr.bf16.mxu0 0
      %742 = vmatmul.mubr.bf16.gmra.mrb[0].mxu0 %v555
      %v743 = vpop.f32.mrb[0].mxu0
      %v744 = vadd.f32 %v358, %v743
      %v745 = vpop.f32.mrb[0].mxu0
      %v746 = vpop.f32.mrb[0].mxu0
      %v747 = vadd.f32 %v358, %v746
      %v748 = vpop.f32.mrb[0].mxu0
      %749 = vmatprep.mubr.bf16.mxu0 0
      %750 = vmatmul.mubr.bf16.gmra.mrb[0].mxu0 %v558
      %v751 = vpop.f32.mrb[0].mxu0
      %v752 = vadd.f32 %v358, %v751
      %v753 = vpop.f32.mrb[0].mxu0
      %v754 = vpop.f32.mrb[0].mxu0
      %v755 = vadd.f32 %v358, %v754
      %v756 = vpop.f32.mrb[0].mxu0
      %757 = vmatprep.mubr.bf16.mxu0 0
      %758 = vmatmul.mubr.bf16.gmra.mrb[0].mxu0 %v561
      %v759 = vpop.f32.mrb[0].mxu0
      %v760 = vadd.f32 %v358, %v759
      %v761 = vpop.f32.mrb[0].mxu0
      %v762 = vpop.f32.mrb[0].mxu0
      %v763 = vadd.f32 %v358, %v762
      %v764 = vpop.f32.mrb[0].mxu0
      %765 = vmatprep.mubr.bf16.mxu0 0
      %766 = vmatmul.mubr.bf16.gmra.mrb[0].mxu0 %v564
      %v767 = vpop.f32.mrb[0].mxu0
      %v768 = vadd.f32 %v358, %v767
      %v769 = vpop.f32.mrb[0].mxu0
      %v770 = vpop.f32.mrb[0].mxu0
      %v771 = vadd.f32 %v358, %v770
      %v772 = vpop.f32.mrb[0].mxu0
      %773 = vmatprep.mubr.bf16.mxu0 0
      %774 = vmatmul.mubr.bf16.gmra.mrb[0].mxu0 %v567
      %v775 = vpop.f32.mrb[0].mxu0
      %v776 = vadd.f32 %v358, %v775
      %v777 = vpop.f32.mrb[0].mxu0
      %v778 = vpop.f32.mrb[0].mxu0
      %v779 = vadd.f32 %v358, %v778
      %v780 = vpop.f32.mrb[0].mxu0
      %781 = vmatprep.mubr.bf16.mxu0 0
      %782 = vmatmul.mubr.bf16.gmra.mrb[0].mxu0 %v570
      %v783 = vpop.f32.mrb[0].mxu0
      %v784 = vadd.f32 %v358, %v783
      %v785 = vpop.f32.mrb[0].mxu0
      %v786 = vpop.f32.mrb[0].mxu0
      %v787 = vadd.f32 %v358, %v786
      %v788 = vpop.f32.mrb[0].mxu0
      %789 = vmatprep.mubr.bf16.mxu0 0
      %790 = vmatmul.mubr.bf16.gmra.mrb[0].mxu0 %v573
      %v791 = vpop.f32.mrb[0].mxu0
      %v792 = vadd.f32 %v358, %v791
      %v793 = vpop.f32.mrb[0].mxu0
      %v794 = vpop.f32.mrb[0].mxu0
      %v795 = vadd.f32 %v358, %v794
      %v796 = vpop.f32.mrb[0].mxu0
      %797 = vmatprep.mubr.bf16.mxu0 0
      %798 = vmatmul.mubr.bf16.gmra.mrb[0].mxu0 %v576
      %v799 = vpop.f32.mrb[0].mxu0
      %v800 = vadd.f32 %v358, %v799
      %v801 = vpop.f32.mrb[0].mxu0
      %v802 = vpop.f32.mrb[0].mxu0
      %v803 = vadd.f32 %v358, %v802
      %v804 = vpop.f32.mrb[0].mxu0
      %805 = vmatprep.mubr.bf16.mxu0 0
      %806 = vmatmul.mubr.bf16.gmra.mrb[0].mxu0 %v579
      %v807 = vpop.f32.mrb[0].mxu0
      %v808 = vadd.f32 %v358, %v807
      %v809 = vpop.f32.mrb[0].mxu0
      %v810 = vpop.f32.mrb[0].mxu0
      %v811 = vadd.f32 %v358, %v810
      %v812 = vpop.f32.mrb[0].mxu0
      %813 = vmatprep.mubr.bf16.mxu0 0
      %814 = vmatmul.mubr.bf16.gmra.mrb[0].mxu0 %v582
      %v815 = vpop.f32.mrb[0].mxu0
      %v816 = vadd.f32 %v358, %v815
      %v817 = vpop.f32.mrb[0].mxu0
      %v818 = vpop.f32.mrb[0].mxu0
      %v819 = vadd.f32 %v358, %v818
      %v820 = vpop.f32.mrb[0].mxu0
      %821 = vmatprep.mubr.bf16.mxu0 0
      %822 = vmatmul.mubr.bf16.gmra.mrb[0].mxu0 %v585
      %v823 = vpop.f32.mrb[0].mxu0
      %v824 = vadd.f32 %v358, %v823
      %v825 = vpop.f32.mrb[0].mxu0
      %v826 = vpop.f32.mrb[0].mxu0
      %v827 = vadd.f32 %v358, %v826
      %v828 = vpop.f32.mrb[0].mxu0
      %829 = vmatprep.mubr.bf16.mxu0 0
      %830 = vmatmul.mubr.bf16.gmra.mrb[0].mxu0 %v588
      %v831 = vpop.f32.mrb[0].mxu0
      %v832 = vadd.f32 %v358, %v831
      %v833 = vpop.f32.mrb[0].mxu0
      %v834 = vpop.f32.mrb[0].mxu0
      %v835 = vadd.f32 %v358, %v834
      %v836 = vpop.f32.mrb[0].mxu0
      %837 = vmatprep.mubr.bf16.mxu0 0
      %838 = vmatmul.mubr.bf16.gmra.mrb[0].mxu0 %v591
      %v839 = vpop.f32.mrb[0].mxu0
      %v840 = vadd.f32 %v358, %v839
      %v841 = vpop.f32.mrb[0].mxu0
      %v842 = vpop.f32.mrb[0].mxu0
      %v843 = vadd.f32 %v358, %v842
      %v844 = vpop.f32.mrb[0].mxu0
      %845 = vmatprep.mubr.bf16.mxu0 0
      %846 = vmatmul.mubr.bf16.gmra.mrb[0].mxu0 %v594
      %v847 = vpop.f32.mrb[0].mxu0
      %v848 = vadd.f32 %v358, %v847
      %v849 = vpop.f32.mrb[0].mxu0
      %v850 = vpop.f32.mrb[0].mxu0
      %v851 = vadd.f32 %v358, %v850
      %v852 = vpop.f32.mrb[0].mxu0
      %853 = vmatprep.mubr.bf16.mxu0 0
      %854 = vmatmul.mubr.bf16.gmra.mrb[0].mxu0 %v597
      %v855 = vpop.f32.mrb[0].mxu0
      %v856 = vadd.f32 %v358, %v855
      %v857 = vpop.f32.mrb[0].mxu0
      %v858 = vpop.f32.mrb[0].mxu0
      %v859 = vadd.f32 %v358, %v858
      %v860 = vpop.f32.mrb[0].mxu0
      %861 = vmatprep.mubr.bf16.mxu0 0
      %862 = vmatmul.mubr.bf16.gmra.mrb[0].mxu0 %v600
      %v863 = vpop.f32.mrb[0].mxu0
      %v864 = vadd.f32 %v358, %v863
      %v865 = vpop.f32.mrb[0].mxu0
      %v866 = vpop.f32.mrb[0].mxu0
      %v867 = vadd.f32 %v358, %v866
      %v868 = vpop.f32.mrb[0].mxu0
      %869 = vmatprep.mubr.bf16.mxu0 0
      %870 = vmatmul.mubr.bf16.gmra.mrb[0].mxu0 %v603
      %v871 = vpop.f32.mrb[0].mxu0
      %v872 = vadd.f32 %v358, %v871
      %v873 = vpop.f32.mrb[0].mxu0
      %v874 = vpop.f32.mrb[0].mxu0
      %v875 = vadd.f32 %v358, %v874
      %v876 = vpop.f32.mrb[0].mxu0
      %877 = vmatprep.mubr.bf16.mxu0 0
      %878 = vmatmul.mubr.bf16.gmra.mrb[0].mxu0 %v606
      %v879 = vpop.f32.mrb[0].mxu0
      %v880 = vadd.f32 %v358, %v879
      %v881 = vpop.f32.mrb[0].mxu0
      %v882 = vpop.f32.mrb[0].mxu0
      %v883 = vadd.f32 %v358, %v882
      %v884 = vpop.f32.mrb[0].mxu0
      %885 = vmatprep.mubr.bf16.mxu0 0
      %886 = vmatmul.mubr.bf16.gmra.mrb[0].mxu0 %v609
      %v887 = vpop.f32.mrb[0].mxu0
      %v888 = vadd.f32 %v358, %v887
      %v889 = vpop.f32.mrb[0].mxu0
      %v890 = vpop.f32.mrb[0].mxu0
      %v891 = vadd.f32 %v358, %v890
      %v892 = vpop.f32.mrb[0].mxu0
      %893 = vmatprep.mubr.bf16.mxu0 0
      %894 = vmatmul.mubr.bf16.gmra.mrb[0].mxu0 %v612
      %v895 = vpop.f32.mrb[0].mxu0
      %v896 = vadd.f32 %v358, %v895
      %v897 = vpop.f32.mrb[0].mxu0
      %v898 = vpop.f32.mrb[0].mxu0
      %v899 = vadd.f32 %v358, %v898
      %v900 = vpop.f32.mrb[0].mxu0
      %901 = vmatprep.mubr.bf16.mxu0 0
      %902 = vmatmul.mubr.bf16.gmra.mrb[0].mxu0 %v615
      %v903 = vpop.f32.mrb[0].mxu0
      %v904 = vadd.f32 %v358, %v903
      %v905 = vpop.f32.mrb[0].mxu0
      %v906 = vpop.f32.mrb[0].mxu0
      %v907 = vadd.f32 %v358, %v906
      %v908 = vpop.f32.mrb[0].mxu0
      %909 = vdwg.mxu0
      %vm910 = vcmask 130048
      %911 = vst.msk [vmem:[#allocation2] sm:$0xff] %vm910, 0.0
      %912 = vst.msk [vmem:[#allocation2 + $0x8] sm:$0xff] %vm910, 0.0
      %vm913 = vcmask 123904
      %914 = vst.msk [vmem:[#allocation2 + $0x10] sm:$0x3] %vm913, 0.0
      %915 = vst.msk [vmem:[#allocation2 + $0x1b0] sm:$0xff] %vm910, 0.0
      %916 = vst.msk [vmem:[#allocation2 + $0x1b8] sm:$0xff] %vm910, 0.0
      %917 = vst.msk [vmem:[#allocation2 + $0x1c0] sm:$0x3] %vm913, 0.0
      %s918 = scalar_lea.vmem [#allocation2], 408
      %919 = vst.msk [vmem:[%s918] sm:$0xff] %vm910, 0.0
      %920 = vst.msk [vmem:[%s918 + $0x8] sm:$0xff] %vm910, 0.0
      %921 = vst.msk [vmem:[%s918 + $0x10] sm:$0x3] %vm913, 0.0
      %922 = vst.msk [vmem:[%s918 + $0x1b0] sm:$0xff] %vm910, 0.0
      %923 = vst.msk [vmem:[%s918 + $0x1b8] sm:$0xff] %vm910, 0.0
      %924 = vst.msk [vmem:[%s918 + $0x1c0] sm:$0x3] %vm913, 0.0
      %s925 = scalar_lea.vmem [#allocation2], 24
      %vm926 = vcmask 122880
      %927 = vst.msk [vmem:[%s925] sm:$0x1] %vm926, 0.0
      %928 = vst.msk [vmem:[%s925 + $0x18] sm:$0x1] %vm926, 0.0
      %929 = vst.msk [vmem:[%s925 + $0x30] sm:$0x1] %vm926, 0.0
      %930 = vst.msk [vmem:[%s925 + $0x48] sm:$0x1] %vm926, 0.0
      %931 = vst.msk [vmem:[%s925 + $0x60] sm:$0x1] %vm926, 0.0
      %932 = vst.msk [vmem:[%s925 + $0x78] sm:$0x1] %vm926, 0.0
      %933 = vst.msk [vmem:[%s925 + $0x90] sm:$0x1] %vm926, 0.0
      %934 = vst.msk [vmem:[%s925 + $0xa8] sm:$0x1] %vm926, 0.0
      %935 = vst.msk [vmem:[%s925 + $0xc0] sm:$0x1] %vm926, 0.0
      %936 = vst.msk [vmem:[%s925 + $0xd8] sm:$0x1] %vm926, 0.0
      %937 = vst.msk [vmem:[%s925 + $0xf0] sm:$0x1] %vm926, 0.0
      %938 = vst.msk [vmem:[%s925 + $0x108] sm:$0x1] %vm926, 0.0
      %939 = vst.msk [vmem:[%s925 + $0x120] sm:$0x1] %vm926, 0.0
      %940 = vst.msk [vmem:[%s925 + $0x138] sm:$0x1] %vm926, 0.0
      %941 = vst.msk [vmem:[%s925 + $0x150] sm:$0x1] %vm926, 0.0
      %942 = vst.msk [vmem:[%s925 + $0x168] sm:$0x1] %vm926, 0.0
      %943 = vst.msk [vmem:[%s925 + $0x1b0] sm:$0x1] %vm926, 0.0
      %944 = vst.msk [vmem:[%s925 + $0x1c8] sm:$0x1] %vm926, 0.0
      %945 = vst.msk [vmem:[%s925 + $0x1e0] sm:$0x1] %vm926, 0.0
      %946 = vst.msk [vmem:[%s925 + $0x1f8] sm:$0x1] %vm926, 0.0
      %947 = vst.msk [vmem:[%s925 + $0x210] sm:$0x1] %vm926, 0.0
      %948 = vst.msk [vmem:[%s925 + $0x228] sm:$0x1] %vm926, 0.0
      %949 = vst.msk [vmem:[%s925 + $0x240] sm:$0x1] %vm926, 0.0
      %950 = vst.msk [vmem:[%s925 + $0x258] sm:$0x1] %vm926, 0.0
      %951 = vst.msk [vmem:[%s925 + $0x270] sm:$0x1] %vm926, 0.0
      %952 = vst.msk [vmem:[%s925 + $0x288] sm:$0x1] %vm926, 0.0
      %953 = vst.msk [vmem:[%s925 + $0x2a0] sm:$0x1] %vm926, 0.0
      %954 = vst.msk [vmem:[%s925 + $0x2b8] sm:$0x1] %vm926, 0.0
      %955 = vst.msk [vmem:[%s925 + $0x2d0] sm:$0x1] %vm926, 0.0
      %956 = vst.msk [vmem:[%s925 + $0x2e8] sm:$0x1] %vm926, 0.0
      %957 = vst.msk [vmem:[%s925 + $0x300] sm:$0x1] %vm926, 0.0
      %958 = vst.msk [vmem:[%s925 + $0x318] sm:$0x1] %vm926, 0.0
      %959 = vst.msk [vmem:[%s925 + $0x11] sm:$0x1] %vm926, 0.0
      %960 = vst.msk [vmem:[%s925 + $0x29] sm:$0x1] %vm926, 0.0
      %961 = vst.msk [vmem:[%s925 + $0x41] sm:$0x1] %vm926, 0.0
      %962 = vst.msk [vmem:[%s925 + $0x59] sm:$0x1] %vm926, 0.0
      %963 = vst.msk [vmem:[%s925 + $0x71] sm:$0x1] %vm926, 0.0
      %964 = vst.msk [vmem:[%s925 + $0x89] sm:$0x1] %vm926, 0.0
      %965 = vst.msk [vmem:[%s925 + $0xa1] sm:$0x1] %vm926, 0.0
      %966 = vst.msk [vmem:[%s925 + $0xb9] sm:$0x1] %vm926, 0.0
      %967 = vst.msk [vmem:[%s925 + $0xd1] sm:$0x1] %vm926, 0.0
      %968 = vst.msk [vmem:[%s925 + $0xe9] sm:$0x1] %vm926, 0.0
      %969 = vst.msk [vmem:[%s925 + $0x101] sm:$0x1] %vm926, 0.0
      %970 = vst.msk [vmem:[%s925 + $0x119] sm:$0x1] %vm926, 0.0
      %971 = vst.msk [vmem:[%s925 + $0x131] sm:$0x1] %vm926, 0.0
      %972 = vst.msk [vmem:[%s925 + $0x149] sm:$0x1] %vm926, 0.0
      %973 = vst.msk [vmem:[%s925 + $0x161] sm:$0x1] %vm926, 0.0
      %974 = vst.msk [vmem:[%s925 + $0x179] sm:$0x1] %vm926, 0.0
      %975 = vst.msk [vmem:[%s925 + $0x1c1] sm:$0x1] %vm926, 0.0
      %976 = vst.msk [vmem:[%s925 + $0x1d9] sm:$0x1] %vm926, 0.0
      %977 = vst.msk [vmem:[%s925 + $0x1f1] sm:$0x1] %vm926, 0.0
      %978 = vst.msk [vmem:[%s925 + $0x209] sm:$0x1] %vm926, 0.0
      %979 = vst.msk [vmem:[%s925 + $0x221] sm:$0x1] %vm926, 0.0
      %980 = vst.msk [vmem:[%s925 + $0x239] sm:$0x1] %vm926, 0.0
      %981 = vst.msk [vmem:[%s925 + $0x251] sm:$0x1] %vm926, 0.0
      %982 = vst.msk [vmem:[%s925 + $0x269] sm:$0x1] %vm926, 0.0
      %983 = vst.msk [vmem:[%s925 + $0x281] sm:$0x1] %vm926, 0.0
      %984 = vst.msk [vmem:[%s925 + $0x299] sm:$0x1] %vm926, 0.0
      %985 = vst.msk [vmem:[%s925 + $0x2b1] sm:$0x1] %vm926, 0.0
      %986 = vst.msk [vmem:[%s925 + $0x2c9] sm:$0x1] %vm926, 0.0
      %987 = vst.msk [vmem:[%s925 + $0x2e1] sm:$0x1] %vm926, 0.0
      %988 = vst.msk [vmem:[%s925 + $0x2f9] sm:$0x1] %vm926, 0.0
      %989 = vst.msk [vmem:[%s925 + $0x311] sm:$0x1] %vm926, 0.0
      %990 = vst.msk [vmem:[%s925 + $0x329] sm:$0x1] %vm926, 0.0
      %991 = vst.msk [vmem:[%s925 + $0x1] sm:$0xff] %vm910, %v656
      %992 = vst.msk [vmem:[%s925 + $0x9] sm:$0xff] %vm910, %v659
      %993 = vst.msk [vmem:[%s925 + $0x19] sm:$0xff] %vm910, %v664
      %994 = vst.msk [vmem:[%s925 + $0x21] sm:$0xff] %vm910, %v667
      %995 = vst.msk [vmem:[%s925 + $0x31] sm:$0xff] %vm910, %v672
      %996 = vst.msk [vmem:[%s925 + $0x39] sm:$0xff] %vm910, %v675
      %997 = vst.msk [vmem:[%s925 + $0x49] sm:$0xff] %vm910, %v680
      %998 = vst.msk [vmem:[%s925 + $0x51] sm:$0xff] %vm910, %v683
      %999 = vst.msk [vmem:[%s925 + $0x61] sm:$0xff] %vm910, %v688
      %1000 = vst.msk [vmem:[%s925 + $0x69] sm:$0xff] %vm910, %v691
      %1001 = vst.msk [vmem:[%s925 + $0x79] sm:$0xff] %vm910, %v696
      %1002 = vst.msk [vmem:[%s925 + $0x81] sm:$0xff] %vm910, %v699
      %1003 = vst.msk [vmem:[%s925 + $0x91] sm:$0xff] %vm910, %v704
      %1004 = vst.msk [vmem:[%s925 + $0x99] sm:$0xff] %vm910, %v707
      %1005 = vst.msk [vmem:[%s925 + $0xa9] sm:$0xff] %vm910, %v712
      %1006 = vst.msk [vmem:[%s925 + $0xb1] sm:$0xff] %vm910, %v715
      %1007 = vst.msk [vmem:[%s925 + $0xc1] sm:$0xff] %vm910, %v720
      %1008 = vst.msk [vmem:[%s925 + $0xc9] sm:$0xff] %vm910, %v723
      %1009 = vst.msk [vmem:[%s925 + $0xd9] sm:$0xff] %vm910, %v728
      %1010 = vst.msk [vmem:[%s925 + $0xe1] sm:$0xff] %vm910, %v731
      %1011 = vst.msk [vmem:[%s925 + $0xf1] sm:$0xff] %vm910, %v736
      %1012 = vst.msk [vmem:[%s925 + $0xf9] sm:$0xff] %vm910, %v739
      %1013 = vst.msk [vmem:[%s925 + $0x109] sm:$0xff] %vm910, %v744
      %1014 = vst.msk [vmem:[%s925 + $0x111] sm:$0xff] %vm910, %v747
      %1015 = vst.msk [vmem:[%s925 + $0x121] sm:$0xff] %vm910, %v752
      %1016 = vst.msk [vmem:[%s925 + $0x129] sm:$0xff] %vm910, %v755
      %1017 = vst.msk [vmem:[%s925 + $0x139] sm:$0xff] %vm910, %v760
      %1018 = vst.msk [vmem:[%s925 + $0x141] sm:$0xff] %vm910, %v763
      %1019 = vst.msk [vmem:[%s925 + $0x151] sm:$0xff] %vm910, %v768
      %1020 = vst.msk [vmem:[%s925 + $0x159] sm:$0xff] %vm910, %v771
      %1021 = vst.msk [vmem:[%s925 + $0x169] sm:$0xff] %vm910, %v776
      %1022 = vst.msk [vmem:[%s925 + $0x171] sm:$0xff] %vm910, %v779
      %1023 = vst.msk [vmem:[%s925 + $0x1b1] sm:$0xff] %vm910, %v784
      %1024 = vst.msk [vmem:[%s925 + $0x1b9] sm:$0xff] %vm910, %v787
      %1025 = vst.msk [vmem:[%s925 + $0x1c9] sm:$0xff] %vm910, %v792
      %1026 = vst.msk [vmem:[%s925 + $0x1d1] sm:$0xff] %vm910, %v795
      %1027 = vst.msk [vmem:[%s925 + $0x1e1] sm:$0xff] %vm910, %v800
      %1028 = vst.msk [vmem:[%s925 + $0x1e9] sm:$0xff] %vm910, %v803
      %1029 = vst.msk [vmem:[%s925 + $0x1f9] sm:$0xff] %vm910, %v808
      %1030 = vst.msk [vmem:[%s925 + $0x201] sm:$0xff] %vm910, %v811
      %1031 = vst.msk [vmem:[%s925 + $0x211] sm:$0xff] %vm910, %v816
      %1032 = vst.msk [vmem:[%s925 + $0x219] sm:$0xff] %vm910, %v819
      %1033 = vst.msk [vmem:[%s925 + $0x229] sm:$0xff] %vm910, %v824
      %1034 = vst.msk [vmem:[%s925 + $0x231] sm:$0xff] %vm910, %v827
      %1035 = vst.msk [vmem:[%s925 + $0x241] sm:$0xff] %vm910, %v832
      %1036 = vst.msk [vmem:[%s925 + $0x249] sm:$0xff] %vm910, %v835
      %1037 = vst.msk [vmem:[%s925 + $0x259] sm:$0xff] %vm910, %v840
      %1038 = vst.msk [vmem:[%s925 + $0x261] sm:$0xff] %vm910, %v843
      %1039 = vst.msk [vmem:[%s925 + $0x271] sm:$0xff] %vm910, %v848
      %1040 = vst.msk [vmem:[%s925 + $0x279] sm:$0xff] %vm910, %v851
      %1041 = vst.msk [vmem:[%s925 + $0x289] sm:$0xff] %vm910, %v856
      %1042 = vst.msk [vmem:[%s925 + $0x291] sm:$0xff] %vm910, %v859
      %1043 = vst.msk [vmem:[%s925 + $0x2a1] sm:$0xff] %vm910, %v864
      %1044 = vst.msk [vmem:[%s925 + $0x2a9] sm:$0xff] %vm910, %v867
      %1045 = vst.msk [vmem:[%s925 + $0x2b9] sm:$0xff] %vm910, %v872
      %1046 = vst.msk [vmem:[%s925 + $0x2c1] sm:$0xff] %vm910, %v875
      %1047 = vst.msk [vmem:[%s925 + $0x2d1] sm:$0xff] %vm910, %v880
      %1048 = vst.msk [vmem:[%s925 + $0x2d9] sm:$0xff] %vm910, %v883
      %1049 = vst.msk [vmem:[%s925 + $0x2e9] sm:$0xff] %vm910, %v888
      %1050 = vst.msk [vmem:[%s925 + $0x2f1] sm:$0xff] %vm910, %v891
      %1051 = vst.msk [vmem:[%s925 + $0x301] sm:$0xff] %vm910, %v896
      %1052 = vst.msk [vmem:[%s925 + $0x309] sm:$0xff] %vm910, %v899
      %1053 = vst.msk [vmem:[%s925 + $0x319] sm:$0xff] %vm910, %v904
      %1054 = vst.msk [vmem:[%s925 + $0x321] sm:$0xff] %vm910, %v907
      %v1055 = vld [vmem:[#allocation2] sm:$0xff]
      %v1056 = vld [vmem:[#allocation2 + $0x8] sm:$0xff]
      %v1057 = vld [vmem:[#allocation2 + $0x18] sm:$0xff]
      %v1058 = vld [vmem:[#allocation2 + $0x20] sm:$0xff]
      %v1059 = vld [vmem:[#allocation2 + $0x30] sm:$0xff]
      %v1060 = vld [vmem:[#allocation2 + $0x38] sm:$0xff]
      %v1061 = vld [vmem:[#allocation2 + $0x48] sm:$0xff]
      %v1062 = vld [vmem:[#allocation2 + $0x50] sm:$0xff]
      %v1063 = vld [vmem:[#allocation2 + $0x60] sm:$0xff]
      %v1064 = vld [vmem:[#allocation2 + $0x68] sm:$0xff]
      %v1065 = vld [vmem:[#allocation2 + $0x78] sm:$0xff]
      %v1066 = vld [vmem:[#allocation2 + $0x80] sm:$0xff]
      %v1067 = vld [vmem:[#allocation2 + $0x90] sm:$0xff]
      %v1068 = vld [vmem:[#allocation2 + $0x98] sm:$0xff]
      %v1069 = vld [vmem:[#allocation2 + $0xa8] sm:$0xff]
      %v1070 = vld [vmem:[#allocation2 + $0xb0] sm:$0xff]
      %v1071 = vld [vmem:[#allocation2 + $0xc0] sm:$0xff]
      %v1072 = vld [vmem:[#allocation2 + $0xc8] sm:$0xff]
      %v1073 = vld [vmem:[#allocation2 + $0xd8] sm:$0xff]
      %v1074 = vld [vmem:[#allocation2 + $0xe0] sm:$0xff]
      %v1075 = vld [vmem:[#allocation2 + $0xf0] sm:$0xff]
      %v1076 = vld [vmem:[#allocation2 + $0xf8] sm:$0xff]
      %v1077 = vld [vmem:[#allocation2 + $0x108] sm:$0xff]
      %v1078 = vld [vmem:[#allocation2 + $0x110] sm:$0xff]
      %v1079 = vld [vmem:[#allocation2 + $0x120] sm:$0xff]
      %v1080 = vld [vmem:[#allocation2 + $0x128] sm:$0xff]
      %v1081 = vld [vmem:[#allocation2 + $0x138] sm:$0xff]
      %v1082 = vld [vmem:[#allocation2 + $0x140] sm:$0xff]
      %v1083 = vld [vmem:[#allocation2 + $0x150] sm:$0xff]
      %v1084 = vld [vmem:[#allocation2 + $0x158] sm:$0xff]
      %v1085 = vld [vmem:[#allocation2 + $0x168] sm:$0xff]
      %v1086 = vld [vmem:[#allocation2 + $0x170] sm:$0xff]
      %v1087 = vld [vmem:[#allocation2 + $0x180] sm:$0xff]
      %v1088 = vld [vmem:[#allocation2 + $0x188] sm:$0xff]
      %v1089 = vld [vmem:[#allocation2 + $0x198] sm:$0xff]
      %v1090 = vld [vmem:[#allocation2 + $0x1a0] sm:$0xff]
      %v1091 = vld [vmem:[#allocation2 + $0x1b0] sm:$0xff]
      %v1092 = vld [vmem:[#allocation2 + $0x1b8] sm:$0xff]
      %v1093 = vld [vmem:[#allocation2 + $0x1c8] sm:$0xff]
      %v1094 = vld [vmem:[#allocation2 + $0x1d0] sm:$0xff]
      %v1095 = vld [vmem:[#allocation2 + $0x1e0] sm:$0xff]
      %v1096 = vld [vmem:[#allocation2 + $0x1e8] sm:$0xff]
      %v1097 = vld [vmem:[#allocation2 + $0x1f8] sm:$0xff]
      %v1098 = vld [vmem:[#allocation2 + $0x200] sm:$0xff]
      %v1099 = vld [vmem:[#allocation2 + $0x210] sm:$0xff]
      %v1100 = vld [vmem:[#allocation2 + $0x218] sm:$0xff]
      %v1101 = vld [vmem:[#allocation2 + $0x228] sm:$0xff]
      %v1102 = vld [vmem:[#allocation2 + $0x230] sm:$0xff]
      %v1103 = vld [vmem:[#allocation2 + $0x240] sm:$0xff]
      %v1104 = vld [vmem:[#allocation2 + $0x248] sm:$0xff]
      %v1105 = vld [vmem:[#allocation2 + $0x258] sm:$0xff]
      %v1106 = vld [vmem:[#allocation2 + $0x260] sm:$0xff]
      %v1107 = vld [vmem:[#allocation2 + $0x270] sm:$0xff]
      %v1108 = vld [vmem:[#allocation2 + $0x278] sm:$0xff]
      %v1109 = vld [vmem:[#allocation2 + $0x288] sm:$0xff]
      %v1110 = vld [vmem:[#allocation2 + $0x290] sm:$0xff]
      %v1111 = vld [vmem:[#allocation2 + $0x2a0] sm:$0xff]
      %v1112 = vld [vmem:[#allocation2 + $0x2a8] sm:$0xff]
      %v1113 = vld [vmem:[#allocation2 + $0x2b8] sm:$0xff]
      %v1114 = vld [vmem:[#allocation2 + $0x2c0] sm:$0xff]
      %v1115 = vld [vmem:[#allocation2 + $0x2d0] sm:$0xff]
      %v1116 = vld [vmem:[#allocation2 + $0x2d8] sm:$0xff]
      %v1117 = vld [vmem:[#allocation2 + $0x2e8] sm:$0xff]
      %v1118 = vld [vmem:[#allocation2 + $0x2f0] sm:$0xff]
      %v1119 = vld [vmem:[#allocation2 + $0x300] sm:$0xff]
      %v1120 = vld [vmem:[#allocation2 + $0x308] sm:$0xff]
      %v1121 = vld [vmem:[#allocation2 + $0x318] sm:$0xff]
      %v1122 = vld [vmem:[#allocation2 + $0x320] sm:$0xff]
      %v1123 = vld [vmem:[#allocation2 + $0x330] sm:$0xff]
      %v1124 = vld [vmem:[#allocation2 + $0x338] sm:$0xff]
      %v1125 = vld [vmem:[#allocation2 + $0x348] sm:$0xff]
      %v1126 = vld [vmem:[#allocation2 + $0x350] sm:$0xff]
      %v1127 = vld [vmem:[#allocation2 + $0x1] sm:$0xff]
      %v1128 = vld [vmem:[#allocation2 + $0x9] sm:$0xff]
      %v1129 = vld [vmem:[#allocation2 + $0x19] sm:$0xff]
      %v1130 = vld [vmem:[#allocation2 + $0x21] sm:$0xff]
      %v1131 = vld [vmem:[#allocation2 + $0x31] sm:$0xff]
      %v1132 = vld [vmem:[#allocation2 + $0x39] sm:$0xff]
      %v1133 = vld [vmem:[#allocation2 + $0x49] sm:$0xff]
      %v1134 = vld [vmem:[#allocation2 + $0x51] sm:$0xff]
      %v1135 = vld [vmem:[#allocation2 + $0x61] sm:$0xff]
      %v1136 = vld [vmem:[#allocation2 + $0x69] sm:$0xff]
      %v1137 = vld [vmem:[#allocation2 + $0x79] sm:$0xff]
      %v1138 = vld [vmem:[#allocation2 + $0x81] sm:$0xff]
      %v1139 = vld [vmem:[#allocation2 + $0x91] sm:$0xff]
      %v1140 = vld [vmem:[#allocation2 + $0x99] sm:$0xff]
      %v1141 = vld [vmem:[#allocation2 + $0xa9] sm:$0xff]
      %v1142 = vld [vmem:[#allocation2 + $0xb1] sm:$0xff]
      %v1143 = vld [vmem:[#allocation2 + $0xc1] sm:$0xff]
      %v1144 = vld [vmem:[#allocation2 + $0xc9] sm:$0xff]
      %v1145 = vld [vmem:[#allocation2 + $0xd9] sm:$0xff]
      %v1146 = vld [vmem:[#allocation2 + $0xe1] sm:$0xff]
      %v1147 = vld [vmem:[#allocation2 + $0xf1] sm:$0xff]
      %v1148 = vld [vmem:[#allocation2 + $0xf9] sm:$0xff]
      %v1149 = vld [vmem:[#allocation2 + $0x109] sm:$0xff]
      %v1150 = vld [vmem:[#allocation2 + $0x111] sm:$0xff]
      %v1151 = vld [vmem:[#allocation2 + $0x121] sm:$0xff]
      %v1152 = vld [vmem:[#allocation2 + $0x129] sm:$0xff]
      %v1153 = vld [vmem:[#allocation2 + $0x139] sm:$0xff]
      %v1154 = vld [vmem:[#allocation2 + $0x141] sm:$0xff]
      %v1155 = vld [vmem:[#allocation2 + $0x151] sm:$0xff]
      %v1156 = vld [vmem:[#allocation2 + $0x159] sm:$0xff]
      %v1157 = vld [vmem:[#allocation2 + $0x169] sm:$0xff]
      %v1158 = vld [vmem:[#allocation2 + $0x171] sm:$0xff]
      %v1159 = vld [vmem:[#allocation2 + $0x181] sm:$0xff]
      %v1160 = vld [vmem:[#allocation2 + $0x189] sm:$0xff]
      %v1161 = vld [vmem:[#allocation2 + $0x199] sm:$0xff]
      %v1162 = vld [vmem:[#allocation2 + $0x1a1] sm:$0xff]
      %v1163 = vld [vmem:[#allocation2 + $0x1b1] sm:$0xff]
      %v1164 = vld [vmem:[#allocation2 + $0x1b9] sm:$0xff]
      %v1165 = vld [vmem:[#allocation2 + $0x1c9] sm:$0xff]
      %v1166 = vld [vmem:[#allocation2 + $0x1d1] sm:$0xff]
      %v1167 = vld [vmem:[#allocation2 + $0x1e1] sm:$0xff]
      %v1168 = vld [vmem:[#allocation2 + $0x1e9] sm:$0xff]
      %v1169 = vld [vmem:[#allocation2 + $0x1f9] sm:$0xff]
      %v1170 = vld [vmem:[#allocation2 + $0x201] sm:$0xff]
      %v1171 = vld [vmem:[#allocation2 + $0x211] sm:$0xff]
      %v1172 = vld [vmem:[#allocation2 + $0x219] sm:$0xff]
      %v1173 = vld [vmem:[#allocation2 + $0x229] sm:$0xff]
      %v1174 = vld [vmem:[#allocation2 + $0x231] sm:$0xff]
      %v1175 = vld [vmem:[#allocation2 + $0x241] sm:$0xff]
      %v1176 = vld [vmem:[#allocation2 + $0x249] sm:$0xff]
      %v1177 = vld [vmem:[#allocation2 + $0x259] sm:$0xff]
      %v1178 = vld [vmem:[#allocation2 + $0x261] sm:$0xff]
      %v1179 = vld [vmem:[#allocation2 + $0x271] sm:$0xff]
      %v1180 = vld [vmem:[#allocation2 + $0x279] sm:$0xff]
      %v1181 = vld [vmem:[#allocation2 + $0x289] sm:$0xff]
      %v1182 = vld [vmem:[#allocation2 + $0x291] sm:$0xff]
      %v1183 = vld [vmem:[#allocation2 + $0x2a1] sm:$0xff]
      %v1184 = vld [vmem:[#allocation2 + $0x2a9] sm:$0xff]
      %v1185 = vld [vmem:[#allocation2 + $0x2b9] sm:$0xff]
      %v1186 = vld [vmem:[#allocation2 + $0x2c1] sm:$0xff]
      %v1187 = vld [vmem:[#allocation2 + $0x2d1] sm:$0xff]
      %v1188 = vld [vmem:[#allocation2 + $0x2d9] sm:$0xff]
      %v1189 = vld [vmem:[#allocation2 + $0x2e9] sm:$0xff]
      %v1190 = vld [vmem:[#allocation2 + $0x2f1] sm:$0xff]
      %v1191 = vld [vmem:[#allocation2 + $0x301] sm:$0xff]
      %v1192 = vld [vmem:[#allocation2 + $0x309] sm:$0xff]
      %v1193 = vld [vmem:[#allocation2 + $0x319] sm:$0xff]
      %v1194 = vld [vmem:[#allocation2 + $0x321] sm:$0xff]
      %v1195 = vld [vmem:[#allocation2 + $0x331] sm:$0xff]
      %v1196 = vld [vmem:[#allocation2 + $0x339] sm:$0xff]
      %v1197 = vld [vmem:[#allocation2 + $0x349] sm:$0xff]
      %v1198 = vld [vmem:[#allocation2 + $0x351] sm:$0xff]
      %v1199 = vld [vmem:[#allocation2 + $0x2] sm:$0xff]
      %v1200 = vld [vmem:[#allocation2 + $0xa] sm:$0xff]
      %v1201 = vld [vmem:[#allocation2 + $0x1a] sm:$0xff]
      %v1202 = vld [vmem:[#allocation2 + $0x22] sm:$0xff]
      %v1203 = vld [vmem:[#allocation2 + $0x32] sm:$0xff]
      %v1204 = vld [vmem:[#allocation2 + $0x3a] sm:$0xff]
      %v1205 = vld [vmem:[#allocation2 + $0x4a] sm:$0xff]
      %v1206 = vld [vmem:[#allocation2 + $0x52] sm:$0xff]
      %v1207 = vld [vmem:[#allocation2 + $0x62] sm:$0xff]
      %v1208 = vld [vmem:[#allocation2 + $0x6a] sm:$0xff]
      %v1209 = vld [vmem:[#allocation2 + $0x7a] sm:$0xff]
      %v1210 = vld [vmem:[#allocation2 + $0x82] sm:$0xff]
      %v1211 = vld [vmem:[#allocation2 + $0x92] sm:$0xff]
      %v1212 = vld [vmem:[#allocation2 + $0x9a] sm:$0xff]
      %v1213 = vld [vmem:[#allocation2 + $0xaa] sm:$0xff]
      %v1214 = vld [vmem:[#allocation2 + $0xb2] sm:$0xff]
      %v1215 = vld [vmem:[#allocation2 + $0xc2] sm:$0xff]
      %v1216 = vld [vmem:[#allocation2 + $0xca] sm:$0xff]
      %v1217 = vld [vmem:[#allocation2 + $0xda] sm:$0xff]
      %v1218 = vld [vmem:[#allocation2 + $0xe2] sm:$0xff]
      %v1219 = vld [vmem:[#allocation2 + $0xf2] sm:$0xff]
      %v1220 = vld [vmem:[#allocation2 + $0xfa] sm:$0xff]
      %v1221 = vld [vmem:[#allocation2 + $0x10a] sm:$0xff]
      %v1222 = vld [vmem:[#allocation2 + $0x112] sm:$0xff]
      %v1223 = vld [vmem:[#allocation2 + $0x122] sm:$0xff]
      %v1224 = vld [vmem:[#allocation2 + $0x12a] sm:$0xff]
      %v1225 = vld [vmem:[#allocation2 + $0x13a] sm:$0xff]
      %v1226 = vld [vmem:[#allocation2 + $0x142] sm:$0xff]
      %v1227 = vld [vmem:[#allocation2 + $0x152] sm:$0xff]
      %v1228 = vld [vmem:[#allocation2 + $0x15a] sm:$0xff]
      %v1229 = vld [vmem:[#allocation2 + $0x16a] sm:$0xff]
      %v1230 = vld [vmem:[#allocation2 + $0x172] sm:$0xff]
      %v1231 = vld [vmem:[#allocation2 + $0x182] sm:$0xff]
      %v1232 = vld [vmem:[#allocation2 + $0x18a] sm:$0xff]
      %v1233 = vld [vmem:[#allocation2 + $0x19a] sm:$0xff]
      %v1234 = vld [vmem:[#allocation2 + $0x1a2] sm:$0xff]
      %v1235 = vld [vmem:[#allocation2 + $0x1b2] sm:$0xff]
      %v1236 = vld [vmem:[#allocation2 + $0x1ba] sm:$0xff]
      %v1237 = vld [vmem:[#allocation2 + $0x1ca] sm:$0xff]
      %v1238 = vld [vmem:[#allocation2 + $0x1d2] sm:$0xff]
      %v1239 = vld [vmem:[#allocation2 + $0x1e2] sm:$0xff]
      %v1240 = vld [vmem:[#allocation2 + $0x1ea] sm:$0xff]
      %v1241 = vld [vmem:[#allocation2 + $0x1fa] sm:$0xff]
      %v1242 = vld [vmem:[#allocation2 + $0x202] sm:$0xff]
      %v1243 = vld [vmem:[#allocation2 + $0x212] sm:$0xff]
      %v1244 = vld [vmem:[#allocation2 + $0x21a] sm:$0xff]
      %v1245 = vld [vmem:[#allocation2 + $0x22a] sm:$0xff]
      %v1246 = vld [vmem:[#allocation2 + $0x232] sm:$0xff]
      %v1247 = vld [vmem:[#allocation2 + $0x242] sm:$0xff]
      %v1248 = vld [vmem:[#allocation2 + $0x24a] sm:$0xff]
      %v1249 = vld [vmem:[#allocation2 + $0x25a] sm:$0xff]
      %v1250 = vld [vmem:[#allocation2 + $0x262] sm:$0xff]
      %v1251 = vld [vmem:[#allocation2 + $0x272] sm:$0xff]
      %v1252 = vld [vmem:[#allocation2 + $0x27a] sm:$0xff]
      %v1253 = vld [vmem:[#allocation2 + $0x28a] sm:$0xff]
      %v1254 = vld [vmem:[#allocation2 + $0x292] sm:$0xff]
      %v1255 = vld [vmem:[#allocation2 + $0x2a2] sm:$0xff]
      %v1256 = vld [vmem:[#allocation2 + $0x2aa] sm:$0xff]
      %v1257 = vld [vmem:[#allocation2 + $0x2ba] sm:$0xff]
      %v1258 = vld [vmem:[#allocation2 + $0x2c2] sm:$0xff]
      %v1259 = vld [vmem:[#allocation2 + $0x2d2] sm:$0xff]
      %v1260 = vld [vmem:[#allocation2 + $0x2da] sm:$0xff]
      %v1261 = vld [vmem:[#allocation2 + $0x2ea] sm:$0xff]
      %v1262 = vld [vmem:[#allocation2 + $0x2f2] sm:$0xff]
      %v1263 = vld [vmem:[#allocation2 + $0x302] sm:$0xff]
      %v1264 = vld [vmem:[#allocation2 + $0x30a] sm:$0xff]
      %v1265 = vld [vmem:[#allocation2 + $0x31a] sm:$0xff]
      %v1266 = vld [vmem:[#allocation2 + $0x322] sm:$0xff]
      %v1267 = vld [vmem:[#allocation2 + $0x332] sm:$0xff]
      %v1268 = vld [vmem:[#allocation2 + $0x33a] sm:$0xff]
      %v1269 = vld [vmem:[#allocation2 + $0x34a] sm:$0xff]
      %v1270 = vld [vmem:[#allocation2 + $0x352] sm:$0xff]
      %1343 = vrot.lane.b32.xlu0 %v1127, 16
      %v1344 = vpop.permute.xlu0 %1343
      %1345 = vrot.lane.b32.xlu0 %v1128, 16
      %v1346 = vpop.permute.xlu0 %1345
      %1347 = vrot.lane.b32.xlu0 %v1129, 16
      %v1348 = vpop.permute.xlu0 %1347
      %1349 = vrot.lane.b32.xlu0 %v1130, 16
      %v1350 = vpop.permute.xlu0 %1349
      %1351 = vrot.lane.b32.xlu0 %v1131, 16
      %v1352 = vpop.permute.xlu0 %1351
      %1353 = vrot.lane.b32.xlu0 %v1132, 16
      %v1354 = vpop.permute.xlu0 %1353
      %1355 = vrot.lane.b32.xlu0 %v1133, 16
      %v1356 = vpop.permute.xlu0 %1355
      %1357 = vrot.lane.b32.xlu0 %v1134, 16
      %v1358 = vpop.permute.xlu0 %1357
      %1359 = vrot.lane.b32.xlu0 %v1135, 16
      %v1360 = vpop.permute.xlu0 %1359
      %1361 = vrot.lane.b32.xlu0 %v1136, 16
      %v1362 = vpop.permute.xlu0 %1361
      %1363 = vrot.lane.b32.xlu0 %v1137, 16
      %v1364 = vpop.permute.xlu0 %1363
      %1365 = vrot.lane.b32.xlu0 %v1138, 16
      %v1366 = vpop.permute.xlu0 %1365
      %1367 = vrot.lane.b32.xlu0 %v1139, 16
      %v1368 = vpop.permute.xlu0 %1367
      %1369 = vrot.lane.b32.xlu0 %v1140, 16
      %v1370 = vpop.permute.xlu0 %1369
      %1371 = vrot.lane.b32.xlu0 %v1141, 16
      %v1372 = vpop.permute.xlu0 %1371
      %1373 = vrot.lane.b32.xlu0 %v1142, 16
      %v1374 = vpop.permute.xlu0 %1373
      %1375 = vrot.lane.b32.xlu0 %v1143, 16
      %v1376 = vpop.permute.xlu0 %1375
      %1377 = vrot.lane.b32.xlu0 %v1144, 16
      %v1378 = vpop.permute.xlu0 %1377
      %1379 = vrot.lane.b32.xlu0 %v1145, 16
      %v1380 = vpop.permute.xlu0 %1379
      %1381 = vrot.lane.b32.xlu0 %v1146, 16
      %v1382 = vpop.permute.xlu0 %1381
      %1383 = vrot.lane.b32.xlu0 %v1147, 16
      %v1384 = vpop.permute.xlu0 %1383
      %1385 = vrot.lane.b32.xlu0 %v1148, 16
      %v1386 = vpop.permute.xlu0 %1385
      %1387 = vrot.lane.b32.xlu0 %v1149, 16
      %v1388 = vpop.permute.xlu0 %1387
      %1389 = vrot.lane.b32.xlu0 %v1150, 16
      %v1390 = vpop.permute.xlu0 %1389
      %1391 = vrot.lane.b32.xlu0 %v1151, 16
      %v1392 = vpop.permute.xlu0 %1391
      %1393 = vrot.lane.b32.xlu0 %v1152, 16
      %v1394 = vpop.permute.xlu0 %1393
      %1395 = vrot.lane.b32.xlu0 %v1153, 16
      %v1396 = vpop.permute.xlu0 %1395
      %1397 = vrot.lane.b32.xlu0 %v1154, 16
      %v1398 = vpop.permute.xlu0 %1397
      %1399 = vrot.lane.b32.xlu0 %v1155, 16
      %v1400 = vpop.permute.xlu0 %1399
      %1401 = vrot.lane.b32.xlu0 %v1156, 16
      %v1402 = vpop.permute.xlu0 %1401
      %1403 = vrot.lane.b32.xlu0 %v1157, 16
      %v1404 = vpop.permute.xlu0 %1403
      %1405 = vrot.lane.b32.xlu0 %v1158, 16
      %v1406 = vpop.permute.xlu0 %1405
      %1407 = vrot.lane.b32.xlu0 %v1159, 16
      %v1408 = vpop.permute.xlu0 %1407
      %1409 = vrot.lane.b32.xlu0 %v1160, 16
      %v1410 = vpop.permute.xlu0 %1409
      %1411 = vrot.lane.b32.xlu0 %v1161, 16
      %v1412 = vpop.permute.xlu0 %1411
      %1413 = vrot.lane.b32.xlu0 %v1162, 16
      %v1414 = vpop.permute.xlu0 %1413
      %1415 = vrot.lane.b32.xlu0 %v1163, 16
      %v1416 = vpop.permute.xlu0 %1415
      %1417 = vrot.lane.b32.xlu0 %v1164, 16
      %v1418 = vpop.permute.xlu0 %1417
      %1419 = vrot.lane.b32.xlu0 %v1165, 16
      %v1420 = vpop.permute.xlu0 %1419
      %1421 = vrot.lane.b32.xlu0 %v1166, 16
      %v1422 = vpop.permute.xlu0 %1421
      %1423 = vrot.lane.b32.xlu0 %v1167, 16
      %v1424 = vpop.permute.xlu0 %1423
      %1425 = vrot.lane.b32.xlu0 %v1168, 16
      %v1426 = vpop.permute.xlu0 %1425
      %1427 = vrot.lane.b32.xlu0 %v1169, 16
      %v1428 = vpop.permute.xlu0 %1427
      %1429 = vrot.lane.b32.xlu0 %v1170, 16
      %v1430 = vpop.permute.xlu0 %1429
      %1431 = vrot.lane.b32.xlu0 %v1171, 16
      %v1432 = vpop.permute.xlu0 %1431
      %1433 = vrot.lane.b32.xlu0 %v1172, 16
      %v1434 = vpop.permute.xlu0 %1433
      %1435 = vrot.lane.b32.xlu0 %v1173, 16
      %v1436 = vpop.permute.xlu0 %1435
      %1437 = vrot.lane.b32.xlu0 %v1174, 16
      %v1438 = vpop.permute.xlu0 %1437
      %1439 = vrot.lane.b32.xlu0 %v1175, 16
      %v1440 = vpop.permute.xlu0 %1439
      %1441 = vrot.lane.b32.xlu0 %v1176, 16
      %v1442 = vpop.permute.xlu0 %1441
      %1443 = vrot.lane.b32.xlu0 %v1177, 16
      %v1444 = vpop.permute.xlu0 %1443
      %1445 = vrot.lane.b32.xlu0 %v1178, 16
      %v1446 = vpop.permute.xlu0 %1445
      %1447 = vrot.lane.b32.xlu0 %v1179, 16
      %v1448 = vpop.permute.xlu0 %1447
      %1449 = vrot.lane.b32.xlu0 %v1180, 16
      %v1450 = vpop.permute.xlu0 %1449
      %1451 = vrot.lane.b32.xlu0 %v1181, 16
      %v1452 = vpop.permute.xlu0 %1451
      %1453 = vrot.lane.b32.xlu0 %v1182, 16
      %v1454 = vpop.permute.xlu0 %1453
      %1455 = vrot.lane.b32.xlu0 %v1183, 16
      %v1456 = vpop.permute.xlu0 %1455
      %1457 = vrot.lane.b32.xlu0 %v1184, 16
      %v1458 = vpop.permute.xlu0 %1457
      %1459 = vrot.lane.b32.xlu0 %v1185, 16
      %v1460 = vpop.permute.xlu0 %1459
      %1461 = vrot.lane.b32.xlu0 %v1186, 16
      %v1462 = vpop.permute.xlu0 %1461
      %1463 = vrot.lane.b32.xlu0 %v1187, 16
      %v1464 = vpop.permute.xlu0 %1463
      %1465 = vrot.lane.b32.xlu0 %v1188, 16
      %v1466 = vpop.permute.xlu0 %1465
      %1467 = vrot.lane.b32.xlu0 %v1189, 16
      %v1468 = vpop.permute.xlu0 %1467
      %1469 = vrot.lane.b32.xlu0 %v1190, 16
      %v1470 = vpop.permute.xlu0 %1469
      %1471 = vrot.lane.b32.xlu0 %v1191, 16
      %v1472 = vpop.permute.xlu0 %1471
      %1473 = vrot.lane.b32.xlu0 %v1192, 16
      %v1474 = vpop.permute.xlu0 %1473
      %1475 = vrot.lane.b32.xlu0 %v1193, 16
      %v1476 = vpop.permute.xlu0 %1475
      %1477 = vrot.lane.b32.xlu0 %v1194, 16
      %v1478 = vpop.permute.xlu0 %1477
      %1479 = vrot.lane.b32.xlu0 %v1195, 16
      %v1480 = vpop.permute.xlu0 %1479
      %1481 = vrot.lane.b32.xlu0 %v1196, 16
      %v1482 = vpop.permute.xlu0 %1481
      %1483 = vrot.lane.b32.xlu0 %v1197, 16
      %v1484 = vpop.permute.xlu0 %1483
      %1485 = vrot.lane.b32.xlu0 %v1198, 16
      %v1486 = vpop.permute.xlu0 %1485
      %1631 = vrot.lane.b32.xlu0 %v1199, 32
      %v1632 = vpop.permute.xlu0 %1631
      %1633 = vrot.lane.b32.xlu0 %v1200, 32
      %v1634 = vpop.permute.xlu0 %1633
      %1635 = vrot.lane.b32.xlu0 %v1201, 32
      %v1636 = vpop.permute.xlu0 %1635
      %1637 = vrot.lane.b32.xlu0 %v1202, 32
      %v1638 = vpop.permute.xlu0 %1637
      %1639 = vrot.lane.b32.xlu0 %v1203, 32
      %v1640 = vpop.permute.xlu0 %1639
      %1641 = vrot.lane.b32.xlu0 %v1204, 32
      %v1642 = vpop.permute.xlu0 %1641
      %1643 = vrot.lane.b32.xlu0 %v1205, 32
      %v1644 = vpop.permute.xlu0 %1643
      %1645 = vrot.lane.b32.xlu0 %v1206, 32
      %v1646 = vpop.permute.xlu0 %1645
      %1647 = vrot.lane.b32.xlu0 %v1207, 32
      %v1648 = vpop.permute.xlu0 %1647
      %1649 = vrot.lane.b32.xlu0 %v1208, 32
      %v1650 = vpop.permute.xlu0 %1649
      %1651 = vrot.lane.b32.xlu0 %v1209, 32
      %v1652 = vpop.permute.xlu0 %1651
      %1653 = vrot.lane.b32.xlu0 %v1210, 32
      %v1654 = vpop.permute.xlu0 %1653
      %1655 = vrot.lane.b32.xlu0 %v1211, 32
      %v1656 = vpop.permute.xlu0 %1655
      %1657 = vrot.lane.b32.xlu0 %v1212, 32
      %v1658 = vpop.permute.xlu0 %1657
      %1659 = vrot.lane.b32.xlu0 %v1213, 32
      %v1660 = vpop.permute.xlu0 %1659
      %1661 = vrot.lane.b32.xlu0 %v1214, 32
      %v1662 = vpop.permute.xlu0 %1661
      %1663 = vrot.lane.b32.xlu0 %v1215, 32
      %v1664 = vpop.permute.xlu0 %1663
      %1665 = vrot.lane.b32.xlu0 %v1216, 32
      %v1666 = vpop.permute.xlu0 %1665
      %1667 = vrot.lane.b32.xlu0 %v1217, 32
      %v1668 = vpop.permute.xlu0 %1667
      %1669 = vrot.lane.b32.xlu0 %v1218, 32
      %v1670 = vpop.permute.xlu0 %1669
      %1671 = vrot.lane.b32.xlu0 %v1219, 32
      %v1672 = vpop.permute.xlu0 %1671
      %1673 = vrot.lane.b32.xlu0 %v1220, 32
      %v1674 = vpop.permute.xlu0 %1673
      %1675 = vrot.lane.b32.xlu0 %v1221, 32
      %v1676 = vpop.permute.xlu0 %1675
      %1677 = vrot.lane.b32.xlu0 %v1222, 32
      %v1678 = vpop.permute.xlu0 %1677
      %1679 = vrot.lane.b32.xlu0 %v1223, 32
      %v1680 = vpop.permute.xlu0 %1679
      %1681 = vrot.lane.b32.xlu0 %v1224, 32
      %v1682 = vpop.permute.xlu0 %1681
      %1683 = vrot.lane.b32.xlu0 %v1225, 32
      %v1684 = vpop.permute.xlu0 %1683
      %1685 = vrot.lane.b32.xlu0 %v1226, 32
      %v1686 = vpop.permute.xlu0 %1685
      %1687 = vrot.lane.b32.xlu0 %v1227, 32
      %v1688 = vpop.permute.xlu0 %1687
      %1689 = vrot.lane.b32.xlu0 %v1228, 32
      %v1690 = vpop.permute.xlu0 %1689
      %1691 = vrot.lane.b32.xlu0 %v1229, 32
      %v1692 = vpop.permute.xlu0 %1691
      %1693 = vrot.lane.b32.xlu0 %v1230, 32
      %v1694 = vpop.permute.xlu0 %1693
      %1695 = vrot.lane.b32.xlu0 %v1231, 32
      %v1696 = vpop.permute.xlu0 %1695
      %1697 = vrot.lane.b32.xlu0 %v1232, 32
      %v1698 = vpop.permute.xlu0 %1697
      %1699 = vrot.lane.b32.xlu0 %v1233, 32
      %v1700 = vpop.permute.xlu0 %1699
      %1701 = vrot.lane.b32.xlu0 %v1234, 32
      %v1702 = vpop.permute.xlu0 %1701
      %1703 = vrot.lane.b32.xlu0 %v1235, 32
      %v1704 = vpop.permute.xlu0 %1703
      %1705 = vrot.lane.b32.xlu0 %v1236, 32
      %v1706 = vpop.permute.xlu0 %1705
      %1707 = vrot.lane.b32.xlu0 %v1237, 32
      %v1708 = vpop.permute.xlu0 %1707
      %1709 = vrot.lane.b32.xlu0 %v1238, 32
      %v1710 = vpop.permute.xlu0 %1709
      %1711 = vrot.lane.b32.xlu0 %v1239, 32
      %v1712 = vpop.permute.xlu0 %1711
      %1713 = vrot.lane.b32.xlu0 %v1240, 32
      %v1714 = vpop.permute.xlu0 %1713
      %1715 = vrot.lane.b32.xlu0 %v1241, 32
      %v1716 = vpop.permute.xlu0 %1715
      %1717 = vrot.lane.b32.xlu0 %v1242, 32
      %v1718 = vpop.permute.xlu0 %1717
      %1719 = vrot.lane.b32.xlu0 %v1243, 32
      %v1720 = vpop.permute.xlu0 %1719
      %1721 = vrot.lane.b32.xlu0 %v1244, 32
      %v1722 = vpop.permute.xlu0 %1721
      %1723 = vrot.lane.b32.xlu0 %v1245, 32
      %v1724 = vpop.permute.xlu0 %1723
      %1725 = vrot.lane.b32.xlu0 %v1246, 32
      %v1726 = vpop.permute.xlu0 %1725
      %1727 = vrot.lane.b32.xlu0 %v1247, 32
      %v1728 = vpop.permute.xlu0 %1727
      %1729 = vrot.lane.b32.xlu0 %v1248, 32
      %v1730 = vpop.permute.xlu0 %1729
      %1731 = vrot.lane.b32.xlu0 %v1249, 32
      %v1732 = vpop.permute.xlu0 %1731
      %1733 = vrot.lane.b32.xlu0 %v1250, 32
      %v1734 = vpop.permute.xlu0 %1733
      %1735 = vrot.lane.b32.xlu0 %v1251, 32
      %v1736 = vpop.permute.xlu0 %1735
      %1737 = vrot.lane.b32.xlu0 %v1252, 32
      %v1738 = vpop.permute.xlu0 %1737
      %1739 = vrot.lane.b32.xlu0 %v1253, 32
      %v1740 = vpop.permute.xlu0 %1739
      %1741 = vrot.lane.b32.xlu0 %v1254, 32
      %v1742 = vpop.permute.xlu0 %1741
      %1743 = vrot.lane.b32.xlu0 %v1255, 32
      %v1744 = vpop.permute.xlu0 %1743
      %1745 = vrot.lane.b32.xlu0 %v1256, 32
      %v1746 = vpop.permute.xlu0 %1745
      %1747 = vrot.lane.b32.xlu0 %v1257, 32
      %v1748 = vpop.permute.xlu0 %1747
      %1749 = vrot.lane.b32.xlu0 %v1258, 32
      %v1750 = vpop.permute.xlu0 %1749
      %1751 = vrot.lane.b32.xlu0 %v1259, 32
      %v1752 = vpop.permute.xlu0 %1751
      %1753 = vrot.lane.b32.xlu0 %v1260, 32
      %v1754 = vpop.permute.xlu0 %1753
      %1755 = vrot.lane.b32.xlu0 %v1261, 32
      %v1756 = vpop.permute.xlu0 %1755
      %1757 = vrot.lane.b32.xlu0 %v1262, 32
      %v1758 = vpop.permute.xlu0 %1757
      %1759 = vrot.lane.b32.xlu0 %v1263, 32
      %v1760 = vpop.permute.xlu0 %1759
      %1761 = vrot.lane.b32.xlu0 %v1264, 32
      %v1762 = vpop.permute.xlu0 %1761
      %1763 = vrot.lane.b32.xlu0 %v1265, 32
      %v1764 = vpop.permute.xlu0 %1763
      %1765 = vrot.lane.b32.xlu0 %v1266, 32
      %v1766 = vpop.permute.xlu0 %1765
      %1767 = vrot.lane.b32.xlu0 %v1267, 32
      %v1768 = vpop.permute.xlu0 %1767
      %1769 = vrot.lane.b32.xlu0 %v1268, 32
      %v1770 = vpop.permute.xlu0 %1769
      %1771 = vrot.lane.b32.xlu0 %v1269, 32
      %v1772 = vpop.permute.xlu0 %1771
      %1773 = vrot.lane.b32.xlu0 %v1270, 32
      %v1774 = vpop.permute.xlu0 %1773
      %v1847 = vsel %vm910, %v1055, %v1344
      %v1848 = vsel %vm910, %v1056, %v1346
      %v1849 = vsel %vm910, %v1057, %v1348
      %v1850 = vsel %vm910, %v1058, %v1350
      %v1851 = vsel %vm910, %v1059, %v1352
      %v1852 = vsel %vm910, %v1060, %v1354
      %v1853 = vsel %vm910, %v1061, %v1356
      %v1854 = vsel %vm910, %v1062, %v1358
      %v1855 = vsel %vm910, %v1063, %v1360
      %v1856 = vsel %vm910, %v1064, %v1362
      %v1857 = vsel %vm910, %v1065, %v1364
      %v1858 = vsel %vm910, %v1066, %v1366
      %v1859 = vsel %vm910, %v1067, %v1368
      %v1860 = vsel %vm910, %v1068, %v1370
      %v1861 = vsel %vm910, %v1069, %v1372
      %v1862 = vsel %vm910, %v1070, %v1374
      %v1863 = vsel %vm910, %v1071, %v1376
      %v1864 = vsel %vm910, %v1072, %v1378
      %v1865 = vsel %vm910, %v1073, %v1380
      %v1866 = vsel %vm910, %v1074, %v1382
      %v1867 = vsel %vm910, %v1075, %v1384
      %v1868 = vsel %vm910, %v1076, %v1386
      %v1869 = vsel %vm910, %v1077, %v1388
      %v1870 = vsel %vm910, %v1078, %v1390
      %v1871 = vsel %vm910, %v1079, %v1392
      %v1872 = vsel %vm910, %v1080, %v1394
      %v1873 = vsel %vm910, %v1081, %v1396
      %v1874 = vsel %vm910, %v1082, %v1398
      %v1875 = vsel %vm910, %v1083, %v1400
      %v1876 = vsel %vm910, %v1084, %v1402
      %v1877 = vsel %vm910, %v1085, %v1404
      %v1878 = vsel %vm910, %v1086, %v1406
      %v1879 = vsel %vm910, %v1087, %v1408
      %v1880 = vsel %vm910, %v1088, %v1410
      %v1881 = vsel %vm910, %v1089, %v1412
      %v1882 = vsel %vm910, %v1090, %v1414
      %v1883 = vsel %vm910, %v1091, %v1416
      %v1884 = vsel %vm910, %v1092, %v1418
      %v1885 = vsel %vm910, %v1093, %v1420
      %v1886 = vsel %vm910, %v1094, %v1422
      %v1887 = vsel %vm910, %v1095, %v1424
      %v1888 = vsel %vm910, %v1096, %v1426
      %v1889 = vsel %vm910, %v1097, %v1428
      %v1890 = vsel %vm910, %v1098, %v1430
      %v1891 = vsel %vm910, %v1099, %v1432
      %v1892 = vsel %vm910, %v1100, %v1434
      %v1893 = vsel %vm910, %v1101, %v1436
      %v1894 = vsel %vm910, %v1102, %v1438
      %v1895 = vsel %vm910, %v1103, %v1440
      %v1896 = vsel %vm910, %v1104, %v1442
      %v1897 = vsel %vm910, %v1105, %v1444
      %v1898 = vsel %vm910, %v1106, %v1446
      %v1899 = vsel %vm910, %v1107, %v1448
      %v1900 = vsel %vm910, %v1108, %v1450
      %v1901 = vsel %vm910, %v1109, %v1452
      %v1902 = vsel %vm910, %v1110, %v1454
      %v1903 = vsel %vm910, %v1111, %v1456
      %v1904 = vsel %vm910, %v1112, %v1458
      %v1905 = vsel %vm910, %v1113, %v1460
      %v1906 = vsel %vm910, %v1114, %v1462
      %v1907 = vsel %vm910, %v1115, %v1464
      %v1908 = vsel %vm910, %v1116, %v1466
      %v1909 = vsel %vm910, %v1117, %v1468
      %v1910 = vsel %vm910, %v1118, %v1470
      %v1911 = vsel %vm910, %v1119, %v1472
      %v1912 = vsel %vm910, %v1120, %v1474
      %v1913 = vsel %vm910, %v1121, %v1476
      %v1914 = vsel %vm910, %v1122, %v1478
      %v1915 = vsel %vm910, %v1123, %v1480
      %v1916 = vsel %vm910, %v1124, %v1482
      %v1917 = vsel %vm910, %v1125, %v1484
      %v1918 = vsel %vm910, %v1126, %v1486
      %vm1919 = vcmask 261120
      %v1920 = vsel %vm1919, %v1847, %v1632
      %v1921 = vsel %vm1919, %v1848, %v1634
      %v1922 = vsel %vm1919, %v1849, %v1636
      %v1923 = vsel %vm1919, %v1850, %v1638
      %v1924 = vsel %vm1919, %v1851, %v1640
      %v1925 = vsel %vm1919, %v1852, %v1642
      %v1926 = vsel %vm1919, %v1853, %v1644
      %v1927 = vsel %vm1919, %v1854, %v1646
      %v1928 = vsel %vm1919, %v1855, %v1648
      %v1929 = vsel %vm1919, %v1856, %v1650
      %v1930 = vsel %vm1919, %v1857, %v1652
      %v1931 = vsel %vm1919, %v1858, %v1654
      %v1932 = vsel %vm1919, %v1859, %v1656
      %v1933 = vsel %vm1919, %v1860, %v1658
      %v1934 = vsel %vm1919, %v1861, %v1660
      %v1935 = vsel %vm1919, %v1862, %v1662
      %v1936 = vsel %vm1919, %v1863, %v1664
      %v1937 = vsel %vm1919, %v1864, %v1666
      %v1938 = vsel %vm1919, %v1865, %v1668
      %v1939 = vsel %vm1919, %v1866, %v1670
      %v1940 = vsel %vm1919, %v1867, %v1672
      %v1941 = vsel %vm1919, %v1868, %v1674
      %v1942 = vsel %vm1919, %v1869, %v1676
      %v1943 = vsel %vm1919, %v1870, %v1678
      %v1944 = vsel %vm1919, %v1871, %v1680
      %v1945 = vsel %vm1919, %v1872, %v1682
      %v1946 = vsel %vm1919, %v1873, %v1684
      %v1947 = vsel %vm1919, %v1874, %v1686
      %v1948 = vsel %vm1919, %v1875, %v1688
      %v1949 = vsel %vm1919, %v1876, %v1690
      %v1950 = vsel %vm1919, %v1877, %v1692
      %v1951 = vsel %vm1919, %v1878, %v1694
      %v1952 = vsel %vm1919, %v1879, %v1696
      %v1953 = vsel %vm1919, %v1880, %v1698
      %v1954 = vsel %vm1919, %v1881, %v1700
      %v1955 = vsel %vm1919, %v1882, %v1702
      %v1956 = vsel %vm1919, %v1883, %v1704
      %v1957 = vsel %vm1919, %v1884, %v1706
      %v1958 = vsel %vm1919, %v1885, %v1708
      %v1959 = vsel %vm1919, %v1886, %v1710
      %v1960 = vsel %vm1919, %v1887, %v1712
      %v1961 = vsel %vm1919, %v1888, %v1714
      %v1962 = vsel %vm1919, %v1889, %v1716
      %v1963 = vsel %vm1919, %v1890, %v1718
      %v1964 = vsel %vm1919, %v1891, %v1720
      %v1965 = vsel %vm1919, %v1892, %v1722
      %v1966 = vsel %vm1919, %v1893, %v1724
      %v1967 = vsel %vm1919, %v1894, %v1726
      %v1968 = vsel %vm1919, %v1895, %v1728
      %v1969 = vsel %vm1919, %v1896, %v1730
      %v1970 = vsel %vm1919, %v1897, %v1732
      %v1971 = vsel %vm1919, %v1898, %v1734
      %v1972 = vsel %vm1919, %v1899, %v1736
      %v1973 = vsel %vm1919, %v1900, %v1738
      %v1974 = vsel %vm1919, %v1901, %v1740
      %v1975 = vsel %vm1919, %v1902, %v1742
      %v1976 = vsel %vm1919, %v1903, %v1744
      %v1977 = vsel %vm1919, %v1904, %v1746
      %v1978 = vsel %vm1919, %v1905, %v1748
      %v1979 = vsel %vm1919, %v1906, %v1750
      %v1980 = vsel %vm1919, %v1907, %v1752
      %v1981 = vsel %vm1919, %v1908, %v1754
      %v1982 = vsel %vm1919, %v1909, %v1756
      %v1983 = vsel %vm1919, %v1910, %v1758
      %v1984 = vsel %vm1919, %v1911, %v1760
      %v1985 = vsel %vm1919, %v1912, %v1762
      %v1986 = vsel %vm1919, %v1913, %v1764
      %v1987 = vsel %vm1919, %v1914, %v1766
      %v1988 = vsel %vm1919, %v1915, %v1768
      %v1989 = vsel %vm1919, %v1916, %v1770
      %v1990 = vsel %vm1919, %v1917, %v1772
      %v1991 = vsel %vm1919, %v1918, %v1774
      %2056 = vrot.lane.b32.xlu0 %v1922, 48
      %v2057 = vpop.permute.xlu0 %2056
      %2058 = vrot.lane.b32.xlu0 %v1923, 48
      %v2059 = vpop.permute.xlu0 %2058
      %2060 = vrot.lane.b32.xlu0 %v1924, 48
      %v2061 = vpop.permute.xlu0 %2060
      %2062 = vrot.lane.b32.xlu0 %v1925, 48
      %v2063 = vpop.permute.xlu0 %2062
      %2064 = vrot.lane.b32.xlu0 %v1926, 48
      %v2065 = vpop.permute.xlu0 %2064
      %2066 = vrot.lane.b32.xlu0 %v1927, 48
      %v2067 = vpop.permute.xlu0 %2066
      %2068 = vrot.lane.b32.xlu0 %v1928, 48
      %v2069 = vpop.permute.xlu0 %2068
      %2070 = vrot.lane.b32.xlu0 %v1929, 48
      %v2071 = vpop.permute.xlu0 %2070
      %2072 = vrot.lane.b32.xlu0 %v1930, 48
      %v2073 = vpop.permute.xlu0 %2072
      %2074 = vrot.lane.b32.xlu0 %v1931, 48
      %v2075 = vpop.permute.xlu0 %2074
      %2076 = vrot.lane.b32.xlu0 %v1932, 48
      %v2077 = vpop.permute.xlu0 %2076
      %2078 = vrot.lane.b32.xlu0 %v1933, 48
      %v2079 = vpop.permute.xlu0 %2078
      %2080 = vrot.lane.b32.xlu0 %v1934, 48
      %v2081 = vpop.permute.xlu0 %2080
      %2082 = vrot.lane.b32.xlu0 %v1935, 48
      %v2083 = vpop.permute.xlu0 %2082
      %2084 = vrot.lane.b32.xlu0 %v1936, 48
      %v2085 = vpop.permute.xlu0 %2084
      %2086 = vrot.lane.b32.xlu0 %v1937, 48
      %v2087 = vpop.permute.xlu0 %2086
      %2088 = vrot.lane.b32.xlu0 %v1938, 48
      %v2089 = vpop.permute.xlu0 %2088
      %2090 = vrot.lane.b32.xlu0 %v1939, 48
      %v2091 = vpop.permute.xlu0 %2090
      %2092 = vrot.lane.b32.xlu0 %v1940, 48
      %v2093 = vpop.permute.xlu0 %2092
      %2094 = vrot.lane.b32.xlu0 %v1941, 48
      %v2095 = vpop.permute.xlu0 %2094
      %2096 = vrot.lane.b32.xlu0 %v1942, 48
      %v2097 = vpop.permute.xlu0 %2096
      %2098 = vrot.lane.b32.xlu0 %v1943, 48
      %v2099 = vpop.permute.xlu0 %2098
      %2100 = vrot.lane.b32.xlu0 %v1944, 48
      %v2101 = vpop.permute.xlu0 %2100
      %2102 = vrot.lane.b32.xlu0 %v1945, 48
      %v2103 = vpop.permute.xlu0 %2102
      %2104 = vrot.lane.b32.xlu0 %v1946, 48
      %v2105 = vpop.permute.xlu0 %2104
      %2106 = vrot.lane.b32.xlu0 %v1947, 48
      %v2107 = vpop.permute.xlu0 %2106
      %2108 = vrot.lane.b32.xlu0 %v1948, 48
      %v2109 = vpop.permute.xlu0 %2108
      %2110 = vrot.lane.b32.xlu0 %v1949, 48
      %v2111 = vpop.permute.xlu0 %2110
      %2112 = vrot.lane.b32.xlu0 %v1950, 48
      %v2113 = vpop.permute.xlu0 %2112
      %2114 = vrot.lane.b32.xlu0 %v1951, 48
      %v2115 = vpop.permute.xlu0 %2114
      %2116 = vrot.lane.b32.xlu0 %v1952, 48
      %v2117 = vpop.permute.xlu0 %2116
      %2118 = vrot.lane.b32.xlu0 %v1953, 48
      %v2119 = vpop.permute.xlu0 %2118
      %2120 = vrot.lane.b32.xlu0 %v1958, 48
      %v2121 = vpop.permute.xlu0 %2120
      %2122 = vrot.lane.b32.xlu0 %v1959, 48
      %v2123 = vpop.permute.xlu0 %2122
      %2124 = vrot.lane.b32.xlu0 %v1960, 48
      %v2125 = vpop.permute.xlu0 %2124
      %2126 = vrot.lane.b32.xlu0 %v1961, 48
      %v2127 = vpop.permute.xlu0 %2126
      %2128 = vrot.lane.b32.xlu0 %v1962, 48
      %v2129 = vpop.permute.xlu0 %2128
      %2130 = vrot.lane.b32.xlu0 %v1963, 48
      %v2131 = vpop.permute.xlu0 %2130
      %2132 = vrot.lane.b32.xlu0 %v1964, 48
      %v2133 = vpop.permute.xlu0 %2132
      %2134 = vrot.lane.b32.xlu0 %v1965, 48
      %v2135 = vpop.permute.xlu0 %2134
      %2136 = vrot.lane.b32.xlu0 %v1966, 48
      %v2137 = vpop.permute.xlu0 %2136
      %2138 = vrot.lane.b32.xlu0 %v1967, 48
      %v2139 = vpop.permute.xlu0 %2138
      %2140 = vrot.lane.b32.xlu0 %v1968, 48
      %v2141 = vpop.permute.xlu0 %2140
      %2142 = vrot.lane.b32.xlu0 %v1969, 48
      %v2143 = vpop.permute.xlu0 %2142
      %2144 = vrot.lane.b32.xlu0 %v1970, 48
      %v2145 = vpop.permute.xlu0 %2144
      %2146 = vrot.lane.b32.xlu0 %v1971, 48
      %v2147 = vpop.permute.xlu0 %2146
      %2148 = vrot.lane.b32.xlu0 %v1972, 48
      %v2149 = vpop.permute.xlu0 %2148
      %2150 = vrot.lane.b32.xlu0 %v1973, 48
      %v2151 = vpop.permute.xlu0 %2150
      %2152 = vrot.lane.b32.xlu0 %v1974, 48
      %v2153 = vpop.permute.xlu0 %2152
      %2154 = vrot.lane.b32.xlu0 %v1975, 48
      %v2155 = vpop.permute.xlu0 %2154
      %2156 = vrot.lane.b32.xlu0 %v1976, 48
      %v2157 = vpop.permute.xlu0 %2156
      %2158 = vrot.lane.b32.xlu0 %v1977, 48
      %v2159 = vpop.permute.xlu0 %2158
      %2160 = vrot.lane.b32.xlu0 %v1978, 48
      %v2161 = vpop.permute.xlu0 %2160
      %2162 = vrot.lane.b32.xlu0 %v1979, 48
      %v2163 = vpop.permute.xlu0 %2162
      %2164 = vrot.lane.b32.xlu0 %v1980, 48
      %v2165 = vpop.permute.xlu0 %2164
      %2166 = vrot.lane.b32.xlu0 %v1981, 48
      %v2167 = vpop.permute.xlu0 %2166
      %2168 = vrot.lane.b32.xlu0 %v1982, 48
      %v2169 = vpop.permute.xlu0 %2168
      %2170 = vrot.lane.b32.xlu0 %v1983, 48
      %v2171 = vpop.permute.xlu0 %2170
      %2172 = vrot.lane.b32.xlu0 %v1984, 48
      %v2173 = vpop.permute.xlu0 %2172
      %2174 = vrot.lane.b32.xlu0 %v1985, 48
      %v2175 = vpop.permute.xlu0 %2174
      %2176 = vrot.lane.b32.xlu0 %v1986, 48
      %v2177 = vpop.permute.xlu0 %2176
      %2178 = vrot.lane.b32.xlu0 %v1987, 48
      %v2179 = vpop.permute.xlu0 %2178
      %2180 = vrot.lane.b32.xlu0 %v1988, 48
      %v2181 = vpop.permute.xlu0 %2180
      %2182 = vrot.lane.b32.xlu0 %v1989, 48
      %v2183 = vpop.permute.xlu0 %2182
      %2252 = vrot.lane.b32.xlu0 %v1924, 96
      %v2253 = vpop.permute.xlu0 %2252
      %2254 = vrot.lane.b32.xlu0 %v1925, 96
      %v2255 = vpop.permute.xlu0 %2254
      %2256 = vrot.lane.b32.xlu0 %v1926, 96
      %v2257 = vpop.permute.xlu0 %2256
      %2258 = vrot.lane.b32.xlu0 %v1927, 96
      %v2259 = vpop.permute.xlu0 %2258
      %2260 = vrot.lane.b32.xlu0 %v1928, 96
      %v2261 = vpop.permute.xlu0 %2260
      %2262 = vrot.lane.b32.xlu0 %v1929, 96
      %v2263 = vpop.permute.xlu0 %2262
      %2264 = vrot.lane.b32.xlu0 %v1930, 96
      %v2265 = vpop.permute.xlu0 %2264
      %2266 = vrot.lane.b32.xlu0 %v1931, 96
      %v2267 = vpop.permute.xlu0 %2266
      %2268 = vrot.lane.b32.xlu0 %v1932, 96
      %v2269 = vpop.permute.xlu0 %2268
      %2270 = vrot.lane.b32.xlu0 %v1933, 96
      %v2271 = vpop.permute.xlu0 %2270
      %2272 = vrot.lane.b32.xlu0 %v1934, 96
      %v2273 = vpop.permute.xlu0 %2272
      %2274 = vrot.lane.b32.xlu0 %v1935, 96
      %v2275 = vpop.permute.xlu0 %2274
      %2276 = vrot.lane.b32.xlu0 %v1936, 96
      %v2277 = vpop.permute.xlu0 %2276
      %2278 = vrot.lane.b32.xlu0 %v1937, 96
      %v2279 = vpop.permute.xlu0 %2278
      %2280 = vrot.lane.b32.xlu0 %v1938, 96
      %v2281 = vpop.permute.xlu0 %2280
      %2282 = vrot.lane.b32.xlu0 %v1939, 96
      %v2283 = vpop.permute.xlu0 %2282
      %2284 = vrot.lane.b32.xlu0 %v1940, 96
      %v2285 = vpop.permute.xlu0 %2284
      %2286 = vrot.lane.b32.xlu0 %v1941, 96
      %v2287 = vpop.permute.xlu0 %2286
      %2288 = vrot.lane.b32.xlu0 %v1942, 96
      %v2289 = vpop.permute.xlu0 %2288
      %2290 = vrot.lane.b32.xlu0 %v1943, 96
      %v2291 = vpop.permute.xlu0 %2290
      %2292 = vrot.lane.b32.xlu0 %v1944, 96
      %v2293 = vpop.permute.xlu0 %2292
      %2294 = vrot.lane.b32.xlu0 %v1945, 96
      %v2295 = vpop.permute.xlu0 %2294
      %2296 = vrot.lane.b32.xlu0 %v1946, 96
      %v2297 = vpop.permute.xlu0 %2296
      %2298 = vrot.lane.b32.xlu0 %v1947, 96
      %v2299 = vpop.permute.xlu0 %2298
      %2300 = vrot.lane.b32.xlu0 %v1948, 96
      %v2301 = vpop.permute.xlu0 %2300
      %2302 = vrot.lane.b32.xlu0 %v1949, 96
      %v2303 = vpop.permute.xlu0 %2302
      %2304 = vrot.lane.b32.xlu0 %v1950, 96
      %v2305 = vpop.permute.xlu0 %2304
      %2306 = vrot.lane.b32.xlu0 %v1951, 96
      %v2307 = vpop.permute.xlu0 %2306
      %2308 = vrot.lane.b32.xlu0 %v1952, 96
      %v2309 = vpop.permute.xlu0 %2308
      %2310 = vrot.lane.b32.xlu0 %v1953, 96
      %v2311 = vpop.permute.xlu0 %2310
      %2312 = vrot.lane.b32.xlu0 %v1954, 96
      %v2313 = vpop.permute.xlu0 %2312
      %2314 = vrot.lane.b32.xlu0 %v1955, 96
      %v2315 = vpop.permute.xlu0 %2314
      %2316 = vrot.lane.b32.xlu0 %v1960, 96
      %v2317 = vpop.permute.xlu0 %2316
      %2318 = vrot.lane.b32.xlu0 %v1961, 96
      %v2319 = vpop.permute.xlu0 %2318
      %2320 = vrot.lane.b32.xlu0 %v1962, 96
      %v2321 = vpop.permute.xlu0 %2320
      %2322 = vrot.lane.b32.xlu0 %v1963, 96
      %v2323 = vpop.permute.xlu0 %2322
      %2324 = vrot.lane.b32.xlu0 %v1964, 96
      %v2325 = vpop.permute.xlu0 %2324
      %2326 = vrot.lane.b32.xlu0 %v1965, 96
      %v2327 = vpop.permute.xlu0 %2326
      %2328 = vrot.lane.b32.xlu0 %v1966, 96
      %v2329 = vpop.permute.xlu0 %2328
      %2330 = vrot.lane.b32.xlu0 %v1967, 96
      %v2331 = vpop.permute.xlu0 %2330
      %2332 = vrot.lane.b32.xlu0 %v1968, 96
      %v2333 = vpop.permute.xlu0 %2332
      %2334 = vrot.lane.b32.xlu0 %v1969, 96
      %v2335 = vpop.permute.xlu0 %2334
      %2336 = vrot.lane.b32.xlu0 %v1970, 96
      %v2337 = vpop.permute.xlu0 %2336
      %2338 = vrot.lane.b32.xlu0 %v1971, 96
      %v2339 = vpop.permute.xlu0 %2338
      %2340 = vrot.lane.b32.xlu0 %v1972, 96
      %v2341 = vpop.permute.xlu0 %2340
      %2342 = vrot.lane.b32.xlu0 %v1973, 96
      %v2343 = vpop.permute.xlu0 %2342
      %2344 = vrot.lane.b32.xlu0 %v1974, 96
      %v2345 = vpop.permute.xlu0 %2344
      %2346 = vrot.lane.b32.xlu0 %v1975, 96
      %v2347 = vpop.permute.xlu0 %2346
      %2348 = vrot.lane.b32.xlu0 %v1976, 96
      %v2349 = vpop.permute.xlu0 %2348
      %2350 = vrot.lane.b32.xlu0 %v1977, 96
      %v2351 = vpop.permute.xlu0 %2350
      %2352 = vrot.lane.b32.xlu0 %v1978, 96
      %v2353 = vpop.permute.xlu0 %2352
      %2354 = vrot.lane.b32.xlu0 %v1979, 96
      %v2355 = vpop.permute.xlu0 %2354
      %2356 = vrot.lane.b32.xlu0 %v1980, 96
      %v2357 = vpop.permute.xlu0 %2356
      %2358 = vrot.lane.b32.xlu0 %v1981, 96
      %v2359 = vpop.permute.xlu0 %2358
      %2360 = vrot.lane.b32.xlu0 %v1982, 96
      %v2361 = vpop.permute.xlu0 %2360
      %2362 = vrot.lane.b32.xlu0 %v1983, 96
      %v2363 = vpop.permute.xlu0 %2362
      %2364 = vrot.lane.b32.xlu0 %v1984, 96
      %v2365 = vpop.permute.xlu0 %2364
      %2366 = vrot.lane.b32.xlu0 %v1985, 96
      %v2367 = vpop.permute.xlu0 %2366
      %2368 = vrot.lane.b32.xlu0 %v1986, 96
      %v2369 = vpop.permute.xlu0 %2368
      %2370 = vrot.lane.b32.xlu0 %v1987, 96
      %v2371 = vpop.permute.xlu0 %2370
      %2372 = vrot.lane.b32.xlu0 %v1988, 96
      %v2373 = vpop.permute.xlu0 %2372
      %2374 = vrot.lane.b32.xlu0 %v1989, 96
      %v2375 = vpop.permute.xlu0 %2374
      %2376 = vrot.lane.b32.xlu0 %v1990, 96
      %v2377 = vpop.permute.xlu0 %2376
      %2378 = vrot.lane.b32.xlu0 %v1991, 96
      %v2379 = vpop.permute.xlu0 %2378
      %vm2444 = vcmask 392192
      %v2445 = vsel %vm2444, %v1920, %v2057
      %v2446 = vsel %vm2444, %v1921, %v2059
      %v2447 = vsel %vm2444, %v1922, %v2061
      %v2448 = vsel %vm2444, %v1923, %v2063
      %v2449 = vsel %vm2444, %v1924, %v2065
      %v2450 = vsel %vm2444, %v1925, %v2067
      %v2451 = vsel %vm2444, %v1926, %v2069
      %v2452 = vsel %vm2444, %v1927, %v2071
      %v2453 = vsel %vm2444, %v1928, %v2073
      %v2454 = vsel %vm2444, %v1929, %v2075
      %v2455 = vsel %vm2444, %v1930, %v2077
      %v2456 = vsel %vm2444, %v1931, %v2079
      %v2457 = vsel %vm2444, %v1932, %v2081
      %v2458 = vsel %vm2444, %v1933, %v2083
      %v2459 = vsel %vm2444, %v1934, %v2085
      %v2460 = vsel %vm2444, %v1935, %v2087
      %v2461 = vsel %vm2444, %v1936, %v2089
      %v2462 = vsel %vm2444, %v1937, %v2091
      %v2463 = vsel %vm2444, %v1938, %v2093
      %v2464 = vsel %vm2444, %v1939, %v2095
      %v2465 = vsel %vm2444, %v1940, %v2097
      %v2466 = vsel %vm2444, %v1941, %v2099
      %v2467 = vsel %vm2444, %v1942, %v2101
      %v2468 = vsel %vm2444, %v1943, %v2103
      %v2469 = vsel %vm2444, %v1944, %v2105
      %v2470 = vsel %vm2444, %v1945, %v2107
      %v2471 = vsel %vm2444, %v1946, %v2109
      %v2472 = vsel %vm2444, %v1947, %v2111
      %v2473 = vsel %vm2444, %v1948, %v2113
      %v2474 = vsel %vm2444, %v1949, %v2115
      %v2475 = vsel %vm2444, %v1950, %v2117
      %v2476 = vsel %vm2444, %v1951, %v2119
      %v2477 = vsel %vm2444, %v1956, %v2121
      %v2478 = vsel %vm2444, %v1957, %v2123
      %v2479 = vsel %vm2444, %v1958, %v2125
      %v2480 = vsel %vm2444, %v1959, %v2127
      %v2481 = vsel %vm2444, %v1960, %v2129
      %v2482 = vsel %vm2444, %v1961, %v2131
      %v2483 = vsel %vm2444, %v1962, %v2133
      %v2484 = vsel %vm2444, %v1963, %v2135
      %v2485 = vsel %vm2444, %v1964, %v2137
      %v2486 = vsel %vm2444, %v1965, %v2139
      %v2487 = vsel %vm2444, %v1966, %v2141
      %v2488 = vsel %vm2444, %v1967, %v2143
      %v2489 = vsel %vm2444, %v1968, %v2145
      %v2490 = vsel %vm2444, %v1969, %v2147
      %v2491 = vsel %vm2444, %v1970, %v2149
      %v2492 = vsel %vm2444, %v1971, %v2151
      %v2493 = vsel %vm2444, %v1972, %v2153
      %v2494 = vsel %vm2444, %v1973, %v2155
      %v2495 = vsel %vm2444, %v1974, %v2157
      %v2496 = vsel %vm2444, %v1975, %v2159
      %v2497 = vsel %vm2444, %v1976, %v2161
      %v2498 = vsel %vm2444, %v1977, %v2163
      %v2499 = vsel %vm2444, %v1978, %v2165
      %v2500 = vsel %vm2444, %v1979, %v2167
      %v2501 = vsel %vm2444, %v1980, %v2169
      %v2502 = vsel %vm2444, %v1981, %v2171
      %v2503 = vsel %vm2444, %v1982, %v2173
      %v2504 = vsel %vm2444, %v1983, %v2175
      %v2505 = vsel %vm2444, %v1984, %v2177
      %v2506 = vsel %vm2444, %v1985, %v2179
      %v2507 = vsel %vm2444, %v1986, %v2181
      %v2508 = vsel %vm2444, %v1987, %v2183
      %vm2509 = vcmask 785408
      %v2510 = vsel %vm2509, %v2445, %v2253
      %v2511 = vsel %vm2509, %v2446, %v2255
      %v2512 = vsel %vm2509, %v2447, %v2257
      %v2513 = vsel %vm2509, %v2448, %v2259
      %v2514 = vsel %vm2509, %v2449, %v2261
      %v2515 = vsel %vm2509, %v2450, %v2263
      %v2516 = vsel %vm2509, %v2451, %v2265
      %v2517 = vsel %vm2509, %v2452, %v2267
      %v2518 = vsel %vm2509, %v2453, %v2269
      %v2519 = vsel %vm2509, %v2454, %v2271
      %v2520 = vsel %vm2509, %v2455, %v2273
      %v2521 = vsel %vm2509, %v2456, %v2275
      %v2522 = vsel %vm2509, %v2457, %v2277
      %v2523 = vsel %vm2509, %v2458, %v2279
      %v2524 = vsel %vm2509, %v2459, %v2281
      %v2525 = vsel %vm2509, %v2460, %v2283
      %v2526 = vsel %vm2509, %v2461, %v2285
      %v2527 = vsel %vm2509, %v2462, %v2287
      %v2528 = vsel %vm2509, %v2463, %v2289
      %v2529 = vsel %vm2509, %v2464, %v2291
      %v2530 = vsel %vm2509, %v2465, %v2293
      %v2531 = vsel %vm2509, %v2466, %v2295
      %v2532 = vsel %vm2509, %v2467, %v2297
      %v2533 = vsel %vm2509, %v2468, %v2299
      %v2534 = vsel %vm2509, %v2469, %v2301
      %v2535 = vsel %vm2509, %v2470, %v2303
      %v2536 = vsel %vm2509, %v2471, %v2305
      %v2537 = vsel %vm2509, %v2472, %v2307
      %v2538 = vsel %vm2509, %v2473, %v2309
      %v2539 = vsel %vm2509, %v2474, %v2311
      %v2540 = vsel %vm2509, %v2475, %v2313
      %v2541 = vsel %vm2509, %v2476, %v2315
      %v2542 = vsel %vm2509, %v2477, %v2317
      %v2543 = vsel %vm2509, %v2478, %v2319
      %v2544 = vsel %vm2509, %v2479, %v2321
      %v2545 = vsel %vm2509, %v2480, %v2323
      %v2546 = vsel %vm2509, %v2481, %v2325
      %v2547 = vsel %vm2509, %v2482, %v2327
      %v2548 = vsel %vm2509, %v2483, %v2329
      %v2549 = vsel %vm2509, %v2484, %v2331
      %v2550 = vsel %vm2509, %v2485, %v2333
      %v2551 = vsel %vm2509, %v2486, %v2335
      %v2552 = vsel %vm2509, %v2487, %v2337
      %v2553 = vsel %vm2509, %v2488, %v2339
      %v2554 = vsel %vm2509, %v2489, %v2341
      %v2555 = vsel %vm2509, %v2490, %v2343
      %v2556 = vsel %vm2509, %v2491, %v2345
      %v2557 = vsel %vm2509, %v2492, %v2347
      %v2558 = vsel %vm2509, %v2493, %v2349
      %v2559 = vsel %vm2509, %v2494, %v2351
      %v2560 = vsel %vm2509, %v2495, %v2353
      %v2561 = vsel %vm2509, %v2496, %v2355
      %v2562 = vsel %vm2509, %v2497, %v2357
      %v2563 = vsel %vm2509, %v2498, %v2359
      %v2564 = vsel %vm2509, %v2499, %v2361
      %v2565 = vsel %vm2509, %v2500, %v2363
      %v2566 = vsel %vm2509, %v2501, %v2365
      %v2567 = vsel %vm2509, %v2502, %v2367
      %v2568 = vsel %vm2509, %v2503, %v2369
      %v2569 = vsel %vm2509, %v2504, %v2371
      %v2570 = vsel %vm2509, %v2505, %v2373
      %v2571 = vsel %vm2509, %v2506, %v2375
      %v2572 = vsel %vm2509, %v2507, %v2377
      %v2573 = vsel %vm2509, %v2508, %v2379
      %v2574 = vpack.c.bf16 %v2511, %v2510
      %v2575 = vpack.c.bf16 %v2255, %v2253
      %v2576 = vpack.c.bf16 %v2513, %v2512
      %v2577 = vpack.c.bf16 %v2259, %v2257
      %v2578 = vpack.c.bf16 %v2515, %v2514
      %v2579 = vpack.c.bf16 %v2263, %v2261
      %v2580 = vpack.c.bf16 %v2517, %v2516
      %v2581 = vpack.c.bf16 %v2267, %v2265
      %v2582 = vpack.c.bf16 %v2519, %v2518
      %v2583 = vpack.c.bf16 %v2271, %v2269
      %v2584 = vpack.c.bf16 %v2521, %v2520
      %v2585 = vpack.c.bf16 %v2275, %v2273
      %v2586 = vpack.c.bf16 %v2523, %v2522
      %v2587 = vpack.c.bf16 %v2279, %v2277
      %v2588 = vpack.c.bf16 %v2525, %v2524
      %v2589 = vpack.c.bf16 %v2283, %v2281
      %v2590 = vpack.c.bf16 %v2527, %v2526
      %v2591 = vpack.c.bf16 %v2287, %v2285
      %v2592 = vpack.c.bf16 %v2529, %v2528
      %v2593 = vpack.c.bf16 %v2291, %v2289
      %v2594 = vpack.c.bf16 %v2531, %v2530
      %v2595 = vpack.c.bf16 %v2295, %v2293
      %v2596 = vpack.c.bf16 %v2533, %v2532
      %v2597 = vpack.c.bf16 %v2299, %v2297
      %v2598 = vpack.c.bf16 %v2535, %v2534
      %v2599 = vpack.c.bf16 %v2303, %v2301
      %v2600 = vpack.c.bf16 %v2537, %v2536
      %v2601 = vpack.c.bf16 %v2307, %v2305
      %v2602 = vpack.c.bf16 %v2539, %v2538
      %v2603 = vpack.c.bf16 %v2311, %v2309
      %v2604 = vpack.c.bf16 %v2541, %v2540
      %v2605 = vpack.c.bf16 %v2315, %v2313
      %v2606 = vpack.c.bf16 %v2543, %v2542
      %v2607 = vpack.c.bf16 %v2319, %v2317
      %v2608 = vpack.c.bf16 %v2545, %v2544
      %v2609 = vpack.c.bf16 %v2323, %v2321
      %v2610 = vpack.c.bf16 %v2547, %v2546
      %v2611 = vpack.c.bf16 %v2327, %v2325
      %v2612 = vpack.c.bf16 %v2549, %v2548
      %v2613 = vpack.c.bf16 %v2331, %v2329
      %v2614 = vpack.c.bf16 %v2551, %v2550
      %v2615 = vpack.c.bf16 %v2335, %v2333
      %v2616 = vpack.c.bf16 %v2553, %v2552
      %v2617 = vpack.c.bf16 %v2339, %v2337
      %v2618 = vpack.c.bf16 %v2555, %v2554
      %v2619 = vpack.c.bf16 %v2343, %v2341
      %v2620 = vpack.c.bf16 %v2557, %v2556
      %v2621 = vpack.c.bf16 %v2347, %v2345
      %v2622 = vpack.c.bf16 %v2559, %v2558
      %v2623 = vpack.c.bf16 %v2351, %v2349
      %v2624 = vpack.c.bf16 %v2561, %v2560
      %v2625 = vpack.c.bf16 %v2355, %v2353
      %v2626 = vpack.c.bf16 %v2563, %v2562
      %v2627 = vpack.c.bf16 %v2359, %v2357
      %v2628 = vpack.c.bf16 %v2565, %v2564
      %v2629 = vpack.c.bf16 %v2363, %v2361
      %v2630 = vpack.c.bf16 %v2567, %v2566
      %v2631 = vpack.c.bf16 %v2367, %v2365
      %v2632 = vpack.c.bf16 %v2569, %v2568
      %v2633 = vpack.c.bf16 %v2371, %v2369
      %v2634 = vpack.c.bf16 %v2571, %v2570
      %v2635 = vpack.c.bf16 %v2375, %v2373
      %v2636 = vpack.c.bf16 %v2573, %v2572
      %v2637 = vpack.c.bf16 %v2379, %v2377
      %v2638 = vld [vmem:[%s3] sm:$0xf]
      %v2639 = vld [vmem:[%s3 + $0x4] sm:$0xf]
      %v2640 = vld [vmem:[%s3 + $0x8] sm:$0xf]
      %v2641 = vld [vmem:[%s3 + $0xc] sm:$0xf]
      %v2642 = vld [vmem:[%s3 + $0x10] sm:$0xf]
      %v2643 = vld [vmem:[%s3 + $0x14] sm:$0xf]
      %v2644 = vld [vmem:[%s3 + $0x18] sm:$0xf]
      %v2645 = vld [vmem:[%s3 + $0x1c] sm:$0xf]
      %v2646 = vld [vmem:[%s3 + $0x20] sm:$0xf]
      %v2647 = vld [vmem:[%s3 + $0x24] sm:$0xf]
      %v2648 = vld [vmem:[%s3 + $0x28] sm:$0xf]
      %v2649 = vld [vmem:[%s3 + $0x2c] sm:$0xf]
      %v2650 = vld [vmem:[%s3 + $0x30] sm:$0xf]
      %v2651 = vld [vmem:[%s3 + $0x34] sm:$0xf]
      %v2652 = vld [vmem:[%s3 + $0x38] sm:$0xf]
      %v2653 = vld [vmem:[%s3 + $0x3c] sm:$0xf]
      %v2654 = vld [vmem:[%s3 + $0x40] sm:$0xf]
      %v2655 = vld [vmem:[%s3 + $0x44] sm:$0xf]
      %v2656 = vld [vmem:[%s4] sm:$0x1]
      %v2658 = vlaneseq
      %v2659 = vshrl.u32 %v2658, 7
      %v2660 = vsub.s32 0, %v2659
      %v2661 = vrot.slane %v2656, %v2660
      %v2681 = vunpack.c.l.b16 %v2638
      %v2682 = vunpack.c.l.b16 %v2639
      %v2683 = vunpack.c.l.b16 %v2640
      %v2684 = vunpack.c.l.b16 %v2641
      %v2685 = vunpack.c.l.b16 %v2642
      %v2686 = vunpack.c.l.b16 %v2643
      %v2687 = vunpack.c.l.b16 %v2644
      %v2688 = vunpack.c.l.b16 %v2645
      %v2689 = vunpack.c.l.b16 %v2646
      %v2690 = vunpack.c.l.b16 %v2647
      %v2691 = vunpack.c.l.b16 %v2648
      %v2692 = vunpack.c.l.b16 %v2649
      %v2693 = vunpack.c.l.b16 %v2650
      %v2694 = vunpack.c.l.b16 %v2651
      %v2695 = vunpack.c.l.b16 %v2652
      %v2696 = vunpack.c.l.b16 %v2653
      %v2697 = vunpack.c.l.b16 %v2654
      %v2698 = vunpack.c.l.b16 %v2655
      %v2699 = vpack.c.b16 %v2682, %v2681
      %v2700 = vpack.c.b16 %v2684, %v2683
      %v2701 = vpack.c.b16 %v2686, %v2685
      %v2702 = vpack.c.b16 %v2688, %v2687
      %v2703 = vpack.c.b16 %v2690, %v2689
      %v2704 = vpack.c.b16 %v2692, %v2691
      %v2705 = vpack.c.b16 %v2694, %v2693
      %v2706 = vpack.c.b16 %v2696, %v2695
      %v2707 = vpack.c.b16 %v2698, %v2697
      %v2718 = vsel %vm910, %v2575, 0
      %v2721 = vsel %vm910, %v2577, 0
      %v2724 = vsel %vm910, %v2579, 0
      %v2727 = vsel %vm910, %v2581, 0
      %v2730 = vsel %vm910, %v2583, 0
      %v2733 = vsel %vm910, %v2585, 0
      %v2736 = vsel %vm910, %v2587, 0
      %v2739 = vsel %vm910, %v2589, 0
      %v2742 = vsel %vm910, %v2591, 0
      %v2745 = vsel %vm910, %v2593, 0
      %v2748 = vsel %vm910, %v2595, 0
      %v2751 = vsel %vm910, %v2597, 0
      %v2754 = vsel %vm910, %v2599, 0
      %v2757 = vsel %vm910, %v2601, 0
      %v2760 = vsel %vm910, %v2603, 0
      %v2763 = vsel %vm910, %v2605, 0
      %v2766 = vsel %vm910, %v2607, 0
      %v2769 = vsel %vm910, %v2609, 0
      %v2772 = vsel %vm910, %v2611, 0
      %v2775 = vsel %vm910, %v2613, 0
      %v2778 = vsel %vm910, %v2615, 0
      %v2781 = vsel %vm910, %v2617, 0
      %v2784 = vsel %vm910, %v2619, 0
      %v2787 = vsel %vm910, %v2621, 0
      %v2790 = vsel %vm910, %v2623, 0
      %v2793 = vsel %vm910, %v2625, 0
      %v2796 = vsel %vm910, %v2627, 0
      %v2799 = vsel %vm910, %v2629, 0
      %v2802 = vsel %vm910, %v2631, 0
      %v2805 = vsel %vm910, %v2633, 0
      %v2808 = vsel %vm910, %v2635, 0
      %v2811 = vsel %vm910, %v2637, 0
      %2813 = vmatprep.subr.bf16.mxu0 0
      %2814 = vmatpush1.bf16.msra.mxu0 %v2699
      %2815 = vmatprep.subr.bf16.mxu0 0
      %2816 = vmatpush1.bf16.msra.mxu0 %v2700
      %2817 = vmatprep.subr.bf16.mxu0 0
      %2818 = vmatpush1.bf16.msra.mxu0 %v2701
      %2819 = vmatprep.subr.bf16.mxu0 0
      %2820 = vmatpush1.bf16.msra.mxu0 %v2702
      %2821 = vmatprep.subr.bf16.mxu0 0
      %2822 = vmatpush1.bf16.msra.mxu0 %v2703
      %2823 = vmatprep.subr.bf16.mxu0 0
      %2824 = vmatpush1.bf16.msra.mxu0 %v2704
      %2825 = vmatprep.subr.bf16.mxu0 0
      %2826 = vmatpush1.bf16.msra.mxu0 %v2705
      %2827 = vmatprep.subr.bf16.mxu0 0
      %2828 = vmatpush1.bf16.msra.mxu0 %v2706
      %2829 = vmatprep.subr.bf16.mxu0 0
      %2830 = vmatpush1.bf16.msra.mxu0 %v2707
      %2831 = vmatprep.subr.bf16.mxu0 0
      %2832 = vmatpush1.bf16.msra.mxu0 0
      %2833 = vmatprep.subr.bf16.mxu0 0
      %2834 = vmatpush1.bf16.msra.mxu0 0
      %2835 = vmatprep.subr.bf16.mxu0 0
      %2836 = vmatpush1.bf16.msra.mxu0 0
      %2837 = vmatprep.subr.bf16.mxu0 0
      %2838 = vmatpush1.bf16.msra.mxu0 0
      %2839 = vmatprep.subr.bf16.mxu0 0
      %2840 = vmatpush1.bf16.msra.mxu0 0
      %2841 = vmatprep.subr.bf16.mxu0 0
      %2842 = vmatpush1.bf16.msra.mxu0 0
      %2843 = vmatprep.subr.bf16.mxu0 0
      %2844 = vmatpush1.bf16.msra.mxu0 0
      %2845 = vmatprep.mubr.bf16.mxu0 %v2718
      %2846 = vmatmul.mubr.bf16.gmra.mrb[0].mxu0 %v2574
      %v2847 = vpop.f32.mrb[0].mxu0
      %v2848 = vadd.f32 %v2661, %v2847
      %v2849 = vpop.f32.mrb[0].mxu0
      %v2850 = vpop.f32.mrb[0].mxu0
      %v2851 = vadd.f32 %v2661, %v2850
      %v2852 = vpop.f32.mrb[0].mxu0
      %2853 = vmatprep.mubr.bf16.mxu0 %v2721
      %2854 = vmatmul.mubr.bf16.gmra.mrb[0].mxu0 %v2576
      %v2855 = vpop.f32.mrb[0].mxu0
      %v2856 = vadd.f32 %v2661, %v2855
      %v2857 = vpop.f32.mrb[0].mxu0
      %v2858 = vpop.f32.mrb[0].mxu0
      %v2859 = vadd.f32 %v2661, %v2858
      %v2860 = vpop.f32.mrb[0].mxu0
      %2861 = vmatprep.mubr.bf16.mxu0 %v2724
      %2862 = vmatmul.mubr.bf16.gmra.mrb[0].mxu0 %v2578
      %v2863 = vpop.f32.mrb[0].mxu0
      %v2864 = vadd.f32 %v2661, %v2863
      %v2865 = vpop.f32.mrb[0].mxu0
      %v2866 = vpop.f32.mrb[0].mxu0
      %v2867 = vadd.f32 %v2661, %v2866
      %v2868 = vpop.f32.mrb[0].mxu0
      %2869 = vmatprep.mubr.bf16.mxu0 %v2727
      %2870 = vmatmul.mubr.bf16.gmra.mrb[0].mxu0 %v2580
      %v2871 = vpop.f32.mrb[0].mxu0
      %v2872 = vadd.f32 %v2661, %v2871
      %v2873 = vpop.f32.mrb[0].mxu0
      %v2874 = vpop.f32.mrb[0].mxu0
      %v2875 = vadd.f32 %v2661, %v2874
      %v2876 = vpop.f32.mrb[0].mxu0
      %2877 = vmatprep.mubr.bf16.mxu0 %v2730
      %2878 = vmatmul.mubr.bf16.gmra.mrb[0].mxu0 %v2582
      %v2879 = vpop.f32.mrb[0].mxu0
      %v2880 = vadd.f32 %v2661, %v2879
      %v2881 = vpop.f32.mrb[0].mxu0
      %v2882 = vpop.f32.mrb[0].mxu0
      %v2883 = vadd.f32 %v2661, %v2882
      %v2884 = vpop.f32.mrb[0].mxu0
      %2885 = vmatprep.mubr.bf16.mxu0 %v2733
      %2886 = vmatmul.mubr.bf16.gmra.mrb[0].mxu0 %v2584
      %v2887 = vpop.f32.mrb[0].mxu0
      %v2888 = vadd.f32 %v2661, %v2887
      %v2889 = vpop.f32.mrb[0].mxu0
      %v2890 = vpop.f32.mrb[0].mxu0
      %v2891 = vadd.f32 %v2661, %v2890
      %v2892 = vpop.f32.mrb[0].mxu0
      %2893 = vmatprep.mubr.bf16.mxu0 %v2736
      %2894 = vmatmul.mubr.bf16.gmra.mrb[0].mxu0 %v2586
      %v2895 = vpop.f32.mrb[0].mxu0
      %v2896 = vadd.f32 %v2661, %v2895
      %v2897 = vpop.f32.mrb[0].mxu0
      %v2898 = vpop.f32.mrb[0].mxu0
      %v2899 = vadd.f32 %v2661, %v2898
      %v2900 = vpop.f32.mrb[0].mxu0
      %2901 = vmatprep.mubr.bf16.mxu0 %v2739
      %2902 = vmatmul.mubr.bf16.gmra.mrb[0].mxu0 %v2588
      %v2903 = vpop.f32.mrb[0].mxu0
      %v2904 = vadd.f32 %v2661, %v2903
      %v2905 = vpop.f32.mrb[0].mxu0
      %v2906 = vpop.f32.mrb[0].mxu0
      %v2907 = vadd.f32 %v2661, %v2906
      %v2908 = vpop.f32.mrb[0].mxu0
      %2909 = vmatprep.mubr.bf16.mxu0 %v2742
      %2910 = vmatmul.mubr.bf16.gmra.mrb[0].mxu0 %v2590
      %v2911 = vpop.f32.mrb[0].mxu0
      %v2912 = vadd.f32 %v2661, %v2911
      %v2913 = vpop.f32.mrb[0].mxu0
      %v2914 = vpop.f32.mrb[0].mxu0
      %v2915 = vadd.f32 %v2661, %v2914
      %v2916 = vpop.f32.mrb[0].mxu0
      %2917 = vmatprep.mubr.bf16.mxu0 %v2745
      %2918 = vmatmul.mubr.bf16.gmra.mrb[0].mxu0 %v2592
      %v2919 = vpop.f32.mrb[0].mxu0
      %v2920 = vadd.f32 %v2661, %v2919
      %v2921 = vpop.f32.mrb[0].mxu0
      %v2922 = vpop.f32.mrb[0].mxu0
      %v2923 = vadd.f32 %v2661, %v2922
      %v2924 = vpop.f32.mrb[0].mxu0
      %2925 = vmatprep.mubr.bf16.mxu0 %v2748
      %2926 = vmatmul.mubr.bf16.gmra.mrb[0].mxu0 %v2594
      %v2927 = vpop.f32.mrb[0].mxu0
      %v2928 = vadd.f32 %v2661, %v2927
      %v2929 = vpop.f32.mrb[0].mxu0
      %v2930 = vpop.f32.mrb[0].mxu0
      %v2931 = vadd.f32 %v2661, %v2930
      %v2932 = vpop.f32.mrb[0].mxu0
      %2933 = vmatprep.mubr.bf16.mxu0 %v2751
      %2934 = vmatmul.mubr.bf16.gmra.mrb[0].mxu0 %v2596
      %v2935 = vpop.f32.mrb[0].mxu0
      %v2936 = vadd.f32 %v2661, %v2935
      %v2937 = vpop.f32.mrb[0].mxu0
      %v2938 = vpop.f32.mrb[0].mxu0
      %v2939 = vadd.f32 %v2661, %v2938
      %v2940 = vpop.f32.mrb[0].mxu0
      %2941 = vmatprep.mubr.bf16.mxu0 %v2754
      %2942 = vmatmul.mubr.bf16.gmra.mrb[0].mxu0 %v2598
      %v2943 = vpop.f32.mrb[0].mxu0
      %v2944 = vadd.f32 %v2661, %v2943
      %v2945 = vpop.f32.mrb[0].mxu0
      %v2946 = vpop.f32.mrb[0].mxu0
      %v2947 = vadd.f32 %v2661, %v2946
      %v2948 = vpop.f32.mrb[0].mxu0
      %2949 = vmatprep.mubr.bf16.mxu0 %v2757
      %2950 = vmatmul.mubr.bf16.gmra.mrb[0].mxu0 %v2600
      %v2951 = vpop.f32.mrb[0].mxu0
      %v2952 = vadd.f32 %v2661, %v2951
      %v2953 = vpop.f32.mrb[0].mxu0
      %v2954 = vpop.f32.mrb[0].mxu0
      %v2955 = vadd.f32 %v2661, %v2954
      %v2956 = vpop.f32.mrb[0].mxu0
      %2957 = vmatprep.mubr.bf16.mxu0 %v2760
      %2958 = vmatmul.mubr.bf16.gmra.mrb[0].mxu0 %v2602
      %v2959 = vpop.f32.mrb[0].mxu0
      %v2960 = vadd.f32 %v2661, %v2959
      %v2961 = vpop.f32.mrb[0].mxu0
      %v2962 = vpop.f32.mrb[0].mxu0
      %v2963 = vadd.f32 %v2661, %v2962
      %v2964 = vpop.f32.mrb[0].mxu0
      %2965 = vmatprep.mubr.bf16.mxu0 %v2763
      %2966 = vmatmul.mubr.bf16.gmra.mrb[0].mxu0 %v2604
      %v2967 = vpop.f32.mrb[0].mxu0
      %v2968 = vadd.f32 %v2661, %v2967
      %v2969 = vpop.f32.mrb[0].mxu0
      %v2970 = vpop.f32.mrb[0].mxu0
      %v2971 = vadd.f32 %v2661, %v2970
      %v2972 = vpop.f32.mrb[0].mxu0
      %2973 = vmatprep.mubr.bf16.mxu0 %v2766
      %2974 = vmatmul.mubr.bf16.gmra.mrb[0].mxu0 %v2606
      %v2975 = vpop.f32.mrb[0].mxu0
      %v2976 = vadd.f32 %v2661, %v2975
      %v2977 = vpop.f32.mrb[0].mxu0
      %v2978 = vpop.f32.mrb[0].mxu0
      %v2979 = vadd.f32 %v2661, %v2978
      %v2980 = vpop.f32.mrb[0].mxu0
      %2981 = vmatprep.mubr.bf16.mxu0 %v2769
      %2982 = vmatmul.mubr.bf16.gmra.mrb[0].mxu0 %v2608
      %v2983 = vpop.f32.mrb[0].mxu0
      %v2984 = vadd.f32 %v2661, %v2983
      %v2985 = vpop.f32.mrb[0].mxu0
      %v2986 = vpop.f32.mrb[0].mxu0
      %v2987 = vadd.f32 %v2661, %v2986
      %v2988 = vpop.f32.mrb[0].mxu0
      %2989 = vmatprep.mubr.bf16.mxu0 %v2772
      %2990 = vmatmul.mubr.bf16.gmra.mrb[0].mxu0 %v2610
      %v2991 = vpop.f32.mrb[0].mxu0
      %v2992 = vadd.f32 %v2661, %v2991
      %v2993 = vpop.f32.mrb[0].mxu0
      %v2994 = vpop.f32.mrb[0].mxu0
      %v2995 = vadd.f32 %v2661, %v2994
      %v2996 = vpop.f32.mrb[0].mxu0
      %2997 = vmatprep.mubr.bf16.mxu0 %v2775
      %2998 = vmatmul.mubr.bf16.gmra.mrb[0].mxu0 %v2612
      %v2999 = vpop.f32.mrb[0].mxu0
      %v3000 = vadd.f32 %v2661, %v2999
      %v3001 = vpop.f32.mrb[0].mxu0
      %v3002 = vpop.f32.mrb[0].mxu0
      %v3003 = vadd.f32 %v2661, %v3002
      %v3004 = vpop.f32.mrb[0].mxu0
      %3005 = vmatprep.mubr.bf16.mxu0 %v2778
      %3006 = vmatmul.mubr.bf16.gmra.mrb[0].mxu0 %v2614
      %v3007 = vpop.f32.mrb[0].mxu0
      %v3008 = vadd.f32 %v2661, %v3007
      %v3009 = vpop.f32.mrb[0].mxu0
      %v3010 = vpop.f32.mrb[0].mxu0
      %v3011 = vadd.f32 %v2661, %v3010
      %v3012 = vpop.f32.mrb[0].mxu0
      %3013 = vmatprep.mubr.bf16.mxu0 %v2781
      %3014 = vmatmul.mubr.bf16.gmra.mrb[0].mxu0 %v2616
      %v3015 = vpop.f32.mrb[0].mxu0
      %v3016 = vadd.f32 %v2661, %v3015
      %v3017 = vpop.f32.mrb[0].mxu0
      %v3018 = vpop.f32.mrb[0].mxu0
      %v3019 = vadd.f32 %v2661, %v3018
      %v3020 = vpop.f32.mrb[0].mxu0
      %3021 = vmatprep.mubr.bf16.mxu0 %v2784
      %3022 = vmatmul.mubr.bf16.gmra.mrb[0].mxu0 %v2618
      %v3023 = vpop.f32.mrb[0].mxu0
      %v3024 = vadd.f32 %v2661, %v3023
      %v3025 = vpop.f32.mrb[0].mxu0
      %v3026 = vpop.f32.mrb[0].mxu0
      %v3027 = vadd.f32 %v2661, %v3026
      %v3028 = vpop.f32.mrb[0].mxu0
      %3029 = vmatprep.mubr.bf16.mxu0 %v2787
      %3030 = vmatmul.mubr.bf16.gmra.mrb[0].mxu0 %v2620
      %v3031 = vpop.f32.mrb[0].mxu0
      %v3032 = vadd.f32 %v2661, %v3031
      %v3033 = vpop.f32.mrb[0].mxu0
      %v3034 = vpop.f32.mrb[0].mxu0
      %v3035 = vadd.f32 %v2661, %v3034
      %v3036 = vpop.f32.mrb[0].mxu0
      %3037 = vmatprep.mubr.bf16.mxu0 %v2790
      %3038 = vmatmul.mubr.bf16.gmra.mrb[0].mxu0 %v2622
      %v3039 = vpop.f32.mrb[0].mxu0
      %v3040 = vadd.f32 %v2661, %v3039
      %v3041 = vpop.f32.mrb[0].mxu0
      %v3042 = vpop.f32.mrb[0].mxu0
      %v3043 = vadd.f32 %v2661, %v3042
      %v3044 = vpop.f32.mrb[0].mxu0
      %3045 = vmatprep.mubr.bf16.mxu0 %v2793
      %3046 = vmatmul.mubr.bf16.gmra.mrb[0].mxu0 %v2624
      %v3047 = vpop.f32.mrb[0].mxu0
      %v3048 = vadd.f32 %v2661, %v3047
      %v3049 = vpop.f32.mrb[0].mxu0
      %v3050 = vpop.f32.mrb[0].mxu0
      %v3051 = vadd.f32 %v2661, %v3050
      %v3052 = vpop.f32.mrb[0].mxu0
      %3053 = vmatprep.mubr.bf16.mxu0 %v2796
      %3054 = vmatmul.mubr.bf16.gmra.mrb[0].mxu0 %v2626
      %v3055 = vpop.f32.mrb[0].mxu0
      %v3056 = vadd.f32 %v2661, %v3055
      %v3057 = vpop.f32.mrb[0].mxu0
      %v3058 = vpop.f32.mrb[0].mxu0
      %v3059 = vadd.f32 %v2661, %v3058
      %v3060 = vpop.f32.mrb[0].mxu0
      %3061 = vmatprep.mubr.bf16.mxu0 %v2799
      %3062 = vmatmul.mubr.bf16.gmra.mrb[0].mxu0 %v2628
      %v3063 = vpop.f32.mrb[0].mxu0
      %v3064 = vadd.f32 %v2661, %v3063
      %v3065 = vpop.f32.mrb[0].mxu0
      %v3066 = vpop.f32.mrb[0].mxu0
      %v3067 = vadd.f32 %v2661, %v3066
      %v3068 = vpop.f32.mrb[0].mxu0
      %3069 = vmatprep.mubr.bf16.mxu0 %v2802
      %3070 = vmatmul.mubr.bf16.gmra.mrb[0].mxu0 %v2630
      %v3071 = vpop.f32.mrb[0].mxu0
      %v3072 = vadd.f32 %v2661, %v3071
      %v3073 = vpop.f32.mrb[0].mxu0
      %v3074 = vpop.f32.mrb[0].mxu0
      %v3075 = vadd.f32 %v2661, %v3074
      %v3076 = vpop.f32.mrb[0].mxu0
      %3077 = vmatprep.mubr.bf16.mxu0 %v2805
      %3078 = vmatmul.mubr.bf16.gmra.mrb[0].mxu0 %v2632
      %v3079 = vpop.f32.mrb[0].mxu0
      %v3080 = vadd.f32 %v2661, %v3079
      %v3081 = vpop.f32.mrb[0].mxu0
      %v3082 = vpop.f32.mrb[0].mxu0
      %v3083 = vadd.f32 %v2661, %v3082
      %v3084 = vpop.f32.mrb[0].mxu0
      %3085 = vmatprep.mubr.bf16.mxu0 %v2808
      %3086 = vmatmul.mubr.bf16.gmra.mrb[0].mxu0 %v2634
      %v3087 = vpop.f32.mrb[0].mxu0
      %v3088 = vadd.f32 %v2661, %v3087
      %v3089 = vpop.f32.mrb[0].mxu0
      %v3090 = vpop.f32.mrb[0].mxu0
      %v3091 = vadd.f32 %v2661, %v3090
      %v3092 = vpop.f32.mrb[0].mxu0
      %3093 = vmatprep.mubr.bf16.mxu0 %v2811
      %3094 = vmatmul.mubr.bf16.gmra.mrb[0].mxu0 %v2636
      %v3095 = vpop.f32.mrb[0].mxu0
      %v3096 = vadd.f32 %v2661, %v3095
      %v3097 = vpop.f32.mrb[0].mxu0
      %v3098 = vpop.f32.mrb[0].mxu0
      %v3099 = vadd.f32 %v2661, %v3098
      %v3100 = vpop.f32.mrb[0].mxu0
      %3101 = vdwg.mxu0
      %v3102 = vmul.f32 %v2848, 0.5
      %v3103 = vmul.f32 %v2851, 0.5
      %v3104 = vmul.f32 %v2856, 0.5
      %v3105 = vmul.f32 %v2859, 0.5
      %v3106 = vmul.f32 %v2864, 0.5
      %v3107 = vmul.f32 %v2867, 0.5
      %v3108 = vmul.f32 %v2872, 0.5
      %v3109 = vmul.f32 %v2875, 0.5
      %v3110 = vmul.f32 %v2880, 0.5
      %v3111 = vmul.f32 %v2883, 0.5
      %v3112 = vmul.f32 %v2888, 0.5
      %v3113 = vmul.f32 %v2891, 0.5
      %v3114 = vmul.f32 %v2896, 0.5
      %v3115 = vmul.f32 %v2899, 0.5
      %v3116 = vmul.f32 %v2904, 0.5
      %v3117 = vmul.f32 %v2907, 0.5
      %v3118 = vmul.f32 %v2912, 0.5
      %v3119 = vmul.f32 %v2915, 0.5
      %v3120 = vmul.f32 %v2920, 0.5
      %v3121 = vmul.f32 %v2923, 0.5
      %v3122 = vmul.f32 %v2928, 0.5
      %v3123 = vmul.f32 %v2931, 0.5
      %v3124 = vmul.f32 %v2936, 0.5
      %v3125 = vmul.f32 %v2939, 0.5
      %v3126 = vmul.f32 %v2944, 0.5
      %v3127 = vmul.f32 %v2947, 0.5
      %v3128 = vmul.f32 %v2952, 0.5
      %v3129 = vmul.f32 %v2955, 0.5
      %v3130 = vmul.f32 %v2960, 0.5
      %v3131 = vmul.f32 %v2963, 0.5
      %v3132 = vmul.f32 %v2968, 0.5
      %v3133 = vmul.f32 %v2971, 0.5
      %v3134 = vmul.f32 %v2976, 0.5
      %v3135 = vmul.f32 %v2979, 0.5
      %v3136 = vmul.f32 %v2984, 0.5
      %v3137 = vmul.f32 %v2987, 0.5
      %v3138 = vmul.f32 %v2992, 0.5
      %v3139 = vmul.f32 %v2995, 0.5
      %v3140 = vmul.f32 %v3000, 0.5
      %v3141 = vmul.f32 %v3003, 0.5
      %v3142 = vmul.f32 %v3008, 0.5
      %v3143 = vmul.f32 %v3011, 0.5
      %v3144 = vmul.f32 %v3016, 0.5
      %v3145 = vmul.f32 %v3019, 0.5
      %v3146 = vmul.f32 %v3024, 0.5
      %v3147 = vmul.f32 %v3027, 0.5
      %v3148 = vmul.f32 %v3032, 0.5
      %v3149 = vmul.f32 %v3035, 0.5
      %v3150 = vmul.f32 %v3040, 0.5
      %v3151 = vmul.f32 %v3043, 0.5
      %v3152 = vmul.f32 %v3048, 0.5
      %v3153 = vmul.f32 %v3051, 0.5
      %v3154 = vmul.f32 %v3056, 0.5
      %v3155 = vmul.f32 %v3059, 0.5
      %v3156 = vmul.f32 %v3064, 0.5
      %v3157 = vmul.f32 %v3067, 0.5
      %v3158 = vmul.f32 %v3072, 0.5
      %v3159 = vmul.f32 %v3075, 0.5
      %v3160 = vmul.f32 %v3080, 0.5
      %v3161 = vmul.f32 %v3083, 0.5
      %v3162 = vmul.f32 %v3088, 0.5
      %v3163 = vmul.f32 %v3091, 0.5
      %v3164 = vmul.f32 %v3096, 0.5
      %v3165 = vmul.f32 %v3099, 0.5
      %v3166 = vmul.f32 %v2848, 0.70710677
      %v3167 = vmul.f32 %v2851, 0.70710677
      %v3168 = vmul.f32 %v2856, 0.70710677
      %v3169 = vmul.f32 %v2859, 0.70710677
      %v3170 = vmul.f32 %v2864, 0.70710677
      %v3171 = vmul.f32 %v2867, 0.70710677
      %v3172 = vmul.f32 %v2872, 0.70710677
      %v3173 = vmul.f32 %v2875, 0.70710677
      %v3174 = vmul.f32 %v2880, 0.70710677
      %v3175 = vmul.f32 %v2883, 0.70710677
      %v3176 = vmul.f32 %v2888, 0.70710677
      %v3177 = vmul.f32 %v2891, 0.70710677
      %v3178 = vmul.f32 %v2896, 0.70710677
      %v3179 = vmul.f32 %v2899, 0.70710677
      %v3180 = vmul.f32 %v2904, 0.70710677
      %v3181 = vmul.f32 %v2907, 0.70710677
      %v3182 = vmul.f32 %v2912, 0.70710677
      %v3183 = vmul.f32 %v2915, 0.70710677
      %v3184 = vmul.f32 %v2920, 0.70710677
      %v3185 = vmul.f32 %v2923, 0.70710677
      %v3186 = vmul.f32 %v2928, 0.70710677
      %v3187 = vmul.f32 %v2931, 0.70710677
      %v3188 = vmul.f32 %v2936, 0.70710677
      %v3189 = vmul.f32 %v2939, 0.70710677
      %v3190 = vmul.f32 %v2944, 0.70710677
      %v3191 = vmul.f32 %v2947, 0.70710677
      %v3192 = vmul.f32 %v2952, 0.70710677
      %v3193 = vmul.f32 %v2955, 0.70710677
      %v3194 = vmul.f32 %v2960, 0.70710677
      %v3195 = vmul.f32 %v2963, 0.70710677
      %v3196 = vmul.f32 %v2968, 0.70710677
      %v3197 = vmul.f32 %v2971, 0.70710677
      %v3198 = vmul.f32 %v2976, 0.70710677
      %v3199 = vmul.f32 %v2979, 0.70710677
      %v3200 = vmul.f32 %v2984, 0.70710677
      %v3201 = vmul.f32 %v2987, 0.70710677
      %v3202 = vmul.f32 %v2992, 0.70710677
      %v3203 = vmul.f32 %v2995, 0.70710677
      %v3204 = vmul.f32 %v3000, 0.70710677
      %v3205 = vmul.f32 %v3003, 0.70710677
      %v3206 = vmul.f32 %v3008, 0.70710677
      %v3207 = vmul.f32 %v3011, 0.70710677
      %v3208 = vmul.f32 %v3016, 0.70710677
      %v3209 = vmul.f32 %v3019, 0.70710677
      %v3210 = vmul.f32 %v3024, 0.70710677
      %v3211 = vmul.f32 %v3027, 0.70710677
      %v3212 = vmul.f32 %v3032, 0.70710677
      %v3213 = vmul.f32 %v3035, 0.70710677
      %v3214 = vmul.f32 %v3040, 0.70710677
      %v3215 = vmul.f32 %v3043, 0.70710677
      %v3216 = vmul.f32 %v3048, 0.70710677
      %v3217 = vmul.f32 %v3051, 0.70710677
      %v3218 = vmul.f32 %v3056, 0.70710677
      %v3219 = vmul.f32 %v3059, 0.70710677
      %v3220 = vmul.f32 %v3064, 0.70710677
      %v3221 = vmul.f32 %v3067, 0.70710677
      %v3222 = vmul.f32 %v3072, 0.70710677
      %v3223 = vmul.f32 %v3075, 0.70710677
      %v3224 = vmul.f32 %v3080, 0.70710677
      %v3225 = vmul.f32 %v3083, 0.70710677
      %v3226 = vmul.f32 %v3088, 0.70710677
      %v3227 = vmul.f32 %v3091, 0.70710677
      %v3228 = vmul.f32 %v3096, 0.70710677
      %v3229 = vmul.f32 %v3099, 0.70710677
      %v3230 = vand.u32 2147483647, %v3166
      %v3231 = vand.u32 2147483647, %v3167
      %v3232 = vand.u32 2147483647, %v3168
      %v3233 = vand.u32 2147483647, %v3169
      %v3234 = vand.u32 2147483647, %v3170
      %v3235 = vand.u32 2147483647, %v3171
      %v3236 = vand.u32 2147483647, %v3172
      %v3237 = vand.u32 2147483647, %v3173
      %v3238 = vand.u32 2147483647, %v3174
      %v3239 = vand.u32 2147483647, %v3175
      %v3240 = vand.u32 2147483647, %v3176
      %v3241 = vand.u32 2147483647, %v3177
      %v3242 = vand.u32 2147483647, %v3178
      %v3243 = vand.u32 2147483647, %v3179
      %v3244 = vand.u32 2147483647, %v3180
      %v3245 = vand.u32 2147483647, %v3181
      %v3246 = vand.u32 2147483647, %v3182
      %v3247 = vand.u32 2147483647, %v3183
      %v3248 = vand.u32 2147483647, %v3184
      %v3249 = vand.u32 2147483647, %v3185
      %v3250 = vand.u32 2147483647, %v3186
      %v3251 = vand.u32 2147483647, %v3187
      %v3252 = vand.u32 2147483647, %v3188
      %v3253 = vand.u32 2147483647, %v3189
      %v3254 = vand.u32 2147483647, %v3190
      %v3255 = vand.u32 2147483647, %v3191
      %v3256 = vand.u32 2147483647, %v3192
      %v3257 = vand.u32 2147483647, %v3193
      %v3258 = vand.u32 2147483647, %v3194
      %v3259 = vand.u32 2147483647, %v3195
      %v3260 = vand.u32 2147483647, %v3196
      %v3261 = vand.u32 2147483647, %v3197
      %v3262 = vand.u32 2147483647, %v3198
      %v3263 = vand.u32 2147483647, %v3199
      %v3264 = vand.u32 2147483647, %v3200
      %v3265 = vand.u32 2147483647, %v3201
      %v3266 = vand.u32 2147483647, %v3202
      %v3267 = vand.u32 2147483647, %v3203
      %v3268 = vand.u32 2147483647, %v3204
      %v3269 = vand.u32 2147483647, %v3205
      %v3270 = vand.u32 2147483647, %v3206
      %v3271 = vand.u32 2147483647, %v3207
      %v3272 = vand.u32 2147483647, %v3208
      %v3273 = vand.u32 2147483647, %v3209
      %v3274 = vand.u32 2147483647, %v3210
      %v3275 = vand.u32 2147483647, %v3211
      %v3276 = vand.u32 2147483647, %v3212
      %v3277 = vand.u32 2147483647, %v3213
      %v3278 = vand.u32 2147483647, %v3214
      %v3279 = vand.u32 2147483647, %v3215
      %v3280 = vand.u32 2147483647, %v3216
      %v3281 = vand.u32 2147483647, %v3217
      %v3282 = vand.u32 2147483647, %v3218
      %v3283 = vand.u32 2147483647, %v3219
      %v3284 = vand.u32 2147483647, %v3220
      %v3285 = vand.u32 2147483647, %v3221
      %v3286 = vand.u32 2147483647, %v3222
      %v3287 = vand.u32 2147483647, %v3223
      %v3288 = vand.u32 2147483647, %v3224
      %v3289 = vand.u32 2147483647, %v3225
      %v3290 = vand.u32 2147483647, %v3226
      %v3291 = vand.u32 2147483647, %v3227
      %v3292 = vand.u32 2147483647, %v3228
      %v3293 = vand.u32 2147483647, %v3229
      %v3294 = vmul.f32 %v3230, 0.3275911
      %v3295 = vmul.f32 %v3231, 0.3275911
      %v3296 = vmul.f32 %v3232, 0.3275911
      %v3297 = vmul.f32 %v3233, 0.3275911
      %v3298 = vmul.f32 %v3234, 0.3275911
      %v3299 = vmul.f32 %v3235, 0.3275911
      %v3300 = vmul.f32 %v3236, 0.3275911
      %v3301 = vmul.f32 %v3237, 0.3275911
      %v3302 = vmul.f32 %v3238, 0.3275911
      %v3303 = vmul.f32 %v3239, 0.3275911
      %v3304 = vmul.f32 %v3240, 0.3275911
      %v3305 = vmul.f32 %v3241, 0.3275911
      %v3306 = vmul.f32 %v3242, 0.3275911
      %v3307 = vmul.f32 %v3243, 0.3275911
      %v3308 = vmul.f32 %v3244, 0.3275911
      %v3309 = vmul.f32 %v3245, 0.3275911
      %v3310 = vmul.f32 %v3246, 0.3275911
      %v3311 = vmul.f32 %v3247, 0.3275911
      %v3312 = vmul.f32 %v3248, 0.3275911
      %v3313 = vmul.f32 %v3249, 0.3275911
      %v3314 = vmul.f32 %v3250, 0.3275911
      %v3315 = vmul.f32 %v3251, 0.3275911
      %v3316 = vmul.f32 %v3252, 0.3275911
      %v3317 = vmul.f32 %v3253, 0.3275911
      %v3318 = vmul.f32 %v3254, 0.3275911
      %v3319 = vmul.f32 %v3255, 0.3275911
      %v3320 = vmul.f32 %v3256, 0.3275911
      %v3321 = vmul.f32 %v3257, 0.3275911
      %v3322 = vmul.f32 %v3258, 0.3275911
      %v3323 = vmul.f32 %v3259, 0.3275911
      %v3324 = vmul.f32 %v3260, 0.3275911
      %v3325 = vmul.f32 %v3261, 0.3275911
      %v3326 = vmul.f32 %v3262, 0.3275911
      %v3327 = vmul.f32 %v3263, 0.3275911
      %v3328 = vmul.f32 %v3264, 0.3275911
      %v3329 = vmul.f32 %v3265, 0.3275911
      %v3330 = vmul.f32 %v3266, 0.3275911
      %v3331 = vmul.f32 %v3267, 0.3275911
      %v3332 = vmul.f32 %v3268, 0.3275911
      %v3333 = vmul.f32 %v3269, 0.3275911
      %v3334 = vmul.f32 %v3270, 0.3275911
      %v3335 = vmul.f32 %v3271, 0.3275911
      %v3336 = vmul.f32 %v3272, 0.3275911
      %v3337 = vmul.f32 %v3273, 0.3275911
      %v3338 = vmul.f32 %v3274, 0.3275911
      %v3339 = vmul.f32 %v3275, 0.3275911
      %v3340 = vmul.f32 %v3276, 0.3275911
      %v3341 = vmul.f32 %v3277, 0.3275911
      %v3342 = vmul.f32 %v3278, 0.3275911
      %v3343 = vmul.f32 %v3279, 0.3275911
      %v3344 = vmul.f32 %v3280, 0.3275911
      %v3345 = vmul.f32 %v3281, 0.3275911
      %v3346 = vmul.f32 %v3282, 0.3275911
      %v3347 = vmul.f32 %v3283, 0.3275911
      %v3348 = vmul.f32 %v3284, 0.3275911
      %v3349 = vmul.f32 %v3285, 0.3275911
      %v3350 = vmul.f32 %v3286, 0.3275911
      %v3351 = vmul.f32 %v3287, 0.3275911
      %v3352 = vmul.f32 %v3288, 0.3275911
      %v3353 = vmul.f32 %v3289, 0.3275911
      %v3354 = vmul.f32 %v3290, 0.3275911
      %v3355 = vmul.f32 %v3291, 0.3275911
      %v3356 = vmul.f32 %v3292, 0.3275911
      %v3357 = vmul.f32 %v3293, 0.3275911
      %v3358 = vadd.f32 %v3294, 1.0
      %v3359 = vadd.f32 %v3295, 1.0
      %v3360 = vadd.f32 %v3296, 1.0
      %v3361 = vadd.f32 %v3297, 1.0
      %v3362 = vadd.f32 %v3298, 1.0
      %v3363 = vadd.f32 %v3299, 1.0
      %v3364 = vadd.f32 %v3300, 1.0
      %v3365 = vadd.f32 %v3301, 1.0
      %v3366 = vadd.f32 %v3302, 1.0
      %v3367 = vadd.f32 %v3303, 1.0
      %v3368 = vadd.f32 %v3304, 1.0
      %v3369 = vadd.f32 %v3305, 1.0
      %v3370 = vadd.f32 %v3306, 1.0
      %v3371 = vadd.f32 %v3307, 1.0
      %v3372 = vadd.f32 %v3308, 1.0
      %v3373 = vadd.f32 %v3309, 1.0
      %v3374 = vadd.f32 %v3310, 1.0
      %v3375 = vadd.f32 %v3311, 1.0
      %v3376 = vadd.f32 %v3312, 1.0
      %v3377 = vadd.f32 %v3313, 1.0
      %v3378 = vadd.f32 %v3314, 1.0
      %v3379 = vadd.f32 %v3315, 1.0
      %v3380 = vadd.f32 %v3316, 1.0
      %v3381 = vadd.f32 %v3317, 1.0
      %v3382 = vadd.f32 %v3318, 1.0
      %v3383 = vadd.f32 %v3319, 1.0
      %v3384 = vadd.f32 %v3320, 1.0
      %v3385 = vadd.f32 %v3321, 1.0
      %v3386 = vadd.f32 %v3322, 1.0
      %v3387 = vadd.f32 %v3323, 1.0
      %v3388 = vadd.f32 %v3324, 1.0
      %v3389 = vadd.f32 %v3325, 1.0
      %v3390 = vadd.f32 %v3326, 1.0
      %v3391 = vadd.f32 %v3327, 1.0
      %v3392 = vadd.f32 %v3328, 1.0
      %v3393 = vadd.f32 %v3329, 1.0
      %v3394 = vadd.f32 %v3330, 1.0
      %v3395 = vadd.f32 %v3331, 1.0
      %v3396 = vadd.f32 %v3332, 1.0
      %v3397 = vadd.f32 %v3333, 1.0
      %v3398 = vadd.f32 %v3334, 1.0
      %v3399 = vadd.f32 %v3335, 1.0
      %v3400 = vadd.f32 %v3336, 1.0
      %v3401 = vadd.f32 %v3337, 1.0
      %v3402 = vadd.f32 %v3338, 1.0
      %v3403 = vadd.f32 %v3339, 1.0
      %v3404 = vadd.f32 %v3340, 1.0
      %v3405 = vadd.f32 %v3341, 1.0
      %v3406 = vadd.f32 %v3342, 1.0
      %v3407 = vadd.f32 %v3343, 1.0
      %v3408 = vadd.f32 %v3344, 1.0
      %v3409 = vadd.f32 %v3345, 1.0
      %v3410 = vadd.f32 %v3346, 1.0
      %v3411 = vadd.f32 %v3347, 1.0
      %v3412 = vadd.f32 %v3348, 1.0
      %v3413 = vadd.f32 %v3349, 1.0
      %v3414 = vadd.f32 %v3350, 1.0
      %v3415 = vadd.f32 %v3351, 1.0
      %v3416 = vadd.f32 %v3352, 1.0
      %v3417 = vadd.f32 %v3353, 1.0
      %v3418 = vadd.f32 %v3354, 1.0
      %v3419 = vadd.f32 %v3355, 1.0
      %v3420 = vadd.f32 %v3356, 1.0
      %v3421 = vadd.f32 %v3357, 1.0
      %v3422 = vrcp.pop %v3358
      %v3423 = vrcp.pop %v3359
      %v3424 = vrcp.pop %v3360
      %v3425 = vrcp.pop %v3361
      %v3426 = vrcp.pop %v3362
      %v3427 = vrcp.pop %v3363
      %v3428 = vrcp.pop %v3364
      %v3429 = vrcp.pop %v3365
      %v3430 = vrcp.pop %v3366
      %v3431 = vrcp.pop %v3367
      %v3432 = vrcp.pop %v3368
      %v3433 = vrcp.pop %v3369
      %v3434 = vrcp.pop %v3370
      %v3435 = vrcp.pop %v3371
      %v3436 = vrcp.pop %v3372
      %v3437 = vrcp.pop %v3373
      %v3438 = vrcp.pop %v3374
      %v3439 = vrcp.pop %v3375
      %v3440 = vrcp.pop %v3376
      %v3441 = vrcp.pop %v3377
      %v3442 = vrcp.pop %v3378
      %v3443 = vrcp.pop %v3379
      %v3444 = vrcp.pop %v3380
      %v3445 = vrcp.pop %v3381
      %v3446 = vrcp.pop %v3382
      %v3447 = vrcp.pop %v3383
      %v3448 = vrcp.pop %v3384
      %v3449 = vrcp.pop %v3385
      %v3450 = vrcp.pop %v3386
      %v3451 = vrcp.pop %v3387
      %v3452 = vrcp.pop %v3388
      %v3453 = vrcp.pop %v3389
      %v3454 = vrcp.pop %v3390
      %v3455 = vrcp.pop %v3391
      %v3456 = vrcp.pop %v3392
      %v3457 = vrcp.pop %v3393
      %v3458 = vrcp.pop %v3394
      %v3459 = vrcp.pop %v3395
      %v3460 = vrcp.pop %v3396
      %v3461 = vrcp.pop %v3397
      %v3462 = vrcp.pop %v3398
      %v3463 = vrcp.pop %v3399
      %v3464 = vrcp.pop %v3400
      %v3465 = vrcp.pop %v3401
      %v3466 = vrcp.pop %v3402
      %v3467 = vrcp.pop %v3403
      %v3468 = vrcp.pop %v3404
      %v3469 = vrcp.pop %v3405
      %v3470 = vrcp.pop %v3406
      %v3471 = vrcp.pop %v3407
      %v3472 = vrcp.pop %v3408
      %v3473 = vrcp.pop %v3409
      %v3474 = vrcp.pop %v3410
      %v3475 = vrcp.pop %v3411
      %v3476 = vrcp.pop %v3412
      %v3477 = vrcp.pop %v3413
      %v3478 = vrcp.pop %v3414
      %v3479 = vrcp.pop %v3415
      %v3480 = vrcp.pop %v3416
      %v3481 = vrcp.pop %v3417
      %v3482 = vrcp.pop %v3418
      %v3483 = vrcp.pop %v3419
      %v3484 = vrcp.pop %v3420
      %v3485 = vrcp.pop %v3421
      %v3486 = vmul.f32 %v3422, 1.0614054
      %v3487 = vmul.f32 %v3423, 1.0614054
      %v3488 = vmul.f32 %v3424, 1.0614054
      %v3489 = vmul.f32 %v3425, 1.0614054
      %v3490 = vmul.f32 %v3426, 1.0614054
      %v3491 = vmul.f32 %v3427, 1.0614054
      %v3492 = vmul.f32 %v3428, 1.0614054
      %v3493 = vmul.f32 %v3429, 1.0614054
      %v3494 = vmul.f32 %v3430, 1.0614054
      %v3495 = vmul.f32 %v3431, 1.0614054
      %v3496 = vmul.f32 %v3432, 1.0614054
      %v3497 = vmul.f32 %v3433, 1.0614054
      %v3498 = vmul.f32 %v3434, 1.0614054
      %v3499 = vmul.f32 %v3435, 1.0614054
      %v3500 = vmul.f32 %v3436, 1.0614054
      %v3501 = vmul.f32 %v3437, 1.0614054
      %v3502 = vmul.f32 %v3438, 1.0614054
      %v3503 = vmul.f32 %v3439, 1.0614054
      %v3504 = vmul.f32 %v3440, 1.0614054
      %v3505 = vmul.f32 %v3441, 1.0614054
      %v3506 = vmul.f32 %v3442, 1.0614054
      %v3507 = vmul.f32 %v3443, 1.0614054
      %v3508 = vmul.f32 %v3444, 1.0614054
      %v3509 = vmul.f32 %v3445, 1.0614054
      %v3510 = vmul.f32 %v3446, 1.0614054
      %v3511 = vmul.f32 %v3447, 1.0614054
      %v3512 = vmul.f32 %v3448, 1.0614054
      %v3513 = vmul.f32 %v3449, 1.0614054
      %v3514 = vmul.f32 %v3450, 1.0614054
      %v3515 = vmul.f32 %v3451, 1.0614054
      %v3516 = vmul.f32 %v3452, 1.0614054
      %v3517 = vmul.f32 %v3453, 1.0614054
      %v3518 = vmul.f32 %v3454, 1.0614054
      %v3519 = vmul.f32 %v3455, 1.0614054
      %v3520 = vmul.f32 %v3456, 1.0614054
      %v3521 = vmul.f32 %v3457, 1.0614054
      %v3522 = vmul.f32 %v3458, 1.0614054
      %v3523 = vmul.f32 %v3459, 1.0614054
      %v3524 = vmul.f32 %v3460, 1.0614054
      %v3525 = vmul.f32 %v3461, 1.0614054
      %v3526 = vmul.f32 %v3462, 1.0614054
      %v3527 = vmul.f32 %v3463, 1.0614054
      %v3528 = vmul.f32 %v3464, 1.0614054
      %v3529 = vmul.f32 %v3465, 1.0614054
      %v3530 = vmul.f32 %v3466, 1.0614054
      %v3531 = vmul.f32 %v3467, 1.0614054
      %v3532 = vmul.f32 %v3468, 1.0614054
      %v3533 = vmul.f32 %v3469, 1.0614054
      %v3534 = vmul.f32 %v3470, 1.0614054
      %v3535 = vmul.f32 %v3471, 1.0614054
      %v3536 = vmul.f32 %v3472, 1.0614054
      %v3537 = vmul.f32 %v3473, 1.0614054
      %v3538 = vmul.f32 %v3474, 1.0614054
      %v3539 = vmul.f32 %v3475, 1.0614054
      %v3540 = vmul.f32 %v3476, 1.0614054
      %v3541 = vmul.f32 %v3477, 1.0614054
      %v3542 = vmul.f32 %v3478, 1.0614054
      %v3543 = vmul.f32 %v3479, 1.0614054
      %v3544 = vmul.f32 %v3480, 1.0614054
      %v3545 = vmul.f32 %v3481, 1.0614054
      %v3546 = vmul.f32 %v3482, 1.0614054
      %v3547 = vmul.f32 %v3483, 1.0614054
      %v3548 = vmul.f32 %v3484, 1.0614054
      %v3549 = vmul.f32 %v3485, 1.0614054
      %v3550 = vadd.f32 %v3486, -1.4531521
      %v3551 = vadd.f32 %v3487, -1.4531521
      %v3552 = vadd.f32 %v3488, -1.4531521
      %v3553 = vadd.f32 %v3489, -1.4531521
      %v3554 = vadd.f32 %v3490, -1.4531521
      %v3555 = vadd.f32 %v3491, -1.4531521
      %v3556 = vadd.f32 %v3492, -1.4531521
      %v3557 = vadd.f32 %v3493, -1.4531521
      %v3558 = vadd.f32 %v3494, -1.4531521
      %v3559 = vadd.f32 %v3495, -1.4531521
      %v3560 = vadd.f32 %v3496, -1.4531521
      %v3561 = vadd.f32 %v3497, -1.4531521
      %v3562 = vadd.f32 %v3498, -1.4531521
      %v3563 = vadd.f32 %v3499, -1.4531521
      %v3564 = vadd.f32 %v3500, -1.4531521
      %v3565 = vadd.f32 %v3501, -1.4531521
      %v3566 = vadd.f32 %v3502, -1.4531521
      %v3567 = vadd.f32 %v3503, -1.4531521
      %v3568 = vadd.f32 %v3504, -1.4531521
      %v3569 = vadd.f32 %v3505, -1.4531521
      %v3570 = vadd.f32 %v3506, -1.4531521
      %v3571 = vadd.f32 %v3507, -1.4531521
      %v3572 = vadd.f32 %v3508, -1.4531521
      %v3573 = vadd.f32 %v3509, -1.4531521
      %v3574 = vadd.f32 %v3510, -1.4531521
      %v3575 = vadd.f32 %v3511, -1.4531521
      %v3576 = vadd.f32 %v3512, -1.4531521
      %v3577 = vadd.f32 %v3513, -1.4531521
      %v3578 = vadd.f32 %v3514, -1.4531521
      %v3579 = vadd.f32 %v3515, -1.4531521
      %v3580 = vadd.f32 %v3516, -1.4531521
      %v3581 = vadd.f32 %v3517, -1.4531521
      %v3582 = vadd.f32 %v3518, -1.4531521
      %v3583 = vadd.f32 %v3519, -1.4531521
      %v3584 = vadd.f32 %v3520, -1.4531521
      %v3585 = vadd.f32 %v3521, -1.4531521
      %v3586 = vadd.f32 %v3522, -1.4531521
      %v3587 = vadd.f32 %v3523, -1.4531521
      %v3588 = vadd.f32 %v3524, -1.4531521
      %v3589 = vadd.f32 %v3525, -1.4531521
      %v3590 = vadd.f32 %v3526, -1.4531521
      %v3591 = vadd.f32 %v3527, -1.4531521
      %v3592 = vadd.f32 %v3528, -1.4531521
      %v3593 = vadd.f32 %v3529, -1.4531521
      %v3594 = vadd.f32 %v3530, -1.4531521
      %v3595 = vadd.f32 %v3531, -1.4531521
      %v3596 = vadd.f32 %v3532, -1.4531521
      %v3597 = vadd.f32 %v3533, -1.4531521
      %v3598 = vadd.f32 %v3534, -1.4531521
      %v3599 = vadd.f32 %v3535, -1.4531521
      %v3600 = vadd.f32 %v3536, -1.4531521
      %v3601 = vadd.f32 %v3537, -1.4531521
      %v3602 = vadd.f32 %v3538, -1.4531521
      %v3603 = vadd.f32 %v3539, -1.4531521
      %v3604 = vadd.f32 %v3540, -1.4531521
      %v3605 = vadd.f32 %v3541, -1.4531521
      %v3606 = vadd.f32 %v3542, -1.4531521
      %v3607 = vadd.f32 %v3543, -1.4531521
      %v3608 = vadd.f32 %v3544, -1.4531521
      %v3609 = vadd.f32 %v3545, -1.4531521
      %v3610 = vadd.f32 %v3546, -1.4531521
      %v3611 = vadd.f32 %v3547, -1.4531521
      %v3612 = vadd.f32 %v3548, -1.4531521
      %v3613 = vadd.f32 %v3549, -1.4531521
      %v3614 = vmul.f32 %v3550, %v3422
      %v3615 = vmul.f32 %v3551, %v3423
      %v3616 = vmul.f32 %v3552, %v3424
      %v3617 = vmul.f32 %v3553, %v3425
      %v3618 = vmul.f32 %v3554, %v3426
      %v3619 = vmul.f32 %v3555, %v3427
      %v3620 = vmul.f32 %v3556, %v3428
      %v3621 = vmul.f32 %v3557, %v3429
      %v3622 = vmul.f32 %v3558, %v3430
      %v3623 = vmul.f32 %v3559, %v3431
      %v3624 = vmul.f32 %v3560, %v3432
      %v3625 = vmul.f32 %v3561, %v3433
      %v3626 = vmul.f32 %v3562, %v3434
      %v3627 = vmul.f32 %v3563, %v3435
      %v3628 = vmul.f32 %v3564, %v3436
      %v3629 = vmul.f32 %v3565, %v3437
      %v3630 = vmul.f32 %v3566, %v3438
      %v3631 = vmul.f32 %v3567, %v3439
      %v3632 = vmul.f32 %v3568, %v3440
      %v3633 = vmul.f32 %v3569, %v3441
      %v3634 = vmul.f32 %v3570, %v3442
      %v3635 = vmul.f32 %v3571, %v3443
      %v3636 = vmul.f32 %v3572, %v3444
      %v3637 = vmul.f32 %v3573, %v3445
      %v3638 = vmul.f32 %v3574, %v3446
      %v3639 = vmul.f32 %v3575, %v3447
      %v3640 = vmul.f32 %v3576, %v3448
      %v3641 = vmul.f32 %v3577, %v3449
      %v3642 = vmul.f32 %v3578, %v3450
      %v3643 = vmul.f32 %v3579, %v3451
      %v3644 = vmul.f32 %v3580, %v3452
      %v3645 = vmul.f32 %v3581, %v3453
      %v3646 = vmul.f32 %v3582, %v3454
      %v3647 = vmul.f32 %v3583, %v3455
      %v3648 = vmul.f32 %v3584, %v3456
      %v3649 = vmul.f32 %v3585, %v3457
      %v3650 = vmul.f32 %v3586, %v3458
      %v3651 = vmul.f32 %v3587, %v3459
      %v3652 = vmul.f32 %v3588, %v3460
      %v3653 = vmul.f32 %v3589, %v3461
      %v3654 = vmul.f32 %v3590, %v3462
      %v3655 = vmul.f32 %v3591, %v3463
      %v3656 = vmul.f32 %v3592, %v3464
      %v3657 = vmul.f32 %v3593, %v3465
      %v3658 = vmul.f32 %v3594, %v3466
      %v3659 = vmul.f32 %v3595, %v3467
      %v3660 = vmul.f32 %v3596, %v3468
      %v3661 = vmul.f32 %v3597, %v3469
      %v3662 = vmul.f32 %v3598, %v3470
      %v3663 = vmul.f32 %v3599, %v3471
      %v3664 = vmul.f32 %v3600, %v3472
      %v3665 = vmul.f32 %v3601, %v3473
      %v3666 = vmul.f32 %v3602, %v3474
      %v3667 = vmul.f32 %v3603, %v3475
      %v3668 = vmul.f32 %v3604, %v3476
      %v3669 = vmul.f32 %v3605, %v3477
      %v3670 = vmul.f32 %v3606, %v3478
      %v3671 = vmul.f32 %v3607, %v3479
      %v3672 = vmul.f32 %v3608, %v3480
      %v3673 = vmul.f32 %v3609, %v3481
      %v3674 = vmul.f32 %v3610, %v3482
      %v3675 = vmul.f32 %v3611, %v3483
      %v3676 = vmul.f32 %v3612, %v3484
      %v3677 = vmul.f32 %v3613, %v3485
      %v3678 = vadd.f32 %v3614, 1.4214138
      %v3679 = vadd.f32 %v3615, 1.4214138
      %v3680 = vadd.f32 %v3616, 1.4214138
      %v3681 = vadd.f32 %v3617, 1.4214138
      %v3682 = vadd.f32 %v3618, 1.4214138
      %v3683 = vadd.f32 %v3619, 1.4214138
      %v3684 = vadd.f32 %v3620, 1.4214138
      %v3685 = vadd.f32 %v3621, 1.4214138
      %v3686 = vadd.f32 %v3622, 1.4214138
      %v3687 = vadd.f32 %v3623, 1.4214138
      %v3688 = vadd.f32 %v3624, 1.4214138
      %v3689 = vadd.f32 %v3625, 1.4214138
      %v3690 = vadd.f32 %v3626, 1.4214138
      %v3691 = vadd.f32 %v3627, 1.4214138
      %v3692 = vadd.f32 %v3628, 1.4214138
      %v3693 = vadd.f32 %v3629, 1.4214138
      %v3694 = vadd.f32 %v3630, 1.4214138
      %v3695 = vadd.f32 %v3631, 1.4214138
      %v3696 = vadd.f32 %v3632, 1.4214138
      %v3697 = vadd.f32 %v3633, 1.4214138
      %v3698 = vadd.f32 %v3634, 1.4214138
      %v3699 = vadd.f32 %v3635, 1.4214138
      %v3700 = vadd.f32 %v3636, 1.4214138
      %v3701 = vadd.f32 %v3637, 1.4214138
      %v3702 = vadd.f32 %v3638, 1.4214138
      %v3703 = vadd.f32 %v3639, 1.4214138
      %v3704 = vadd.f32 %v3640, 1.4214138
      %v3705 = vadd.f32 %v3641, 1.4214138
      %v3706 = vadd.f32 %v3642, 1.4214138
      %v3707 = vadd.f32 %v3643, 1.4214138
      %v3708 = vadd.f32 %v3644, 1.4214138
      %v3709 = vadd.f32 %v3645, 1.4214138
      %v3710 = vadd.f32 %v3646, 1.4214138
      %v3711 = vadd.f32 %v3647, 1.4214138
      %v3712 = vadd.f32 %v3648, 1.4214138
      %v3713 = vadd.f32 %v3649, 1.4214138
      %v3714 = vadd.f32 %v3650, 1.4214138
      %v3715 = vadd.f32 %v3651, 1.4214138
      %v3716 = vadd.f32 %v3652, 1.4214138
      %v3717 = vadd.f32 %v3653, 1.4214138
      %v3718 = vadd.f32 %v3654, 1.4214138
      %v3719 = vadd.f32 %v3655, 1.4214138
      %v3720 = vadd.f32 %v3656, 1.4214138
      %v3721 = vadd.f32 %v3657, 1.4214138
      %v3722 = vadd.f32 %v3658, 1.4214138
      %v3723 = vadd.f32 %v3659, 1.4214138
      %v3724 = vadd.f32 %v3660, 1.4214138
      %v3725 = vadd.f32 %v3661, 1.4214138
      %v3726 = vadd.f32 %v3662, 1.4214138
      %v3727 = vadd.f32 %v3663, 1.4214138
      %v3728 = vadd.f32 %v3664, 1.4214138
      %v3729 = vadd.f32 %v3665, 1.4214138
      %v3730 = vadd.f32 %v3666, 1.4214138
      %v3731 = vadd.f32 %v3667, 1.4214138
      %v3732 = vadd.f32 %v3668, 1.4214138
      %v3733 = vadd.f32 %v3669, 1.4214138
      %v3734 = vadd.f32 %v3670, 1.4214138
      %v3735 = vadd.f32 %v3671, 1.4214138
      %v3736 = vadd.f32 %v3672, 1.4214138
      %v3737 = vadd.f32 %v3673, 1.4214138
      %v3738 = vadd.f32 %v3674, 1.4214138
      %v3739 = vadd.f32 %v3675, 1.4214138
      %v3740 = vadd.f32 %v3676, 1.4214138
      %v3741 = vadd.f32 %v3677, 1.4214138
      %v3742 = vmul.f32 %v3678, %v3422
      %v3743 = vmul.f32 %v3679, %v3423
      %v3744 = vmul.f32 %v3680, %v3424
      %v3745 = vmul.f32 %v3681, %v3425
      %v3746 = vmul.f32 %v3682, %v3426
      %v3747 = vmul.f32 %v3683, %v3427
      %v3748 = vmul.f32 %v3684, %v3428
      %v3749 = vmul.f32 %v3685, %v3429
      %v3750 = vmul.f32 %v3686, %v3430
      %v3751 = vmul.f32 %v3687, %v3431
      %v3752 = vmul.f32 %v3688, %v3432
      %v3753 = vmul.f32 %v3689, %v3433
      %v3754 = vmul.f32 %v3690, %v3434
      %v3755 = vmul.f32 %v3691, %v3435
      %v3756 = vmul.f32 %v3692, %v3436
      %v3757 = vmul.f32 %v3693, %v3437
      %v3758 = vmul.f32 %v3694, %v3438
      %v3759 = vmul.f32 %v3695, %v3439
      %v3760 = vmul.f32 %v3696, %v3440
      %v3761 = vmul.f32 %v3697, %v3441
      %v3762 = vmul.f32 %v3698, %v3442
      %v3763 = vmul.f32 %v3699, %v3443
      %v3764 = vmul.f32 %v3700, %v3444
      %v3765 = vmul.f32 %v3701, %v3445
      %v3766 = vmul.f32 %v3702, %v3446
      %v3767 = vmul.f32 %v3703, %v3447
      %v3768 = vmul.f32 %v3704, %v3448
      %v3769 = vmul.f32 %v3705, %v3449
      %v3770 = vmul.f32 %v3706, %v3450
      %v3771 = vmul.f32 %v3707, %v3451
      %v3772 = vmul.f32 %v3708, %v3452
      %v3773 = vmul.f32 %v3709, %v3453
      %v3774 = vmul.f32 %v3710, %v3454
      %v3775 = vmul.f32 %v3711, %v3455
      %v3776 = vmul.f32 %v3712, %v3456
      %v3777 = vmul.f32 %v3713, %v3457
      %v3778 = vmul.f32 %v3714, %v3458
      %v3779 = vmul.f32 %v3715, %v3459
      %v3780 = vmul.f32 %v3716, %v3460
      %v3781 = vmul.f32 %v3717, %v3461
      %v3782 = vmul.f32 %v3718, %v3462
      %v3783 = vmul.f32 %v3719, %v3463
      %v3784 = vmul.f32 %v3720, %v3464
      %v3785 = vmul.f32 %v3721, %v3465
      %v3786 = vmul.f32 %v3722, %v3466
      %v3787 = vmul.f32 %v3723, %v3467
      %v3788 = vmul.f32 %v3724, %v3468
      %v3789 = vmul.f32 %v3725, %v3469
      %v3790 = vmul.f32 %v3726, %v3470
      %v3791 = vmul.f32 %v3727, %v3471
      %v3792 = vmul.f32 %v3728, %v3472
      %v3793 = vmul.f32 %v3729, %v3473
      %v3794 = vmul.f32 %v3730, %v3474
      %v3795 = vmul.f32 %v3731, %v3475
      %v3796 = vmul.f32 %v3732, %v3476
      %v3797 = vmul.f32 %v3733, %v3477
      %v3798 = vmul.f32 %v3734, %v3478
      %v3799 = vmul.f32 %v3735, %v3479
      %v3800 = vmul.f32 %v3736, %v3480
      %v3801 = vmul.f32 %v3737, %v3481
      %v3802 = vmul.f32 %v3738, %v3482
      %v3803 = vmul.f32 %v3739, %v3483
      %v3804 = vmul.f32 %v3740, %v3484
      %v3805 = vmul.f32 %v3741, %v3485
      %v3806 = vadd.f32 %v3742, -0.28449672
      %v3807 = vadd.f32 %v3743, -0.28449672
      %v3808 = vadd.f32 %v3744, -0.28449672
      %v3809 = vadd.f32 %v3745, -0.28449672
      %v3810 = vadd.f32 %v3746, -0.28449672
      %v3811 = vadd.f32 %v3747, -0.28449672
      %v3812 = vadd.f32 %v3748, -0.28449672
      %v3813 = vadd.f32 %v3749, -0.28449672
      %v3814 = vadd.f32 %v3750, -0.28449672
      %v3815 = vadd.f32 %v3751, -0.28449672
      %v3816 = vadd.f32 %v3752, -0.28449672
      %v3817 = vadd.f32 %v3753, -0.28449672
      %v3818 = vadd.f32 %v3754, -0.28449672
      %v3819 = vadd.f32 %v3755, -0.28449672
      %v3820 = vadd.f32 %v3756, -0.28449672
      %v3821 = vadd.f32 %v3757, -0.28449672
      %v3822 = vadd.f32 %v3758, -0.28449672
      %v3823 = vadd.f32 %v3759, -0.28449672
      %v3824 = vadd.f32 %v3760, -0.28449672
      %v3825 = vadd.f32 %v3761, -0.28449672
      %v3826 = vadd.f32 %v3762, -0.28449672
      %v3827 = vadd.f32 %v3763, -0.28449672
      %v3828 = vadd.f32 %v3764, -0.28449672
      %v3829 = vadd.f32 %v3765, -0.28449672
      %v3830 = vadd.f32 %v3766, -0.28449672
      %v3831 = vadd.f32 %v3767, -0.28449672
      %v3832 = vadd.f32 %v3768, -0.28449672
      %v3833 = vadd.f32 %v3769, -0.28449672
      %v3834 = vadd.f32 %v3770, -0.28449672
      %v3835 = vadd.f32 %v3771, -0.28449672
      %v3836 = vadd.f32 %v3772, -0.28449672
      %v3837 = vadd.f32 %v3773, -0.28449672
      %v3838 = vadd.f32 %v3774, -0.28449672
      %v3839 = vadd.f32 %v3775, -0.28449672
      %v3840 = vadd.f32 %v3776, -0.28449672
      %v3841 = vadd.f32 %v3777, -0.28449672
      %v3842 = vadd.f32 %v3778, -0.28449672
      %v3843 = vadd.f32 %v3779, -0.28449672
      %v3844 = vadd.f32 %v3780, -0.28449672
      %v3845 = vadd.f32 %v3781, -0.28449672
      %v3846 = vadd.f32 %v3782, -0.28449672
      %v3847 = vadd.f32 %v3783, -0.28449672
      %v3848 = vadd.f32 %v3784, -0.28449672
      %v3849 = vadd.f32 %v3785, -0.28449672
      %v3850 = vadd.f32 %v3786, -0.28449672
      %v3851 = vadd.f32 %v3787, -0.28449672
      %v3852 = vadd.f32 %v3788, -0.28449672
      %v3853 = vadd.f32 %v3789, -0.28449672
      %v3854 = vadd.f32 %v3790, -0.28449672
      %v3855 = vadd.f32 %v3791, -0.28449672
      %v3856 = vadd.f32 %v3792, -0.28449672
      %v3857 = vadd.f32 %v3793, -0.28449672
      %v3858 = vadd.f32 %v3794, -0.28449672
      %v3859 = vadd.f32 %v3795, -0.28449672
      %v3860 = vadd.f32 %v3796, -0.28449672
      %v3861 = vadd.f32 %v3797, -0.28449672
      %v3862 = vadd.f32 %v3798, -0.28449672
      %v3863 = vadd.f32 %v3799, -0.28449672
      %v3864 = vadd.f32 %v3800, -0.28449672
      %v3865 = vadd.f32 %v3801, -0.28449672
      %v3866 = vadd.f32 %v3802, -0.28449672
      %v3867 = vadd.f32 %v3803, -0.28449672
      %v3868 = vadd.f32 %v3804, -0.28449672
      %v3869 = vadd.f32 %v3805, -0.28449672
      %v3870 = vmul.f32 %v3806, %v3422
      %v3871 = vmul.f32 %v3807, %v3423
      %v3872 = vmul.f32 %v3808, %v3424
      %v3873 = vmul.f32 %v3809, %v3425
      %v3874 = vmul.f32 %v3810, %v3426
      %v3875 = vmul.f32 %v3811, %v3427
      %v3876 = vmul.f32 %v3812, %v3428
      %v3877 = vmul.f32 %v3813, %v3429
      %v3878 = vmul.f32 %v3814, %v3430
      %v3879 = vmul.f32 %v3815, %v3431
      %v3880 = vmul.f32 %v3816, %v3432
      %v3881 = vmul.f32 %v3817, %v3433
      %v3882 = vmul.f32 %v3818, %v3434
      %v3883 = vmul.f32 %v3819, %v3435
      %v3884 = vmul.f32 %v3820, %v3436
      %v3885 = vmul.f32 %v3821, %v3437
      %v3886 = vmul.f32 %v3822, %v3438
      %v3887 = vmul.f32 %v3823, %v3439
      %v3888 = vmul.f32 %v3824, %v3440
      %v3889 = vmul.f32 %v3825, %v3441
      %v3890 = vmul.f32 %v3826, %v3442
      %v3891 = vmul.f32 %v3827, %v3443
      %v3892 = vmul.f32 %v3828, %v3444
      %v3893 = vmul.f32 %v3829, %v3445
      %v3894 = vmul.f32 %v3830, %v3446
      %v3895 = vmul.f32 %v3831, %v3447
      %v3896 = vmul.f32 %v3832, %v3448
      %v3897 = vmul.f32 %v3833, %v3449
      %v3898 = vmul.f32 %v3834, %v3450
      %v3899 = vmul.f32 %v3835, %v3451
      %v3900 = vmul.f32 %v3836, %v3452
      %v3901 = vmul.f32 %v3837, %v3453
      %v3902 = vmul.f32 %v3838, %v3454
      %v3903 = vmul.f32 %v3839, %v3455
      %v3904 = vmul.f32 %v3840, %v3456
      %v3905 = vmul.f32 %v3841, %v3457
      %v3906 = vmul.f32 %v3842, %v3458
      %v3907 = vmul.f32 %v3843, %v3459
      %v3908 = vmul.f32 %v3844, %v3460
      %v3909 = vmul.f32 %v3845, %v3461
      %v3910 = vmul.f32 %v3846, %v3462
      %v3911 = vmul.f32 %v3847, %v3463
      %v3912 = vmul.f32 %v3848, %v3464
      %v3913 = vmul.f32 %v3849, %v3465
      %v3914 = vmul.f32 %v3850, %v3466
      %v3915 = vmul.f32 %v3851, %v3467
      %v3916 = vmul.f32 %v3852, %v3468
      %v3917 = vmul.f32 %v3853, %v3469
      %v3918 = vmul.f32 %v3854, %v3470
      %v3919 = vmul.f32 %v3855, %v3471
      %v3920 = vmul.f32 %v3856, %v3472
      %v3921 = vmul.f32 %v3857, %v3473
      %v3922 = vmul.f32 %v3858, %v3474
      %v3923 = vmul.f32 %v3859, %v3475
      %v3924 = vmul.f32 %v3860, %v3476
      %v3925 = vmul.f32 %v3861, %v3477
      %v3926 = vmul.f32 %v3862, %v3478
      %v3927 = vmul.f32 %v3863, %v3479
      %v3928 = vmul.f32 %v3864, %v3480
      %v3929 = vmul.f32 %v3865, %v3481
      %v3930 = vmul.f32 %v3866, %v3482
      %v3931 = vmul.f32 %v3867, %v3483
      %v3932 = vmul.f32 %v3868, %v3484
      %v3933 = vmul.f32 %v3869, %v3485
      %v3934 = vadd.f32 %v3870, 0.2548296
      %v3935 = vadd.f32 %v3871, 0.2548296
      %v3936 = vadd.f32 %v3872, 0.2548296
      %v3937 = vadd.f32 %v3873, 0.2548296
      %v3938 = vadd.f32 %v3874, 0.2548296
      %v3939 = vadd.f32 %v3875, 0.2548296
      %v3940 = vadd.f32 %v3876, 0.2548296
      %v3941 = vadd.f32 %v3877, 0.2548296
      %v3942 = vadd.f32 %v3878, 0.2548296
      %v3943 = vadd.f32 %v3879, 0.2548296
      %v3944 = vadd.f32 %v3880, 0.2548296
      %v3945 = vadd.f32 %v3881, 0.2548296
      %v3946 = vadd.f32 %v3882, 0.2548296
      %v3947 = vadd.f32 %v3883, 0.2548296
      %v3948 = vadd.f32 %v3884, 0.2548296
      %v3949 = vadd.f32 %v3885, 0.2548296
      %v3950 = vadd.f32 %v3886, 0.2548296
      %v3951 = vadd.f32 %v3887, 0.2548296
      %v3952 = vadd.f32 %v3888, 0.2548296
      %v3953 = vadd.f32 %v3889, 0.2548296
      %v3954 = vadd.f32 %v3890, 0.2548296
      %v3955 = vadd.f32 %v3891, 0.2548296
      %v3956 = vadd.f32 %v3892, 0.2548296
      %v3957 = vadd.f32 %v3893, 0.2548296
      %v3958 = vadd.f32 %v3894, 0.2548296
      %v3959 = vadd.f32 %v3895, 0.2548296
      %v3960 = vadd.f32 %v3896, 0.2548296
      %v3961 = vadd.f32 %v3897, 0.2548296
      %v3962 = vadd.f32 %v3898, 0.2548296
      %v3963 = vadd.f32 %v3899, 0.2548296
      %v3964 = vadd.f32 %v3900, 0.2548296
      %v3965 = vadd.f32 %v3901, 0.2548296
      %v3966 = vadd.f32 %v3902, 0.2548296
      %v3967 = vadd.f32 %v3903, 0.2548296
      %v3968 = vadd.f32 %v3904, 0.2548296
      %v3969 = vadd.f32 %v3905, 0.2548296
      %v3970 = vadd.f32 %v3906, 0.2548296
      %v3971 = vadd.f32 %v3907, 0.2548296
      %v3972 = vadd.f32 %v3908, 0.2548296
      %v3973 = vadd.f32 %v3909, 0.2548296
      %v3974 = vadd.f32 %v3910, 0.2548296
      %v3975 = vadd.f32 %v3911, 0.2548296
      %v3976 = vadd.f32 %v3912, 0.2548296
      %v3977 = vadd.f32 %v3913, 0.2548296
      %v3978 = vadd.f32 %v3914, 0.2548296
      %v3979 = vadd.f32 %v3915, 0.2548296
      %v3980 = vadd.f32 %v3916, 0.2548296
      %v3981 = vadd.f32 %v3917, 0.2548296
      %v3982 = vadd.f32 %v3918, 0.2548296
      %v3983 = vadd.f32 %v3919, 0.2548296
      %v3984 = vadd.f32 %v3920, 0.2548296
      %v3985 = vadd.f32 %v3921, 0.2548296
      %v3986 = vadd.f32 %v3922, 0.2548296
      %v3987 = vadd.f32 %v3923, 0.2548296
      %v3988 = vadd.f32 %v3924, 0.2548296
      %v3989 = vadd.f32 %v3925, 0.2548296
      %v3990 = vadd.f32 %v3926, 0.2548296
      %v3991 = vadd.f32 %v3927, 0.2548296
      %v3992 = vadd.f32 %v3928, 0.2548296
      %v3993 = vadd.f32 %v3929, 0.2548296
      %v3994 = vadd.f32 %v3930, 0.2548296
      %v3995 = vadd.f32 %v3931, 0.2548296
      %v3996 = vadd.f32 %v3932, 0.2548296
      %v3997 = vadd.f32 %v3933, 0.2548296
      %v3998 = vmul.f32 %v3934, %v3422
      %v3999 = vmul.f32 %v3935, %v3423
      %v4000 = vmul.f32 %v3936, %v3424
      %v4001 = vmul.f32 %v3937, %v3425
      %v4002 = vmul.f32 %v3938, %v3426
      %v4003 = vmul.f32 %v3939, %v3427
      %v4004 = vmul.f32 %v3940, %v3428
      %v4005 = vmul.f32 %v3941, %v3429
      %v4006 = vmul.f32 %v3942, %v3430
      %v4007 = vmul.f32 %v3943, %v3431
      %v4008 = vmul.f32 %v3944, %v3432
      %v4009 = vmul.f32 %v3945, %v3433
      %v4010 = vmul.f32 %v3946, %v3434
      %v4011 = vmul.f32 %v3947, %v3435
      %v4012 = vmul.f32 %v3948, %v3436
      %v4013 = vmul.f32 %v3949, %v3437
      %v4014 = vmul.f32 %v3950, %v3438
      %v4015 = vmul.f32 %v3951, %v3439
      %v4016 = vmul.f32 %v3952, %v3440
      %v4017 = vmul.f32 %v3953, %v3441
      %v4018 = vmul.f32 %v3954, %v3442
      %v4019 = vmul.f32 %v3955, %v3443
      %v4020 = vmul.f32 %v3956, %v3444
      %v4021 = vmul.f32 %v3957, %v3445
      %v4022 = vmul.f32 %v3958, %v3446
      %v4023 = vmul.f32 %v3959, %v3447
      %v4024 = vmul.f32 %v3960, %v3448
      %v4025 = vmul.f32 %v3961, %v3449
      %v4026 = vmul.f32 %v3962, %v3450
      %v4027 = vmul.f32 %v3963, %v3451
      %v4028 = vmul.f32 %v3964, %v3452
      %v4029 = vmul.f32 %v3965, %v3453
      %v4030 = vmul.f32 %v3966, %v3454
      %v4031 = vmul.f32 %v3967, %v3455
      %v4032 = vmul.f32 %v3968, %v3456
      %v4033 = vmul.f32 %v3969, %v3457
      %v4034 = vmul.f32 %v3970, %v3458
      %v4035 = vmul.f32 %v3971, %v3459
      %v4036 = vmul.f32 %v3972, %v3460
      %v4037 = vmul.f32 %v3973, %v3461
      %v4038 = vmul.f32 %v3974, %v3462
      %v4039 = vmul.f32 %v3975, %v3463
      %v4040 = vmul.f32 %v3976, %v3464
      %v4041 = vmul.f32 %v3977, %v3465
      %v4042 = vmul.f32 %v3978, %v3466
      %v4043 = vmul.f32 %v3979, %v3467
      %v4044 = vmul.f32 %v3980, %v3468
      %v4045 = vmul.f32 %v3981, %v3469
      %v4046 = vmul.f32 %v3982, %v3470
      %v4047 = vmul.f32 %v3983, %v3471
      %v4048 = vmul.f32 %v3984, %v3472
      %v4049 = vmul.f32 %v3985, %v3473
      %v4050 = vmul.f32 %v3986, %v3474
      %v4051 = vmul.f32 %v3987, %v3475
      %v4052 = vmul.f32 %v3988, %v3476
      %v4053 = vmul.f32 %v3989, %v3477
      %v4054 = vmul.f32 %v3990, %v3478
      %v4055 = vmul.f32 %v3991, %v3479
      %v4056 = vmul.f32 %v3992, %v3480
      %v4057 = vmul.f32 %v3993, %v3481
      %v4058 = vmul.f32 %v3994, %v3482
      %v4059 = vmul.f32 %v3995, %v3483
      %v4060 = vmul.f32 %v3996, %v3484
      %v4061 = vmul.f32 %v3997, %v3485
      %v4062 = vsub.f32 0.0, %v3230
      %v4063 = vsub.f32 0.0, %v3231
      %v4064 = vsub.f32 0.0, %v3232
      %v4065 = vsub.f32 0.0, %v3233
      %v4066 = vsub.f32 0.0, %v3234
      %v4067 = vsub.f32 0.0, %v3235
      %v4068 = vsub.f32 0.0, %v3236
      %v4069 = vsub.f32 0.0, %v3237
      %v4070 = vsub.f32 0.0, %v3238
      %v4071 = vsub.f32 0.0, %v3239
      %v4072 = vsub.f32 0.0, %v3240
      %v4073 = vsub.f32 0.0, %v3241
      %v4074 = vsub.f32 0.0, %v3242
      %v4075 = vsub.f32 0.0, %v3243
      %v4076 = vsub.f32 0.0, %v3244
      %v4077 = vsub.f32 0.0, %v3245
      %v4078 = vsub.f32 0.0, %v3246
      %v4079 = vsub.f32 0.0, %v3247
      %v4080 = vsub.f32 0.0, %v3248
      %v4081 = vsub.f32 0.0, %v3249
      %v4082 = vsub.f32 0.0, %v3250
      %v4083 = vsub.f32 0.0, %v3251
      %v4084 = vsub.f32 0.0, %v3252
      %v4085 = vsub.f32 0.0, %v3253
      %v4086 = vsub.f32 0.0, %v3254
      %v4087 = vsub.f32 0.0, %v3255
      %v4088 = vsub.f32 0.0, %v3256
      %v4089 = vsub.f32 0.0, %v3257
      %v4090 = vsub.f32 0.0, %v3258
      %v4091 = vsub.f32 0.0, %v3259
      %v4092 = vsub.f32 0.0, %v3260
      %v4093 = vsub.f32 0.0, %v3261
      %v4094 = vsub.f32 0.0, %v3262
      %v4095 = vsub.f32 0.0, %v3263
      %v4096 = vsub.f32 0.0, %v3264
      %v4097 = vsub.f32 0.0, %v3265
      %v4098 = vsub.f32 0.0, %v3266
      %v4099 = vsub.f32 0.0, %v3267
      %v4100 = vsub.f32 0.0, %v3268
      %v4101 = vsub.f32 0.0, %v3269
      %v4102 = vsub.f32 0.0, %v3270
      %v4103 = vsub.f32 0.0, %v3271
      %v4104 = vsub.f32 0.0, %v3272
      %v4105 = vsub.f32 0.0, %v3273
      %v4106 = vsub.f32 0.0, %v3274
      %v4107 = vsub.f32 0.0, %v3275
      %v4108 = vsub.f32 0.0, %v3276
      %v4109 = vsub.f32 0.0, %v3277
      %v4110 = vsub.f32 0.0, %v3278
      %v4111 = vsub.f32 0.0, %v3279
      %v4112 = vsub.f32 0.0, %v3280
      %v4113 = vsub.f32 0.0, %v3281
      %v4114 = vsub.f32 0.0, %v3282
      %v4115 = vsub.f32 0.0, %v3283
      %v4116 = vsub.f32 0.0, %v3284
      %v4117 = vsub.f32 0.0, %v3285
      %v4118 = vsub.f32 0.0, %v3286
      %v4119 = vsub.f32 0.0, %v3287
      %v4120 = vsub.f32 0.0, %v3288
      %v4121 = vsub.f32 0.0, %v3289
      %v4122 = vsub.f32 0.0, %v3290
      %v4123 = vsub.f32 0.0, %v3291
      %v4124 = vsub.f32 0.0, %v3292
      %v4125 = vsub.f32 0.0, %v3293
      %v4126 = vmul.f32 %v4062, %v3230
      %v4127 = vmul.f32 %v4063, %v3231
      %v4128 = vmul.f32 %v4064, %v3232
      %v4129 = vmul.f32 %v4065, %v3233
      %v4130 = vmul.f32 %v4066, %v3234
      %v4131 = vmul.f32 %v4067, %v3235
      %v4132 = vmul.f32 %v4068, %v3236
      %v4133 = vmul.f32 %v4069, %v3237
      %v4134 = vmul.f32 %v4070, %v3238
      %v4135 = vmul.f32 %v4071, %v3239
      %v4136 = vmul.f32 %v4072, %v3240
      %v4137 = vmul.f32 %v4073, %v3241
      %v4138 = vmul.f32 %v4074, %v3242
      %v4139 = vmul.f32 %v4075, %v3243
      %v4140 = vmul.f32 %v4076, %v3244
      %v4141 = vmul.f32 %v4077, %v3245
      %v4142 = vmul.f32 %v4078, %v3246
      %v4143 = vmul.f32 %v4079, %v3247
      %v4144 = vmul.f32 %v4080, %v3248
      %v4145 = vmul.f32 %v4081, %v3249
      %v4146 = vmul.f32 %v4082, %v3250
      %v4147 = vmul.f32 %v4083, %v3251
      %v4148 = vmul.f32 %v4084, %v3252
      %v4149 = vmul.f32 %v4085, %v3253
      %v4150 = vmul.f32 %v4086, %v3254
      %v4151 = vmul.f32 %v4087, %v3255
      %v4152 = vmul.f32 %v4088, %v3256
      %v4153 = vmul.f32 %v4089, %v3257
      %v4154 = vmul.f32 %v4090, %v3258
      %v4155 = vmul.f32 %v4091, %v3259
      %v4156 = vmul.f32 %v4092, %v3260
      %v4157 = vmul.f32 %v4093, %v3261
      %v4158 = vmul.f32 %v4094, %v3262
      %v4159 = vmul.f32 %v4095, %v3263
      %v4160 = vmul.f32 %v4096, %v3264
      %v4161 = vmul.f32 %v4097, %v3265
      %v4162 = vmul.f32 %v4098, %v3266
      %v4163 = vmul.f32 %v4099, %v3267
      %v4164 = vmul.f32 %v4100, %v3268
      %v4165 = vmul.f32 %v4101, %v3269
      %v4166 = vmul.f32 %v4102, %v3270
      %v4167 = vmul.f32 %v4103, %v3271
      %v4168 = vmul.f32 %v4104, %v3272
      %v4169 = vmul.f32 %v4105, %v3273
      %v4170 = vmul.f32 %v4106, %v3274
      %v4171 = vmul.f32 %v4107, %v3275
      %v4172 = vmul.f32 %v4108, %v3276
      %v4173 = vmul.f32 %v4109, %v3277
      %v4174 = vmul.f32 %v4110, %v3278
      %v4175 = vmul.f32 %v4111, %v3279
      %v4176 = vmul.f32 %v4112, %v3280
      %v4177 = vmul.f32 %v4113, %v3281
      %v4178 = vmul.f32 %v4114, %v3282
      %v4179 = vmul.f32 %v4115, %v3283
      %v4180 = vmul.f32 %v4116, %v3284
      %v4181 = vmul.f32 %v4117, %v3285
      %v4182 = vmul.f32 %v4118, %v3286
      %v4183 = vmul.f32 %v4119, %v3287
      %v4184 = vmul.f32 %v4120, %v3288
      %v4185 = vmul.f32 %v4121, %v3289
      %v4186 = vmul.f32 %v4122, %v3290
      %v4187 = vmul.f32 %v4123, %v3291
      %v4188 = vmul.f32 %v4124, %v3292
      %v4189 = vmul.f32 %v4125, %v3293
      %v4190 = vmul.f32 %v4126, 1.442695
      %v4191 = vpow.pop %v4190
      %v4192 = vmul.f32 %v4127, 1.442695
      %v4193 = vpow.pop %v4192
      %v4194 = vmul.f32 %v4128, 1.442695
      %v4195 = vpow.pop %v4194
      %v4196 = vmul.f32 %v4129, 1.442695
      %v4197 = vpow.pop %v4196
      %v4198 = vmul.f32 %v4130, 1.442695
      %v4199 = vpow.pop %v4198
      %v4200 = vmul.f32 %v4131, 1.442695
      %v4201 = vpow.pop %v4200
      %v4202 = vmul.f32 %v4132, 1.442695
      %v4203 = vpow.pop %v4202
      %v4204 = vmul.f32 %v4133, 1.442695
      %v4205 = vpow.pop %v4204
      %v4206 = vmul.f32 %v4134, 1.442695
      %v4207 = vpow.pop %v4206
      %v4208 = vmul.f32 %v4135, 1.442695
      %v4209 = vpow.pop %v4208
      %v4210 = vmul.f32 %v4136, 1.442695
      %v4211 = vpow.pop %v4210
      %v4212 = vmul.f32 %v4137, 1.442695
      %v4213 = vpow.pop %v4212
      %v4214 = vmul.f32 %v4138, 1.442695
      %v4215 = vpow.pop %v4214
      %v4216 = vmul.f32 %v4139, 1.442695
      %v4217 = vpow.pop %v4216
      %v4218 = vmul.f32 %v4140, 1.442695
      %v4219 = vpow.pop %v4218
      %v4220 = vmul.f32 %v4141, 1.442695
      %v4221 = vpow.pop %v4220
      %v4222 = vmul.f32 %v4142, 1.442695
      %v4223 = vpow.pop %v4222
      %v4224 = vmul.f32 %v4143, 1.442695
      %v4225 = vpow.pop %v4224
      %v4226 = vmul.f32 %v4144, 1.442695
      %v4227 = vpow.pop %v4226
      %v4228 = vmul.f32 %v4145, 1.442695
      %v4229 = vpow.pop %v4228
      %v4230 = vmul.f32 %v4146, 1.442695
      %v4231 = vpow.pop %v4230
      %v4232 = vmul.f32 %v4147, 1.442695
      %v4233 = vpow.pop %v4232
      %v4234 = vmul.f32 %v4148, 1.442695
      %v4235 = vpow.pop %v4234
      %v4236 = vmul.f32 %v4149, 1.442695
      %v4237 = vpow.pop %v4236
      %v4238 = vmul.f32 %v4150, 1.442695
      %v4239 = vpow.pop %v4238
      %v4240 = vmul.f32 %v4151, 1.442695
      %v4241 = vpow.pop %v4240
      %v4242 = vmul.f32 %v4152, 1.442695
      %v4243 = vpow.pop %v4242
      %v4244 = vmul.f32 %v4153, 1.442695
      %v4245 = vpow.pop %v4244
      %v4246 = vmul.f32 %v4154, 1.442695
      %v4247 = vpow.pop %v4246
      %v4248 = vmul.f32 %v4155, 1.442695
      %v4249 = vpow.pop %v4248
      %v4250 = vmul.f32 %v4156, 1.442695
      %v4251 = vpow.pop %v4250
      %v4252 = vmul.f32 %v4157, 1.442695
      %v4253 = vpow.pop %v4252
      %v4254 = vmul.f32 %v4158, 1.442695
      %v4255 = vpow.pop %v4254
      %v4256 = vmul.f32 %v4159, 1.442695
      %v4257 = vpow.pop %v4256
      %v4258 = vmul.f32 %v4160, 1.442695
      %v4259 = vpow.pop %v4258
      %v4260 = vmul.f32 %v4161, 1.442695
      %v4261 = vpow.pop %v4260
      %v4262 = vmul.f32 %v4162, 1.442695
      %v4263 = vpow.pop %v4262
      %v4264 = vmul.f32 %v4163, 1.442695
      %v4265 = vpow.pop %v4264
      %v4266 = vmul.f32 %v4164, 1.442695
      %v4267 = vpow.pop %v4266
      %v4268 = vmul.f32 %v4165, 1.442695
      %v4269 = vpow.pop %v4268
      %v4270 = vmul.f32 %v4166, 1.442695
      %v4271 = vpow.pop %v4270
      %v4272 = vmul.f32 %v4167, 1.442695
      %v4273 = vpow.pop %v4272
      %v4274 = vmul.f32 %v4168, 1.442695
      %v4275 = vpow.pop %v4274
      %v4276 = vmul.f32 %v4169, 1.442695
      %v4277 = vpow.pop %v4276
      %v4278 = vmul.f32 %v4170, 1.442695
      %v4279 = vpow.pop %v4278
      %v4280 = vmul.f32 %v4171, 1.442695
      %v4281 = vpow.pop %v4280
      %v4282 = vmul.f32 %v4172, 1.442695
      %v4283 = vpow.pop %v4282
      %v4284 = vmul.f32 %v4173, 1.442695
      %v4285 = vpow.pop %v4284
      %v4286 = vmul.f32 %v4174, 1.442695
      %v4287 = vpow.pop %v4286
      %v4288 = vmul.f32 %v4175, 1.442695
      %v4289 = vpow.pop %v4288
      %v4290 = vmul.f32 %v4176, 1.442695
      %v4291 = vpow.pop %v4290
      %v4292 = vmul.f32 %v4177, 1.442695
      %v4293 = vpow.pop %v4292
      %v4294 = vmul.f32 %v4178, 1.442695
      %v4295 = vpow.pop %v4294
      %v4296 = vmul.f32 %v4179, 1.442695
      %v4297 = vpow.pop %v4296
      %v4298 = vmul.f32 %v4180, 1.442695
      %v4299 = vpow.pop %v4298
      %v4300 = vmul.f32 %v4181, 1.442695
      %v4301 = vpow.pop %v4300
      %v4302 = vmul.f32 %v4182, 1.442695
      %v4303 = vpow.pop %v4302
      %v4304 = vmul.f32 %v4183, 1.442695
      %v4305 = vpow.pop %v4304
      %v4306 = vmul.f32 %v4184, 1.442695
      %v4307 = vpow.pop %v4306
      %v4308 = vmul.f32 %v4185, 1.442695
      %v4309 = vpow.pop %v4308
      %v4310 = vmul.f32 %v4186, 1.442695
      %v4311 = vpow.pop %v4310
      %v4312 = vmul.f32 %v4187, 1.442695
      %v4313 = vpow.pop %v4312
      %v4314 = vmul.f32 %v4188, 1.442695
      %v4315 = vpow.pop %v4314
      %v4316 = vmul.f32 %v4189, 1.442695
      %v4317 = vpow.pop %v4316
      %v4318 = vmul.f32 %v3998, %v4191
      %v4319 = vmul.f32 %v3999, %v4193
      %v4320 = vmul.f32 %v4000, %v4195
      %v4321 = vmul.f32 %v4001, %v4197
      %v4322 = vmul.f32 %v4002, %v4199
      %v4323 = vmul.f32 %v4003, %v4201
      %v4324 = vmul.f32 %v4004, %v4203
      %v4325 = vmul.f32 %v4005, %v4205
      %v4326 = vmul.f32 %v4006, %v4207
      %v4327 = vmul.f32 %v4007, %v4209
      %v4328 = vmul.f32 %v4008, %v4211
      %v4329 = vmul.f32 %v4009, %v4213
      %v4330 = vmul.f32 %v4010, %v4215
      %v4331 = vmul.f32 %v4011, %v4217
      %v4332 = vmul.f32 %v4012, %v4219
      %v4333 = vmul.f32 %v4013, %v4221
      %v4334 = vmul.f32 %v4014, %v4223
      %v4335 = vmul.f32 %v4015, %v4225
      %v4336 = vmul.f32 %v4016, %v4227
      %v4337 = vmul.f32 %v4017, %v4229
      %v4338 = vmul.f32 %v4018, %v4231
      %v4339 = vmul.f32 %v4019, %v4233
      %v4340 = vmul.f32 %v4020, %v4235
      %v4341 = vmul.f32 %v4021, %v4237
      %v4342 = vmul.f32 %v4022, %v4239
      %v4343 = vmul.f32 %v4023, %v4241
      %v4344 = vmul.f32 %v4024, %v4243
      %v4345 = vmul.f32 %v4025, %v4245
      %v4346 = vmul.f32 %v4026, %v4247
      %v4347 = vmul.f32 %v4027, %v4249
      %v4348 = vmul.f32 %v4028, %v4251
      %v4349 = vmul.f32 %v4029, %v4253
      %v4350 = vmul.f32 %v4030, %v4255
      %v4351 = vmul.f32 %v4031, %v4257
      %v4352 = vmul.f32 %v4032, %v4259
      %v4353 = vmul.f32 %v4033, %v4261
      %v4354 = vmul.f32 %v4034, %v4263
      %v4355 = vmul.f32 %v4035, %v4265
      %v4356 = vmul.f32 %v4036, %v4267
      %v4357 = vmul.f32 %v4037, %v4269
      %v4358 = vmul.f32 %v4038, %v4271
      %v4359 = vmul.f32 %v4039, %v4273
      %v4360 = vmul.f32 %v4040, %v4275
      %v4361 = vmul.f32 %v4041, %v4277
      %v4362 = vmul.f32 %v4042, %v4279
      %v4363 = vmul.f32 %v4043, %v4281
      %v4364 = vmul.f32 %v4044, %v4283
      %v4365 = vmul.f32 %v4045, %v4285
      %v4366 = vmul.f32 %v4046, %v4287
      %v4367 = vmul.f32 %v4047, %v4289
      %v4368 = vmul.f32 %v4048, %v4291
      %v4369 = vmul.f32 %v4049, %v4293
      %v4370 = vmul.f32 %v4050, %v4295
      %v4371 = vmul.f32 %v4051, %v4297
      %v4372 = vmul.f32 %v4052, %v4299
      %v4373 = vmul.f32 %v4053, %v4301
      %v4374 = vmul.f32 %v4054, %v4303
      %v4375 = vmul.f32 %v4055, %v4305
      %v4376 = vmul.f32 %v4056, %v4307
      %v4377 = vmul.f32 %v4057, %v4309
      %v4378 = vmul.f32 %v4058, %v4311
      %v4379 = vmul.f32 %v4059, %v4313
      %v4380 = vmul.f32 %v4060, %v4315
      %v4381 = vmul.f32 %v4061, %v4317
      %v4382 = vsub.f32 1.0, %v4318
      %v4383 = vsub.f32 1.0, %v4319
      %v4384 = vsub.f32 1.0, %v4320
      %v4385 = vsub.f32 1.0, %v4321
      %v4386 = vsub.f32 1.0, %v4322
      %v4387 = vsub.f32 1.0, %v4323
      %v4388 = vsub.f32 1.0, %v4324
      %v4389 = vsub.f32 1.0, %v4325
      %v4390 = vsub.f32 1.0, %v4326
      %v4391 = vsub.f32 1.0, %v4327
      %v4392 = vsub.f32 1.0, %v4328
      %v4393 = vsub.f32 1.0, %v4329
      %v4394 = vsub.f32 1.0, %v4330
      %v4395 = vsub.f32 1.0, %v4331
      %v4396 = vsub.f32 1.0, %v4332
      %v4397 = vsub.f32 1.0, %v4333
      %v4398 = vsub.f32 1.0, %v4334
      %v4399 = vsub.f32 1.0, %v4335
      %v4400 = vsub.f32 1.0, %v4336
      %v4401 = vsub.f32 1.0, %v4337
      %v4402 = vsub.f32 1.0, %v4338
      %v4403 = vsub.f32 1.0, %v4339
      %v4404 = vsub.f32 1.0, %v4340
      %v4405 = vsub.f32 1.0, %v4341
      %v4406 = vsub.f32 1.0, %v4342
      %v4407 = vsub.f32 1.0, %v4343
      %v4408 = vsub.f32 1.0, %v4344
      %v4409 = vsub.f32 1.0, %v4345
      %v4410 = vsub.f32 1.0, %v4346
      %v4411 = vsub.f32 1.0, %v4347
      %v4412 = vsub.f32 1.0, %v4348
      %v4413 = vsub.f32 1.0, %v4349
      %v4414 = vsub.f32 1.0, %v4350
      %v4415 = vsub.f32 1.0, %v4351
      %v4416 = vsub.f32 1.0, %v4352
      %v4417 = vsub.f32 1.0, %v4353
      %v4418 = vsub.f32 1.0, %v4354
      %v4419 = vsub.f32 1.0, %v4355
      %v4420 = vsub.f32 1.0, %v4356
      %v4421 = vsub.f32 1.0, %v4357
      %v4422 = vsub.f32 1.0, %v4358
      %v4423 = vsub.f32 1.0, %v4359
      %v4424 = vsub.f32 1.0, %v4360
      %v4425 = vsub.f32 1.0, %v4361
      %v4426 = vsub.f32 1.0, %v4362
      %v4427 = vsub.f32 1.0, %v4363
      %v4428 = vsub.f32 1.0, %v4364
      %v4429 = vsub.f32 1.0, %v4365
      %v4430 = vsub.f32 1.0, %v4366
      %v4431 = vsub.f32 1.0, %v4367
      %v4432 = vsub.f32 1.0, %v4368
      %v4433 = vsub.f32 1.0, %v4369
      %v4434 = vsub.f32 1.0, %v4370
      %v4435 = vsub.f32 1.0, %v4371
      %v4436 = vsub.f32 1.0, %v4372
      %v4437 = vsub.f32 1.0, %v4373
      %v4438 = vsub.f32 1.0, %v4374
      %v4439 = vsub.f32 1.0, %v4375
      %v4440 = vsub.f32 1.0, %v4376
      %v4441 = vsub.f32 1.0, %v4377
      %v4442 = vsub.f32 1.0, %v4378
      %v4443 = vsub.f32 1.0, %v4379
      %v4444 = vsub.f32 1.0, %v4380
      %v4445 = vsub.f32 1.0, %v4381
      %vm4446 = vcmp.ge.f32.partialorder %v3166, 0.0
      %vm4447 = vcmp.ge.f32.partialorder %v3167, 0.0
      %vm4448 = vcmp.ge.f32.partialorder %v3168, 0.0
      %vm4449 = vcmp.ge.f32.partialorder %v3169, 0.0
      %vm4450 = vcmp.ge.f32.partialorder %v3170, 0.0
      %vm4451 = vcmp.ge.f32.partialorder %v3171, 0.0
      %vm4452 = vcmp.ge.f32.partialorder %v3172, 0.0
      %vm4453 = vcmp.ge.f32.partialorder %v3173, 0.0
      %vm4454 = vcmp.ge.f32.partialorder %v3174, 0.0
      %vm4455 = vcmp.ge.f32.partialorder %v3175, 0.0
      %vm4456 = vcmp.ge.f32.partialorder %v3176, 0.0
      %vm4457 = vcmp.ge.f32.partialorder %v3177, 0.0
      %vm4458 = vcmp.ge.f32.partialorder %v3178, 0.0
      %vm4459 = vcmp.ge.f32.partialorder %v3179, 0.0
      %vm4460 = vcmp.ge.f32.partialorder %v3180, 0.0
      %vm4461 = vcmp.ge.f32.partialorder %v3181, 0.0
      %vm4462 = vcmp.ge.f32.partialorder %v3182, 0.0
      %vm4463 = vcmp.ge.f32.partialorder %v3183, 0.0
      %vm4464 = vcmp.ge.f32.partialorder %v3184, 0.0
      %vm4465 = vcmp.ge.f32.partialorder %v3185, 0.0
      %vm4466 = vcmp.ge.f32.partialorder %v3186, 0.0
      %vm4467 = vcmp.ge.f32.partialorder %v3187, 0.0
      %vm4468 = vcmp.ge.f32.partialorder %v3188, 0.0
      %vm4469 = vcmp.ge.f32.partialorder %v3189, 0.0
      %vm4470 = vcmp.ge.f32.partialorder %v3190, 0.0
      %vm4471 = vcmp.ge.f32.partialorder %v3191, 0.0
      %vm4472 = vcmp.ge.f32.partialorder %v3192, 0.0
      %vm4473 = vcmp.ge.f32.partialorder %v3193, 0.0
      %vm4474 = vcmp.ge.f32.partialorder %v3194, 0.0
      %vm4475 = vcmp.ge.f32.partialorder %v3195, 0.0
      %vm4476 = vcmp.ge.f32.partialorder %v3196, 0.0
      %vm4477 = vcmp.ge.f32.partialorder %v3197, 0.0
      %vm4478 = vcmp.ge.f32.partialorder %v3198, 0.0
      %vm4479 = vcmp.ge.f32.partialorder %v3199, 0.0
      %vm4480 = vcmp.ge.f32.partialorder %v3200, 0.0
      %vm4481 = vcmp.ge.f32.partialorder %v3201, 0.0
      %vm4482 = vcmp.ge.f32.partialorder %v3202, 0.0
      %vm4483 = vcmp.ge.f32.partialorder %v3203, 0.0
      %vm4484 = vcmp.ge.f32.partialorder %v3204, 0.0
      %vm4485 = vcmp.ge.f32.partialorder %v3205, 0.0
      %vm4486 = vcmp.ge.f32.partialorder %v3206, 0.0
      %vm4487 = vcmp.ge.f32.partialorder %v3207, 0.0
      %vm4488 = vcmp.ge.f32.partialorder %v3208, 0.0
      %vm4489 = vcmp.ge.f32.partialorder %v3209, 0.0
      %vm4490 = vcmp.ge.f32.partialorder %v3210, 0.0
      %vm4491 = vcmp.ge.f32.partialorder %v3211, 0.0
      %vm4492 = vcmp.ge.f32.partialorder %v3212, 0.0
      %vm4493 = vcmp.ge.f32.partialorder %v3213, 0.0
      %vm4494 = vcmp.ge.f32.partialorder %v3214, 0.0
      %vm4495 = vcmp.ge.f32.partialorder %v3215, 0.0
      %vm4496 = vcmp.ge.f32.partialorder %v3216, 0.0
      %vm4497 = vcmp.ge.f32.partialorder %v3217, 0.0
      %vm4498 = vcmp.ge.f32.partialorder %v3218, 0.0
      %vm4499 = vcmp.ge.f32.partialorder %v3219, 0.0
      %vm4500 = vcmp.ge.f32.partialorder %v3220, 0.0
      %vm4501 = vcmp.ge.f32.partialorder %v3221, 0.0
      %vm4502 = vcmp.ge.f32.partialorder %v3222, 0.0
      %vm4503 = vcmp.ge.f32.partialorder %v3223, 0.0
      %vm4504 = vcmp.ge.f32.partialorder %v3224, 0.0
      %vm4505 = vcmp.ge.f32.partialorder %v3225, 0.0
      %vm4506 = vcmp.ge.f32.partialorder %v3226, 0.0
      %vm4507 = vcmp.ge.f32.partialorder %v3227, 0.0
      %vm4508 = vcmp.ge.f32.partialorder %v3228, 0.0
      %vm4509 = vcmp.ge.f32.partialorder %v3229, 0.0
      %v4510 = vsub.f32 0.0, %v4382
      %v4511 = vsub.f32 0.0, %v4383
      %v4512 = vsub.f32 0.0, %v4384
      %v4513 = vsub.f32 0.0, %v4385
      %v4514 = vsub.f32 0.0, %v4386
      %v4515 = vsub.f32 0.0, %v4387
      %v4516 = vsub.f32 0.0, %v4388
      %v4517 = vsub.f32 0.0, %v4389
      %v4518 = vsub.f32 0.0, %v4390
      %v4519 = vsub.f32 0.0, %v4391
      %v4520 = vsub.f32 0.0, %v4392
      %v4521 = vsub.f32 0.0, %v4393
      %v4522 = vsub.f32 0.0, %v4394
      %v4523 = vsub.f32 0.0, %v4395
      %v4524 = vsub.f32 0.0, %v4396
      %v4525 = vsub.f32 0.0, %v4397
      %v4526 = vsub.f32 0.0, %v4398
      %v4527 = vsub.f32 0.0, %v4399
      %v4528 = vsub.f32 0.0, %v4400
      %v4529 = vsub.f32 0.0, %v4401
      %v4530 = vsub.f32 0.0, %v4402
      %v4531 = vsub.f32 0.0, %v4403
      %v4532 = vsub.f32 0.0, %v4404
      %v4533 = vsub.f32 0.0, %v4405
      %v4534 = vsub.f32 0.0, %v4406
      %v4535 = vsub.f32 0.0, %v4407
      %v4536 = vsub.f32 0.0, %v4408
      %v4537 = vsub.f32 0.0, %v4409
      %v4538 = vsub.f32 0.0, %v4410
      %v4539 = vsub.f32 0.0, %v4411
      %v4540 = vsub.f32 0.0, %v4412
      %v4541 = vsub.f32 0.0, %v4413
      %v4542 = vsub.f32 0.0, %v4414
      %v4543 = vsub.f32 0.0, %v4415
      %v4544 = vsub.f32 0.0, %v4416
      %v4545 = vsub.f32 0.0, %v4417
      %v4546 = vsub.f32 0.0, %v4418
      %v4547 = vsub.f32 0.0, %v4419
      %v4548 = vsub.f32 0.0, %v4420
      %v4549 = vsub.f32 0.0, %v4421
      %v4550 = vsub.f32 0.0, %v4422
      %v4551 = vsub.f32 0.0, %v4423
      %v4552 = vsub.f32 0.0, %v4424
      %v4553 = vsub.f32 0.0, %v4425
      %v4554 = vsub.f32 0.0, %v4426
      %v4555 = vsub.f32 0.0, %v4427
      %v4556 = vsub.f32 0.0, %v4428
      %v4557 = vsub.f32 0.0, %v4429
      %v4558 = vsub.f32 0.0, %v4430
      %v4559 = vsub.f32 0.0, %v4431
      %v4560 = vsub.f32 0.0, %v4432
      %v4561 = vsub.f32 0.0, %v4433
      %v4562 = vsub.f32 0.0, %v4434
      %v4563 = vsub.f32 0.0, %v4435
      %v4564 = vsub.f32 0.0, %v4436
      %v4565 = vsub.f32 0.0, %v4437
      %v4566 = vsub.f32 0.0, %v4438
      %v4567 = vsub.f32 0.0, %v4439
      %v4568 = vsub.f32 0.0, %v4440
      %v4569 = vsub.f32 0.0, %v4441
      %v4570 = vsub.f32 0.0, %v4442
      %v4571 = vsub.f32 0.0, %v4443
      %v4572 = vsub.f32 0.0, %v4444
      %v4573 = vsub.f32 0.0, %v4445
      %v4574 = vsel %vm4446, %v4382, %v4510
      %v4575 = vsel %vm4447, %v4383, %v4511
      %v4576 = vsel %vm4448, %v4384, %v4512
      %v4577 = vsel %vm4449, %v4385, %v4513
      %v4578 = vsel %vm4450, %v4386, %v4514
      %v4579 = vsel %vm4451, %v4387, %v4515
      %v4580 = vsel %vm4452, %v4388, %v4516
      %v4581 = vsel %vm4453, %v4389, %v4517
      %v4582 = vsel %vm4454, %v4390, %v4518
      %v4583 = vsel %vm4455, %v4391, %v4519
      %v4584 = vsel %vm4456, %v4392, %v4520
      %v4585 = vsel %vm4457, %v4393, %v4521
      %v4586 = vsel %vm4458, %v4394, %v4522
      %v4587 = vsel %vm4459, %v4395, %v4523
      %v4588 = vsel %vm4460, %v4396, %v4524
      %v4589 = vsel %vm4461, %v4397, %v4525
      %v4590 = vsel %vm4462, %v4398, %v4526
      %v4591 = vsel %vm4463, %v4399, %v4527
      %v4592 = vsel %vm4464, %v4400, %v4528
      %v4593 = vsel %vm4465, %v4401, %v4529
      %v4594 = vsel %vm4466, %v4402, %v4530
      %v4595 = vsel %vm4467, %v4403, %v4531
      %v4596 = vsel %vm4468, %v4404, %v4532
      %v4597 = vsel %vm4469, %v4405, %v4533
      %v4598 = vsel %vm4470, %v4406, %v4534
      %v4599 = vsel %vm4471, %v4407, %v4535
      %v4600 = vsel %vm4472, %v4408, %v4536
      %v4601 = vsel %vm4473, %v4409, %v4537
      %v4602 = vsel %vm4474, %v4410, %v4538
      %v4603 = vsel %vm4475, %v4411, %v4539
      %v4604 = vsel %vm4476, %v4412, %v4540
      %v4605 = vsel %vm4477, %v4413, %v4541
      %v4606 = vsel %vm4478, %v4414, %v4542
      %v4607 = vsel %vm4479, %v4415, %v4543
      %v4608 = vsel %vm4480, %v4416, %v4544
      %v4609 = vsel %vm4481, %v4417, %v4545
      %v4610 = vsel %vm4482, %v4418, %v4546
      %v4611 = vsel %vm4483, %v4419, %v4547
      %v4612 = vsel %vm4484, %v4420, %v4548
      %v4613 = vsel %vm4485, %v4421, %v4549
      %v4614 = vsel %vm4486, %v4422, %v4550
      %v4615 = vsel %vm4487, %v4423, %v4551
      %v4616 = vsel %vm4488, %v4424, %v4552
      %v4617 = vsel %vm4489, %v4425, %v4553
      %v4618 = vsel %vm4490, %v4426, %v4554
      %v4619 = vsel %vm4491, %v4427, %v4555
      %v4620 = vsel %vm4492, %v4428, %v4556
      %v4621 = vsel %vm4493, %v4429, %v4557
      %v4622 = vsel %vm4494, %v4430, %v4558
      %v4623 = vsel %vm4495, %v4431, %v4559
      %v4624 = vsel %vm4496, %v4432, %v4560
      %v4625 = vsel %vm4497, %v4433, %v4561
      %v4626 = vsel %vm4498, %v4434, %v4562
      %v4627 = vsel %vm4499, %v4435, %v4563
      %v4628 = vsel %vm4500, %v4436, %v4564
      %v4629 = vsel %vm4501, %v4437, %v4565
      %v4630 = vsel %vm4502, %v4438, %v4566
      %v4631 = vsel %vm4503, %v4439, %v4567
      %v4632 = vsel %vm4504, %v4440, %v4568
      %v4633 = vsel %vm4505, %v4441, %v4569
      %v4634 = vsel %vm4506, %v4442, %v4570
      %v4635 = vsel %vm4507, %v4443, %v4571
      %v4636 = vsel %vm4508, %v4444, %v4572
      %v4637 = vsel %vm4509, %v4445, %v4573
      %v4638 = vadd.f32 %v4574, 1.0
      %v4639 = vadd.f32 %v4575, 1.0
      %v4640 = vadd.f32 %v4576, 1.0
      %v4641 = vadd.f32 %v4577, 1.0
      %v4642 = vadd.f32 %v4578, 1.0
      %v4643 = vadd.f32 %v4579, 1.0
      %v4644 = vadd.f32 %v4580, 1.0
      %v4645 = vadd.f32 %v4581, 1.0
      %v4646 = vadd.f32 %v4582, 1.0
      %v4647 = vadd.f32 %v4583, 1.0
      %v4648 = vadd.f32 %v4584, 1.0
      %v4649 = vadd.f32 %v4585, 1.0
      %v4650 = vadd.f32 %v4586, 1.0
      %v4651 = vadd.f32 %v4587, 1.0
      %v4652 = vadd.f32 %v4588, 1.0
      %v4653 = vadd.f32 %v4589, 1.0
      %v4654 = vadd.f32 %v4590, 1.0
      %v4655 = vadd.f32 %v4591, 1.0
      %v4656 = vadd.f32 %v4592, 1.0
      %v4657 = vadd.f32 %v4593, 1.0
      %v4658 = vadd.f32 %v4594, 1.0
      %v4659 = vadd.f32 %v4595, 1.0
      %v4660 = vadd.f32 %v4596, 1.0
      %v4661 = vadd.f32 %v4597, 1.0
      %v4662 = vadd.f32 %v4598, 1.0
      %v4663 = vadd.f32 %v4599, 1.0
      %v4664 = vadd.f32 %v4600, 1.0
      %v4665 = vadd.f32 %v4601, 1.0
      %v4666 = vadd.f32 %v4602, 1.0
      %v4667 = vadd.f32 %v4603, 1.0
      %v4668 = vadd.f32 %v4604, 1.0
      %v4669 = vadd.f32 %v4605, 1.0
      %v4670 = vadd.f32 %v4606, 1.0
      %v4671 = vadd.f32 %v4607, 1.0
      %v4672 = vadd.f32 %v4608, 1.0
      %v4673 = vadd.f32 %v4609, 1.0
      %v4674 = vadd.f32 %v4610, 1.0
      %v4675 = vadd.f32 %v4611, 1.0
      %v4676 = vadd.f32 %v4612, 1.0
      %v4677 = vadd.f32 %v4613, 1.0
      %v4678 = vadd.f32 %v4614, 1.0
      %v4679 = vadd.f32 %v4615, 1.0
      %v4680 = vadd.f32 %v4616, 1.0
      %v4681 = vadd.f32 %v4617, 1.0
      %v4682 = vadd.f32 %v4618, 1.0
      %v4683 = vadd.f32 %v4619, 1.0
      %v4684 = vadd.f32 %v4620, 1.0
      %v4685 = vadd.f32 %v4621, 1.0
      %v4686 = vadd.f32 %v4622, 1.0
      %v4687 = vadd.f32 %v4623, 1.0
      %v4688 = vadd.f32 %v4624, 1.0
      %v4689 = vadd.f32 %v4625, 1.0
      %v4690 = vadd.f32 %v4626, 1.0
      %v4691 = vadd.f32 %v4627, 1.0
      %v4692 = vadd.f32 %v4628, 1.0
      %v4693 = vadd.f32 %v4629, 1.0
      %v4694 = vadd.f32 %v4630, 1.0
      %v4695 = vadd.f32 %v4631, 1.0
      %v4696 = vadd.f32 %v4632, 1.0
      %v4697 = vadd.f32 %v4633, 1.0
      %v4698 = vadd.f32 %v4634, 1.0
      %v4699 = vadd.f32 %v4635, 1.0
      %v4700 = vadd.f32 %v4636, 1.0
      %v4701 = vadd.f32 %v4637, 1.0
      %v4702 = vmul.f32 %v3102, %v4638
      %v4703 = vmul.f32 %v3103, %v4639
      %v4704 = vmul.f32 %v3104, %v4640
      %v4705 = vmul.f32 %v3105, %v4641
      %v4706 = vmul.f32 %v3106, %v4642
      %v4707 = vmul.f32 %v3107, %v4643
      %v4708 = vmul.f32 %v3108, %v4644
      %v4709 = vmul.f32 %v3109, %v4645
      %v4710 = vmul.f32 %v3110, %v4646
      %v4711 = vmul.f32 %v3111, %v4647
      %v4712 = vmul.f32 %v3112, %v4648
      %v4713 = vmul.f32 %v3113, %v4649
      %v4714 = vmul.f32 %v3114, %v4650
      %v4715 = vmul.f32 %v3115, %v4651
      %v4716 = vmul.f32 %v3116, %v4652
      %v4717 = vmul.f32 %v3117, %v4653
      %v4718 = vmul.f32 %v3118, %v4654
      %v4719 = vmul.f32 %v3119, %v4655
      %v4720 = vmul.f32 %v3120, %v4656
      %v4721 = vmul.f32 %v3121, %v4657
      %v4722 = vmul.f32 %v3122, %v4658
      %v4723 = vmul.f32 %v3123, %v4659
      %v4724 = vmul.f32 %v3124, %v4660
      %v4725 = vmul.f32 %v3125, %v4661
      %v4726 = vmul.f32 %v3126, %v4662
      %v4727 = vmul.f32 %v3127, %v4663
      %v4728 = vmul.f32 %v3128, %v4664
      %v4729 = vmul.f32 %v3129, %v4665
      %v4730 = vmul.f32 %v3130, %v4666
      %v4731 = vmul.f32 %v3131, %v4667
      %v4732 = vmul.f32 %v3132, %v4668
      %v4733 = vmul.f32 %v3133, %v4669
      %v4734 = vmul.f32 %v3134, %v4670
      %v4735 = vmul.f32 %v3135, %v4671
      %v4736 = vmul.f32 %v3136, %v4672
      %v4737 = vmul.f32 %v3137, %v4673
      %v4738 = vmul.f32 %v3138, %v4674
      %v4739 = vmul.f32 %v3139, %v4675
      %v4740 = vmul.f32 %v3140, %v4676
      %v4741 = vmul.f32 %v3141, %v4677
      %v4742 = vmul.f32 %v3142, %v4678
      %v4743 = vmul.f32 %v3143, %v4679
      %v4744 = vmul.f32 %v3144, %v4680
      %v4745 = vmul.f32 %v3145, %v4681
      %v4746 = vmul.f32 %v3146, %v4682
      %v4747 = vmul.f32 %v3147, %v4683
      %v4748 = vmul.f32 %v3148, %v4684
      %v4749 = vmul.f32 %v3149, %v4685
      %v4750 = vmul.f32 %v3150, %v4686
      %v4751 = vmul.f32 %v3151, %v4687
      %v4752 = vmul.f32 %v3152, %v4688
      %v4753 = vmul.f32 %v3153, %v4689
      %v4754 = vmul.f32 %v3154, %v4690
      %v4755 = vmul.f32 %v3155, %v4691
      %v4756 = vmul.f32 %v3156, %v4692
      %v4757 = vmul.f32 %v3157, %v4693
      %v4758 = vmul.f32 %v3158, %v4694
      %v4759 = vmul.f32 %v3159, %v4695
      %v4760 = vmul.f32 %v3160, %v4696
      %v4761 = vmul.f32 %v3161, %v4697
      %v4762 = vmul.f32 %v3162, %v4698
      %v4763 = vmul.f32 %v3163, %v4699
      %v4764 = vmul.f32 %v3164, %v4700
      %v4765 = vmul.f32 %v3165, %v4701
      %v4766 = vpack.c.bf16 %v4703, %v4702
      %v4767 = vpack.c.bf16 %v4705, %v4704
      %v4768 = vpack.c.bf16 %v4707, %v4706
      %v4769 = vpack.c.bf16 %v4709, %v4708
      %v4770 = vpack.c.bf16 %v4711, %v4710
      %v4771 = vpack.c.bf16 %v4713, %v4712
      %v4772 = vpack.c.bf16 %v4715, %v4714
      %v4773 = vpack.c.bf16 %v4717, %v4716
      %v4774 = vpack.c.bf16 %v4719, %v4718
      %v4775 = vpack.c.bf16 %v4721, %v4720
      %v4776 = vpack.c.bf16 %v4723, %v4722
      %v4777 = vpack.c.bf16 %v4725, %v4724
      %v4778 = vpack.c.bf16 %v4727, %v4726
      %v4779 = vpack.c.bf16 %v4729, %v4728
      %v4780 = vpack.c.bf16 %v4731, %v4730
      %v4781 = vpack.c.bf16 %v4733, %v4732
      %v4782 = vpack.c.bf16 %v4735, %v4734
      %v4783 = vpack.c.bf16 %v4737, %v4736
      %v4784 = vpack.c.bf16 %v4739, %v4738
      %v4785 = vpack.c.bf16 %v4741, %v4740
      %v4786 = vpack.c.bf16 %v4743, %v4742
      %v4787 = vpack.c.bf16 %v4745, %v4744
      %v4788 = vpack.c.bf16 %v4747, %v4746
      %v4789 = vpack.c.bf16 %v4749, %v4748
      %v4790 = vpack.c.bf16 %v4751, %v4750
      %v4791 = vpack.c.bf16 %v4753, %v4752
      %v4792 = vpack.c.bf16 %v4755, %v4754
      %v4793 = vpack.c.bf16 %v4757, %v4756
      %v4794 = vpack.c.bf16 %v4759, %v4758
      %v4795 = vpack.c.bf16 %v4761, %v4760
      %v4796 = vpack.c.bf16 %v4763, %v4762
      %v4797 = vpack.c.bf16 %v4765, %v4764
      %v4798 = vld [vmem:[%s5] sm:$0xf]
      %v4799 = vld [vmem:[%s5 + $0x4] sm:$0xf]
      %v4800 = vld [vmem:[%s6] sm:$0x1]
      %v4802 = vlaneseq
      %v4803 = vshrl.u32 %v4802, 7
      %v4804 = vsub.s32 0, %v4803
      %v4805 = vrot.slane %v4800, %v4804
      %v4809 = vunpack.c.l.b16 %v4798
      %v4810 = vunpack.c.l.b16 %v4799
      %v4811 = vpack.c.b16 %v4810, %v4809
      %v4814 = vsel %vm910, %v4766, 0
      %v4817 = vsel %vm910, %v4767, 0
      %v4820 = vsel %vm910, %v4768, 0
      %v4823 = vsel %vm910, %v4769, 0
      %v4826 = vsel %vm910, %v4770, 0
      %v4829 = vsel %vm910, %v4771, 0
      %v4832 = vsel %vm910, %v4772, 0
      %v4835 = vsel %vm910, %v4773, 0
      %v4838 = vsel %vm910, %v4774, 0
      %v4841 = vsel %vm910, %v4775, 0
      %v4844 = vsel %vm910, %v4776, 0
      %v4847 = vsel %vm910, %v4777, 0
      %v4850 = vsel %vm910, %v4778, 0
      %v4853 = vsel %vm910, %v4779, 0
      %v4856 = vsel %vm910, %v4780, 0
      %v4859 = vsel %vm910, %v4781, 0
      %v4862 = vsel %vm910, %v4782, 0
      %v4865 = vsel %vm910, %v4783, 0
      %v4868 = vsel %vm910, %v4784, 0
      %v4871 = vsel %vm910, %v4785, 0
      %v4874 = vsel %vm910, %v4786, 0
      %v4877 = vsel %vm910, %v4787, 0
      %v4880 = vsel %vm910, %v4788, 0
      %v4883 = vsel %vm910, %v4789, 0
      %v4886 = vsel %vm910, %v4790, 0
      %v4889 = vsel %vm910, %v4791, 0
      %v4892 = vsel %vm910, %v4792, 0
      %v4895 = vsel %vm910, %v4793, 0
      %v4898 = vsel %vm910, %v4794, 0
      %v4901 = vsel %vm910, %v4795, 0
      %v4904 = vsel %vm910, %v4796, 0
      %v4907 = vsel %vm910, %v4797, 0
      %4909 = vmatprep.subr.bf16.mxu0 0
      %4910 = vmatpush1.bf16.msra.mxu0 %v4811
      %4911 = vmatprep.subr.bf16.mxu0 0
      %4912 = vmatpush1.bf16.msra.mxu0 0
      %4913 = vmatprep.subr.bf16.mxu0 0
      %4914 = vmatpush1.bf16.msra.mxu0 0
      %4915 = vmatprep.subr.bf16.mxu0 0
      %4916 = vmatpush1.bf16.msra.mxu0 0
      %4917 = vmatprep.subr.bf16.mxu0 0
      %4918 = vmatpush1.bf16.msra.mxu0 0
      %4919 = vmatprep.subr.bf16.mxu0 0
      %4920 = vmatpush1.bf16.msra.mxu0 0
      %4921 = vmatprep.subr.bf16.mxu0 0
      %4922 = vmatpush1.bf16.msra.mxu0 0
      %4923 = vmatprep.subr.bf16.mxu0 0
      %4924 = vmatpush1.bf16.msra.mxu0 0
      %4925 = vmatprep.subr.bf16.mxu0 0
      %4926 = vmatpush1.bf16.msra.mxu0 0
      %4927 = vmatprep.subr.bf16.mxu0 0
      %4928 = vmatpush1.bf16.msra.mxu0 0
      %4929 = vmatprep.subr.bf16.mxu0 0
      %4930 = vmatpush1.bf16.msra.mxu0 0
      %4931 = vmatprep.subr.bf16.mxu0 0
      %4932 = vmatpush1.bf16.msra.mxu0 0
      %4933 = vmatprep.subr.bf16.mxu0 0
      %4934 = vmatpush1.bf16.msra.mxu0 0
      %4935 = vmatprep.subr.bf16.mxu0 0
      %4936 = vmatpush1.bf16.msra.mxu0 0
      %4937 = vmatprep.subr.bf16.mxu0 0
      %4938 = vmatpush1.bf16.msra.mxu0 0
      %4939 = vmatprep.subr.bf16.mxu0 0
      %4940 = vmatpush1.bf16.msra.mxu0 0
      %4941 = vmatprep.mubr.bf16.mxu0 0
      %4942 = vmatmul.mubr.bf16.gmra.mrb[0].mxu0 %v4814
      %v4943 = vpop.f32.mrb[0].mxu0
      %v4944 = vadd.f32 %v4805, %v4943
      %v4945 = vpop.f32.mrb[0].mxu0
      %v4946 = vpop.f32.mrb[0].mxu0
      %v4947 = vadd.f32 %v4805, %v4946
      %v4948 = vpop.f32.mrb[0].mxu0
      %4949 = vmatprep.mubr.bf16.mxu0 0
      %4950 = vmatmul.mubr.bf16.gmra.mrb[0].mxu0 %v4817
      %v4951 = vpop.f32.mrb[0].mxu0
      %v4952 = vadd.f32 %v4805, %v4951
      %v4953 = vpop.f32.mrb[0].mxu0
      %v4954 = vpop.f32.mrb[0].mxu0
      %v4955 = vadd.f32 %v4805, %v4954
      %v4956 = vpop.f32.mrb[0].mxu0
      %4957 = vmatprep.mubr.bf16.mxu0 0
      %4958 = vmatmul.mubr.bf16.gmra.mrb[0].mxu0 %v4820
      %v4959 = vpop.f32.mrb[0].mxu0
      %v4960 = vadd.f32 %v4805, %v4959
      %v4961 = vpop.f32.mrb[0].mxu0
      %v4962 = vpop.f32.mrb[0].mxu0
      %v4963 = vadd.f32 %v4805, %v4962
      %v4964 = vpop.f32.mrb[0].mxu0
      %4965 = vmatprep.mubr.bf16.mxu0 0
      %4966 = vmatmul.mubr.bf16.gmra.mrb[0].mxu0 %v4823
      %v4967 = vpop.f32.mrb[0].mxu0
      %v4968 = vadd.f32 %v4805, %v4967
      %v4969 = vpop.f32.mrb[0].mxu0
      %v4970 = vpop.f32.mrb[0].mxu0
      %v4971 = vadd.f32 %v4805, %v4970
      %v4972 = vpop.f32.mrb[0].mxu0
      %4973 = vmatprep.mubr.bf16.mxu0 0
      %4974 = vmatmul.mubr.bf16.gmra.mrb[0].mxu0 %v4826
      %v4975 = vpop.f32.mrb[0].mxu0
      %v4976 = vadd.f32 %v4805, %v4975
      %v4977 = vpop.f32.mrb[0].mxu0
      %v4978 = vpop.f32.mrb[0].mxu0
      %v4979 = vadd.f32 %v4805, %v4978
      %v4980 = vpop.f32.mrb[0].mxu0
      %4981 = vmatprep.mubr.bf16.mxu0 0
      %4982 = vmatmul.mubr.bf16.gmra.mrb[0].mxu0 %v4829
      %v4983 = vpop.f32.mrb[0].mxu0
      %v4984 = vadd.f32 %v4805, %v4983
      %v4985 = vpop.f32.mrb[0].mxu0
      %v4986 = vpop.f32.mrb[0].mxu0
      %v4987 = vadd.f32 %v4805, %v4986
      %v4988 = vpop.f32.mrb[0].mxu0
      %4989 = vmatprep.mubr.bf16.mxu0 0
      %4990 = vmatmul.mubr.bf16.gmra.mrb[0].mxu0 %v4832
      %v4991 = vpop.f32.mrb[0].mxu0
      %v4992 = vadd.f32 %v4805, %v4991
      %v4993 = vpop.f32.mrb[0].mxu0
      %v4994 = vpop.f32.mrb[0].mxu0
      %v4995 = vadd.f32 %v4805, %v4994
      %v4996 = vpop.f32.mrb[0].mxu0
      %4997 = vmatprep.mubr.bf16.mxu0 0
      %4998 = vmatmul.mubr.bf16.gmra.mrb[0].mxu0 %v4835
      %v4999 = vpop.f32.mrb[0].mxu0
      %v5000 = vadd.f32 %v4805, %v4999
      %v5001 = vpop.f32.mrb[0].mxu0
      %v5002 = vpop.f32.mrb[0].mxu0
      %v5003 = vadd.f32 %v4805, %v5002
      %v5004 = vpop.f32.mrb[0].mxu0
      %5005 = vmatprep.mubr.bf16.mxu0 0
      %5006 = vmatmul.mubr.bf16.gmra.mrb[0].mxu0 %v4838
      %v5007 = vpop.f32.mrb[0].mxu0
      %v5008 = vadd.f32 %v4805, %v5007
      %v5009 = vpop.f32.mrb[0].mxu0
      %v5010 = vpop.f32.mrb[0].mxu0
      %v5011 = vadd.f32 %v4805, %v5010
      %v5012 = vpop.f32.mrb[0].mxu0
      %5013 = vmatprep.mubr.bf16.mxu0 0
      %5014 = vmatmul.mubr.bf16.gmra.mrb[0].mxu0 %v4841
      %v5015 = vpop.f32.mrb[0].mxu0
      %v5016 = vadd.f32 %v4805, %v5015
      %v5017 = vpop.f32.mrb[0].mxu0
      %v5018 = vpop.f32.mrb[0].mxu0
      %v5019 = vadd.f32 %v4805, %v5018
      %v5020 = vpop.f32.mrb[0].mxu0
      %5021 = vmatprep.mubr.bf16.mxu0 0
      %5022 = vmatmul.mubr.bf16.gmra.mrb[0].mxu0 %v4844
      %v5023 = vpop.f32.mrb[0].mxu0
      %v5024 = vadd.f32 %v4805, %v5023
      %v5025 = vpop.f32.mrb[0].mxu0
      %v5026 = vpop.f32.mrb[0].mxu0
      %v5027 = vadd.f32 %v4805, %v5026
      %v5028 = vpop.f32.mrb[0].mxu0
      %5029 = vmatprep.mubr.bf16.mxu0 0
      %5030 = vmatmul.mubr.bf16.gmra.mrb[0].mxu0 %v4847
      %v5031 = vpop.f32.mrb[0].mxu0
      %v5032 = vadd.f32 %v4805, %v5031
      %v5033 = vpop.f32.mrb[0].mxu0
      %v5034 = vpop.f32.mrb[0].mxu0
      %v5035 = vadd.f32 %v4805, %v5034
      %v5036 = vpop.f32.mrb[0].mxu0
      %5037 = vmatprep.mubr.bf16.mxu0 0
      %5038 = vmatmul.mubr.bf16.gmra.mrb[0].mxu0 %v4850
      %v5039 = vpop.f32.mrb[0].mxu0
      %v5040 = vadd.f32 %v4805, %v5039
      %v5041 = vpop.f32.mrb[0].mxu0
      %v5042 = vpop.f32.mrb[0].mxu0
      %v5043 = vadd.f32 %v4805, %v5042
      %v5044 = vpop.f32.mrb[0].mxu0
      %5045 = vmatprep.mubr.bf16.mxu0 0
      %5046 = vmatmul.mubr.bf16.gmra.mrb[0].mxu0 %v4853
      %v5047 = vpop.f32.mrb[0].mxu0
      %v5048 = vadd.f32 %v4805, %v5047
      %v5049 = vpop.f32.mrb[0].mxu0
      %v5050 = vpop.f32.mrb[0].mxu0
      %v5051 = vadd.f32 %v4805, %v5050
      %v5052 = vpop.f32.mrb[0].mxu0
      %5053 = vmatprep.mubr.bf16.mxu0 0
      %5054 = vmatmul.mubr.bf16.gmra.mrb[0].mxu0 %v4856
      %v5055 = vpop.f32.mrb[0].mxu0
      %v5056 = vadd.f32 %v4805, %v5055
      %v5057 = vpop.f32.mrb[0].mxu0
      %v5058 = vpop.f32.mrb[0].mxu0
      %v5059 = vadd.f32 %v4805, %v5058
      %v5060 = vpop.f32.mrb[0].mxu0
      %5061 = vmatprep.mubr.bf16.mxu0 0
      %5062 = vmatmul.mubr.bf16.gmra.mrb[0].mxu0 %v4859
      %v5063 = vpop.f32.mrb[0].mxu0
      %v5064 = vadd.f32 %v4805, %v5063
      %v5065 = vpop.f32.mrb[0].mxu0
      %v5066 = vpop.f32.mrb[0].mxu0
      %v5067 = vadd.f32 %v4805, %v5066
      %v5068 = vpop.f32.mrb[0].mxu0
      %5069 = vmatprep.mubr.bf16.mxu0 0
      %5070 = vmatmul.mubr.bf16.gmra.mrb[0].mxu0 %v4862
      %v5071 = vpop.f32.mrb[0].mxu0
      %v5072 = vadd.f32 %v4805, %v5071
      %v5073 = vpop.f32.mrb[0].mxu0
      %v5074 = vpop.f32.mrb[0].mxu0
      %v5075 = vadd.f32 %v4805, %v5074
      %v5076 = vpop.f32.mrb[0].mxu0
      %5077 = vmatprep.mubr.bf16.mxu0 0
      %5078 = vmatmul.mubr.bf16.gmra.mrb[0].mxu0 %v4865
      %v5079 = vpop.f32.mrb[0].mxu0
      %v5080 = vadd.f32 %v4805, %v5079
      %v5081 = vpop.f32.mrb[0].mxu0
      %v5082 = vpop.f32.mrb[0].mxu0
      %v5083 = vadd.f32 %v4805, %v5082
      %v5084 = vpop.f32.mrb[0].mxu0
      %5085 = vmatprep.mubr.bf16.mxu0 0
      %5086 = vmatmul.mubr.bf16.gmra.mrb[0].mxu0 %v4868
      %v5087 = vpop.f32.mrb[0].mxu0
      %v5088 = vadd.f32 %v4805, %v5087
      %v5089 = vpop.f32.mrb[0].mxu0
      %v5090 = vpop.f32.mrb[0].mxu0
      %v5091 = vadd.f32 %v4805, %v5090
      %v5092 = vpop.f32.mrb[0].mxu0
      %5093 = vmatprep.mubr.bf16.mxu0 0
      %5094 = vmatmul.mubr.bf16.gmra.mrb[0].mxu0 %v4871
      %v5095 = vpop.f32.mrb[0].mxu0
      %v5096 = vadd.f32 %v4805, %v5095
      %v5097 = vpop.f32.mrb[0].mxu0
      %v5098 = vpop.f32.mrb[0].mxu0
      %v5099 = vadd.f32 %v4805, %v5098
      %v5100 = vpop.f32.mrb[0].mxu0
      %5101 = vmatprep.mubr.bf16.mxu0 0
      %5102 = vmatmul.mubr.bf16.gmra.mrb[0].mxu0 %v4874
      %v5103 = vpop.f32.mrb[0].mxu0
      %v5104 = vadd.f32 %v4805, %v5103
      %v5105 = vpop.f32.mrb[0].mxu0
      %v5106 = vpop.f32.mrb[0].mxu0
      %v5107 = vadd.f32 %v4805, %v5106
      %v5108 = vpop.f32.mrb[0].mxu0
      %5109 = vmatprep.mubr.bf16.mxu0 0
      %5110 = vmatmul.mubr.bf16.gmra.mrb[0].mxu0 %v4877
      %v5111 = vpop.f32.mrb[0].mxu0
      %v5112 = vadd.f32 %v4805, %v5111
      %v5113 = vpop.f32.mrb[0].mxu0
      %v5114 = vpop.f32.mrb[0].mxu0
      %v5115 = vadd.f32 %v4805, %v5114
      %v5116 = vpop.f32.mrb[0].mxu0
      %5117 = vmatprep.mubr.bf16.mxu0 0
      %5118 = vmatmul.mubr.bf16.gmra.mrb[0].mxu0 %v4880
      %v5119 = vpop.f32.mrb[0].mxu0
      %v5120 = vadd.f32 %v4805, %v5119
      %v5121 = vpop.f32.mrb[0].mxu0
      %v5122 = vpop.f32.mrb[0].mxu0
      %v5123 = vadd.f32 %v4805, %v5122
      %v5124 = vpop.f32.mrb[0].mxu0
      %5125 = vmatprep.mubr.bf16.mxu0 0
      %5126 = vmatmul.mubr.bf16.gmra.mrb[0].mxu0 %v4883
      %v5127 = vpop.f32.mrb[0].mxu0
      %v5128 = vadd.f32 %v4805, %v5127
      %v5129 = vpop.f32.mrb[0].mxu0
      %v5130 = vpop.f32.mrb[0].mxu0
      %v5131 = vadd.f32 %v4805, %v5130
      %v5132 = vpop.f32.mrb[0].mxu0
      %5133 = vmatprep.mubr.bf16.mxu0 0
      %5134 = vmatmul.mubr.bf16.gmra.mrb[0].mxu0 %v4886
      %v5135 = vpop.f32.mrb[0].mxu0
      %v5136 = vadd.f32 %v4805, %v5135
      %v5137 = vpop.f32.mrb[0].mxu0
      %v5138 = vpop.f32.mrb[0].mxu0
      %v5139 = vadd.f32 %v4805, %v5138
      %v5140 = vpop.f32.mrb[0].mxu0
      %5141 = vmatprep.mubr.bf16.mxu0 0
      %5142 = vmatmul.mubr.bf16.gmra.mrb[0].mxu0 %v4889
      %v5143 = vpop.f32.mrb[0].mxu0
      %v5144 = vadd.f32 %v4805, %v5143
      %v5145 = vpop.f32.mrb[0].mxu0
      %v5146 = vpop.f32.mrb[0].mxu0
      %v5147 = vadd.f32 %v4805, %v5146
      %v5148 = vpop.f32.mrb[0].mxu0
      %5149 = vmatprep.mubr.bf16.mxu0 0
      %5150 = vmatmul.mubr.bf16.gmra.mrb[0].mxu0 %v4892
      %v5151 = vpop.f32.mrb[0].mxu0
      %v5152 = vadd.f32 %v4805, %v5151
      %v5153 = vpop.f32.mrb[0].mxu0
      %v5154 = vpop.f32.mrb[0].mxu0
      %v5155 = vadd.f32 %v4805, %v5154
      %v5156 = vpop.f32.mrb[0].mxu0
      %5157 = vmatprep.mubr.bf16.mxu0 0
      %5158 = vmatmul.mubr.bf16.gmra.mrb[0].mxu0 %v4895
      %v5159 = vpop.f32.mrb[0].mxu0
      %v5160 = vadd.f32 %v4805, %v5159
      %v5161 = vpop.f32.mrb[0].mxu0
      %v5162 = vpop.f32.mrb[0].mxu0
      %v5163 = vadd.f32 %v4805, %v5162
      %v5164 = vpop.f32.mrb[0].mxu0
      %5165 = vmatprep.mubr.bf16.mxu0 0
      %5166 = vmatmul.mubr.bf16.gmra.mrb[0].mxu0 %v4898
      %v5167 = vpop.f32.mrb[0].mxu0
      %v5168 = vadd.f32 %v4805, %v5167
      %v5169 = vpop.f32.mrb[0].mxu0
      %v5170 = vpop.f32.mrb[0].mxu0
      %v5171 = vadd.f32 %v4805, %v5170
      %v5172 = vpop.f32.mrb[0].mxu0
      %5173 = vmatprep.mubr.bf16.mxu0 0
      %5174 = vmatmul.mubr.bf16.gmra.mrb[0].mxu0 %v4901
      %v5175 = vpop.f32.mrb[0].mxu0
      %v5176 = vadd.f32 %v4805, %v5175
      %v5177 = vpop.f32.mrb[0].mxu0
      %v5178 = vpop.f32.mrb[0].mxu0
      %v5179 = vadd.f32 %v4805, %v5178
      %v5180 = vpop.f32.mrb[0].mxu0
      %5181 = vmatprep.mubr.bf16.mxu0 0
      %5182 = vmatmul.mubr.bf16.gmra.mrb[0].mxu0 %v4904
      %v5183 = vpop.f32.mrb[0].mxu0
      %v5184 = vadd.f32 %v4805, %v5183
      %v5185 = vpop.f32.mrb[0].mxu0
      %v5186 = vpop.f32.mrb[0].mxu0
      %v5187 = vadd.f32 %v4805, %v5186
      %v5188 = vpop.f32.mrb[0].mxu0
      %5189 = vmatprep.mubr.bf16.mxu0 0
      %5190 = vmatmul.mubr.bf16.gmra.mrb[0].mxu0 %v4907
      %v5191 = vpop.f32.mrb[0].mxu0
      %v5192 = vadd.f32 %v4805, %v5191
      %v5193 = vpop.f32.mrb[0].mxu0
      %v5194 = vpop.f32.mrb[0].mxu0
      %v5195 = vadd.f32 %v4805, %v5194
      %v5196 = vpop.f32.mrb[0].mxu0
      %5197 = vdwg.mxu0
      %5198 = vst.msk [vmem:[%s285] sm:$0xff] %vm520, %v4944
      %5199 = vst.msk [vmem:[%s285 + $0x8] sm:$0xff] %vm520, %v4947
      %5200 = vst.msk [vmem:[%s285 + $0x10] sm:$0xff] %vm520, %v4952
      %5201 = vst.msk [vmem:[%s285 + $0x18] sm:$0xff] %vm520, %v4955
      %5202 = vst.msk [vmem:[%s285 + $0x20] sm:$0xff] %vm520, %v4960
      %5203 = vst.msk [vmem:[%s285 + $0x28] sm:$0xff] %vm520, %v4963
      %5204 = vst.msk [vmem:[%s285 + $0x30] sm:$0xff] %vm520, %v4968
      %5205 = vst.msk [vmem:[%s285 + $0x38] sm:$0xff] %vm520, %v4971
      %5206 = vst.msk [vmem:[%s285 + $0x40] sm:$0xff] %vm520, %v4976
      %5207 = vst.msk [vmem:[%s285 + $0x48] sm:$0xff] %vm520, %v4979
      %5208 = vst.msk [vmem:[%s285 + $0x50] sm:$0xff] %vm520, %v4984
      %5209 = vst.msk [vmem:[%s285 + $0x58] sm:$0xff] %vm520, %v4987
      %5210 = vst.msk [vmem:[%s285 + $0x60] sm:$0xff] %vm520, %v4992
      %5211 = vst.msk [vmem:[%s285 + $0x68] sm:$0xff] %vm520, %v4995
      %5212 = vst.msk [vmem:[%s285 + $0x70] sm:$0xff] %vm520, %v5000
      %5213 = vst.msk [vmem:[%s285 + $0x78] sm:$0xff] %vm520, %v5003
      %5214 = vst.msk [vmem:[%s285 + $0x80] sm:$0xff] %vm520, %v5008
      %5215 = vst.msk [vmem:[%s285 + $0x88] sm:$0xff] %vm520, %v5011
      %5216 = vst.msk [vmem:[%s285 + $0x90] sm:$0xff] %vm520, %v5016
      %5217 = vst.msk [vmem:[%s285 + $0x98] sm:$0xff] %vm520, %v5019
      %5218 = vst.msk [vmem:[%s285 + $0xa0] sm:$0xff] %vm520, %v5024
      %5219 = vst.msk [vmem:[%s285 + $0xa8] sm:$0xff] %vm520, %v5027
      %5220 = vst.msk [vmem:[%s285 + $0xb0] sm:$0xff] %vm520, %v5032
      %5221 = vst.msk [vmem:[%s285 + $0xb8] sm:$0xff] %vm520, %v5035
      %5222 = vst.msk [vmem:[%s285 + $0xc0] sm:$0xff] %vm520, %v5040
      %5223 = vst.msk [vmem:[%s285 + $0xc8] sm:$0xff] %vm520, %v5043
      %5224 = vst.msk [vmem:[%s285 + $0xd0] sm:$0xff] %vm520, %v5048
      %5225 = vst.msk [vmem:[%s285 + $0xd8] sm:$0xff] %vm520, %v5051
      %5226 = vst.msk [vmem:[%s285 + $0xe0] sm:$0xff] %vm520, %v5056
      %5227 = vst.msk [vmem:[%s285 + $0xe8] sm:$0xff] %vm520, %v5059
      %5228 = vst.msk [vmem:[%s285 + $0xf0] sm:$0xff] %vm520, %v5064
      %5229 = vst.msk [vmem:[%s285 + $0xf8] sm:$0xff] %vm520, %v5067
      %5230 = vst.msk [vmem:[%s285 + $0x100] sm:$0xff] %vm520, %v5072
      %5231 = vst.msk [vmem:[%s285 + $0x108] sm:$0xff] %vm520, %v5075
      %5232 = vst.msk [vmem:[%s285 + $0x110] sm:$0xff] %vm520, %v5080
      %5233 = vst.msk [vmem:[%s285 + $0x118] sm:$0xff] %vm520, %v5083
      %5234 = vst.msk [vmem:[%s285 + $0x120] sm:$0xff] %vm520, %v5088
      %5235 = vst.msk [vmem:[%s285 + $0x128] sm:$0xff] %vm520, %v5091
      %5236 = vst.msk [vmem:[%s285 + $0x130] sm:$0xff] %vm520, %v5096
      %5237 = vst.msk [vmem:[%s285 + $0x138] sm:$0xff] %vm520, %v5099
      %5238 = vst.msk [vmem:[%s285 + $0x140] sm:$0xff] %vm520, %v5104
      %5239 = vst.msk [vmem:[%s285 + $0x148] sm:$0xff] %vm520, %v5107
      %5240 = vst.msk [vmem:[%s285 + $0x150] sm:$0xff] %vm520, %v5112
      %5241 = vst.msk [vmem:[%s285 + $0x158] sm:$0xff] %vm520, %v5115
      %5242 = vst.msk [vmem:[%s285 + $0x160] sm:$0xff] %vm520, %v5120
      %5243 = vst.msk [vmem:[%s285 + $0x168] sm:$0xff] %vm520, %v5123
      %5244 = vst.msk [vmem:[%s285 + $0x170] sm:$0xff] %vm520, %v5128
      %5245 = vst.msk [vmem:[%s285 + $0x178] sm:$0xff] %vm520, %v5131
      %5246 = vst.msk [vmem:[%s285 + $0x180] sm:$0xff] %vm520, %v5136
      %5247 = vst.msk [vmem:[%s285 + $0x188] sm:$0xff] %vm520, %v5139
      %5248 = vst.msk [vmem:[%s285 + $0x190] sm:$0xff] %vm520, %v5144
      %5249 = vst.msk [vmem:[%s285 + $0x198] sm:$0xff] %vm520, %v5147
      %5250 = vst.msk [vmem:[%s285 + $0x1a0] sm:$0xff] %vm520, %v5152
      %5251 = vst.msk [vmem:[%s285 + $0x1a8] sm:$0xff] %vm520, %v5155
      %5252 = vst.msk [vmem:[%s285 + $0x1b0] sm:$0xff] %vm520, %v5160
      %5253 = vst.msk [vmem:[%s285 + $0x1b8] sm:$0xff] %vm520, %v5163
      %5254 = vst.msk [vmem:[%s285 + $0x1c0] sm:$0xff] %vm520, %v5168
      %5255 = vst.msk [vmem:[%s285 + $0x1c8] sm:$0xff] %vm520, %v5171
      %5256 = vst.msk [vmem:[%s285 + $0x1d0] sm:$0xff] %vm520, %v5176
      %5257 = vst.msk [vmem:[%s285 + $0x1d8] sm:$0xff] %vm520, %v5179
      %5258 = vst.msk [vmem:[%s285 + $0x1e0] sm:$0xff] %vm520, %v5184
      %5259 = vst.msk [vmem:[%s285 + $0x1e8] sm:$0xff] %vm520, %v5187
      %5260 = vst.msk [vmem:[%s285 + $0x1f0] sm:$0xff] %vm520, %v5192
      %5261 = vst.msk [vmem:[%s285 + $0x1f8] sm:$0xff] %vm520, %v5195
      %s5262 = smul.u32 2, %s18
      %p5263 = scmp.lt.s32.totalorder %s5262, 3
      %s5264 = scalar_select %p5263, %s5262, 3
      %s5265 = smul.addr %s5264, 32
      %s5266 = smul.addr %s5265, 8
      %s5267 = scalar_lea.vmem %s7, %s5266
      // Predicated region
      $region49: #{tpu_custom_call.1} parent=47 // pred_check
        %p5268 = pneg %p188
      $region50: #{tpu_custom_call.1} parent=47 // pred_check_branch
        %5270 = sbr.rel (%p5268) target = $region52
      $region51: #{tpu_custom_call.1} parent=47 // pred_region
        %s5271 = smul.u32 2, %s18
      $region52: #{tpu_custom_call.1} parent=47 // pred_fallthru
        _
    $region48: #{tpu_custom_call.1} parent=5 // pred_fallthru
      _
    %p5272 = scmp.le.s32.totalorder 2, %s13
    // Predicated region
    $region53: #{tpu_custom_call.1} parent=5 // pred_check
      %p5273 = pneg %p5272
    $region54: #{tpu_custom_call.1} parent=5 // pred_check_branch
      %5275 = sbr.rel (%p5273) target = $region56
    $region55: #{tpu_custom_call.1} parent=5 // pred_region
      %s5276 = ssub.s32 %s13, 2
      // Predicated region
      $region57: #{tpu_custom_call.1} parent=55 // pred_check
        %p5277 = pneg %p194
      $region58: #{tpu_custom_call.1} parent=55 // pred_check_branch
        %5279 = sbr.rel (%p5277) target = $region60
      $region59: #{tpu_custom_call.1} parent=55 // pred_region
        %s5280 = smul.u32 2, %s19
        %p5281 = scmp.lt.s32.totalorder %s5280, 3
        %s5282 = scalar_select %p5281, %s5280, 3
        %s5283 = smul.addr %s5282, 32
        %s5284 = smul.addr %s5283, 8
        %s5285 = scalar_lea.vmem %s7, %s5284
      $region60: #{tpu_custom_call.1} parent=55 // pred_fallthru
        _
    $region56: #{tpu_custom_call.1} parent=5 // pred_fallthru
      _
  $region6: #{tpu_custom_call.1} parent=0 // loop_footer
    %s17 = sadd.s32 1, %s13
  $region7: #{tpu_custom_call.1} parent=0 // loop_footer_branch
    %12 = sbr.rel target = $region3
  $region8: #{tpu_custom_call.1} parent=0 // loop_exit
    _

</llo_original>
